<compile_context>
chip_gen: v5e
topology: v5e:2x2
jax: 0.10.0
libtpu: 0.0.40
codegen_flags: <defaults>
</compile_context>

<pallas_src>
import jax
import jax.numpy as jnp
from jax.experimental import pallas as pl
from jax.experimental.pallas import tpu as pltpu

_EPS = 1e-5

# Set True on v5e (128x128 MXU): nine K=C dots, no dx-tap lane concat.
# Default (False) = three K=3C dots, best for v6e/v7x's 256-wide MXU.
_SPLIT_DX_TAPS = False


def _conv3x3_instnorm(x, w_ref, g_ref, be_ref, mask_l, mask_r, *, apply_relu):
    """ReflectionPad(1) + 3x3 conv + InstanceNorm (+ optional ReLU).

    x       : (H, W, C) float32 value
    w_ref   : (9*C, C) bfloat16 ref (HWIO weight reshaped; rows = (ky, kx, ci))
    g_ref, be_ref : (1, C) float32 refs (InstanceNorm gamma / beta)
    mask_l, mask_r: (1, W, C) bool values (w == 0 / w == W-1), hoisted by caller
    returns : (H*W, C) float32
    """
    H, W, C = x.shape
    HW = H * W

    # --- reflection pad in H: concat along the untiled outer axis (cheap). ---
    xp = jnp.concatenate([x[1:2], x, x[H - 2:H - 1]], axis=0)        # (H+2, W, C) f32

    # --- dx = -1 / +1 taps: f32 sublane rolls (XLU slot) + boundary fix. ---
    r_m = pltpu.roll(xp, shift=1, axis=1)        # r_m[:, w] = xp[:, (w-1) % W]
    r_p = pltpu.roll(xp, shift=W - 1, axis=1)    # r_p[:, w] = xp[:, (w+1) % W]
    t_m1 = jnp.where(mask_l, r_p, r_m).astype(jnp.bfloat16)  # left nb, reflect w=0
    t_p1 = jnp.where(mask_r, r_m, r_p).astype(jnp.bfloat16)  # right nb, reflect w=W-1
    t_0 = xp.astype(jnp.bfloat16)                             # center tap

    # --- conv as accumulated MXU dots (f32 accumulation). ---
    acc = None
    if _SPLIT_DX_TAPS:
        # v5e path: nine K=C dots, no dx concat at all.
        taps2d = tuple(t.reshape((H + 2) * W, C) for t in (t_m1, t_0, t_p1))
        for dy in range(3):
            for dx in range(3):
                lhs = taps2d[dx][dy * W:dy * W + HW]          # vreg-aligned slice
                rhs = w_ref[(dy * 3 + dx) * C:(dy * 3 + dx + 1) * C, :]
                p = jnp.dot(lhs, rhs, preferred_element_type=jnp.float32)
                acc = p if acc is None else acc + p
    else:
        # Single lane-concat of the three dx taps, then three dy dots (K = 3C).
        taps = jnp.concatenate([t_m1, t_0, t_p1], axis=-1)    # (H+2, W, 3C) bf16
        taps = taps.reshape((H + 2) * W, 3 * C)               # W % 16 -> tile-preserving
        for dy in range(3):
            lhs = taps[dy * W:dy * W + HW]                    # offsets 0, W, 2W (16-aligned)
            rhs = w_ref[dy * 3 * C:(dy + 1) * 3 * C, :]       # rows (ky=dy, kx=0..2, ci)
            p = jnp.dot(lhs, rhs, preferred_element_type=jnp.float32)
            acc = p if acc is None else acc + p

    # (Conv bias intentionally omitted: a per-channel constant is exactly
    #  cancelled by the InstanceNorm mean subtraction below.)

    # --- instance norm: single pass sum / sum-of-squares, fused affine. ---
    inv_n = 1.0 / HW
    s1 = jnp.sum(acc, axis=0, keepdims=True)                  # (1, C)
    s2 = jnp.sum(acc * acc, axis=0, keepdims=True)            # (1, C)
    mean = s1 * inv_n
    var = jnp.maximum(s2 * inv_n - mean * mean, 0.0)          # biased variance
    scale = g_ref[...] * jax.lax.rsqrt(var + _EPS)            # (1, C)
    shift = be_ref[...] - mean * scale
    y = acc * scale + shift
    if apply_relu:
        y = jnp.maximum(y, 0.0)
    return y                                                   # (H*W, C) f32


def residual_kernel(x_ref,
                    w1_ref, g1_ref, be1_ref,
                    w2_ref, g2_ref, be2_ref,
                    o_ref):
    H, W, C = x_ref.shape[1:]
    x = x_ref[0]                                               # (H, W, C) f32

    # Boundary masks hoisted once per grid step (reused by both convs).
    w_ids = jax.lax.broadcasted_iota(jnp.int32, (1, W, C), 1)
    mask_l = w_ids == 0
    mask_r = w_ids == W - 1

    h1 = _conv3x3_instnorm(x, w1_ref, g1_ref, be1_ref, mask_l, mask_r,
                           apply_relu=True)
    h2 = _conv3x3_instnorm(h1.reshape(H, W, C), w2_ref, g2_ref, be2_ref,
                           mask_l, mask_r, apply_relu=False)
    out = h2 + x.reshape(H * W, C)                             # residual add (f32)
    o_ref[0] = out.reshape(H, W, C).astype(o_ref.dtype)


def residual_layer(x, params):
    """x: (N, H, W, C) float32.  params: conv weights (3,3,C,C) HWIO + IN params.

    Conv biases b1/b2 (if present in params) are NOT used by the kernel: a
    per-channel constant added before InstanceNorm is cancelled by the mean
    subtraction, so the forward pass is numerically identical without them.
    """
    N, H, W, C = x.shape
    assert H >= 2 and W >= 2, "reflection pad of 1 needs H, W >= 2"
    # Lane-dense channels; W % 16 keeps the bf16 (H,W,*)->(H*W,*) reshapes
    # tile-preserving (bf16 sublane tile is 16).
    assert W % 16 == 0 and C % 128 == 0, "expect W % 16 == 0 and C % 128 == 0"

    # Fold the 3x3 taps into the contraction dim; bf16 halves weight DMA bytes.
    w1 = params["w1"].reshape(9 * C, C).astype(jnp.bfloat16)
    w2 = params["w2"].reshape(9 * C, C).astype(jnp.bfloat16)
    g1, be1 = params["g1"], params["be1"]
    g2, be2 = params["g2"], params["be2"]

    img_spec = pl.BlockSpec((1, H, W, C), lambda n: (n, 0, 0, 0))
    w_spec = pl.BlockSpec((9 * C, C), lambda n: (0, 0))
    p_spec = pl.BlockSpec((1, C), lambda n: (0, 0))

    # VMEM budget sized to the actual live set (double-buffered image I/O,
    # both bf16 weights, the bf16 tap pipeline and the f32 accumulator),
    # with headroom; clamped to [32 MiB, 64 MiB] so it is safe on v5e..v7x.
    img_b = H * W * C * 4
    taps_b = (H + 2) * W * 3 * C * 2
    w_b = 9 * C * C * 2
    vmem_needed = 2 * (4 * img_b + 2 * 2 * w_b + 2 * taps_b + 3 * img_b)
    vmem_limit = int(min(max(vmem_needed, 32 * 1024 * 1024), 64 * 1024 * 1024))

    cost = pl.CostEstimate(
        flops=int(N * 2 * 2 * H * W * (9 * C) * C),      # two 3x3 convs
        transcendentals=int(N * 2 * C),                  # rsqrt per channel per conv
        bytes_accessed=int(2 * N * img_b + 2 * 2 * w_b), # x + out + bf16 weights
    )

    return pl.pallas_call(
        residual_kernel,
        out_shape=jax.ShapeDtypeStruct((N, H, W, C), x.dtype),
        grid_spec=pltpu.PrefetchScalarGridSpec(
            num_scalar_prefetch=0,
            grid=(N,),                      # N >= 2 parallel steps feeds both v7x TCs
            in_specs=[
                img_spec,
                w_spec, p_spec, p_spec,
                w_spec, p_spec, p_spec,
            ],
            out_specs=img_spec,
        ),
        compiler_params=pltpu.CompilerParams(
            dimension_semantics=("parallel",),
            vmem_limit_bytes=vmem_limit),
        cost_estimate=cost,
    )(x, w1, g1, be1, w2, g2, be2)


# ---------------- pure-JAX reference (f32, with conv bias) ----------------
def _ref_conv_block(x, w, b, g, be, relu):
    xp = jnp.pad(x, ((0, 0), (1, 1), (1, 1), (0, 0)), mode="reflect")
    y = jax.lax.conv_general_dilated(
        xp, w, window_strides=(1, 1), padding="VALID",
        dimension_numbers=("NHWC", "HWIO", "NHWC"))
    y = y + b.reshape(1, 1, 1, -1)
    mean = jnp.mean(y, axis=(1, 2), keepdims=True)
    var = jnp.mean((y - mean) ** 2, axis=(1, 2), keepdims=True)
    y = (y - mean) * jax.lax.rsqrt(var + _EPS)
    y = y * g.reshape(1, 1, 1, -1) + be.reshape(1, 1, 1, -1)
    if relu:
        y = jnp.maximum(y, 0.0)
    return y


def residual_layer_ref(x, p):
    h = _ref_conv_block(x, p["w1"], p["b1"], p["g1"], p["be1"], True)
    h = _ref_conv_block(h, p["w2"], p["b2"], p["g2"], p["be2"], False)
    return h + x


if __name__ == "__main__":
    # Module default is channels=128 (ResidualLayer(channels=128, kernel_size=3)).
    N, H, W, C = 2, 16, 16, 128
    key = jax.random.PRNGKey(0)
    k = jax.random.split(key, 9)

    x = jax.random.normal(k[0], (N, H, W, C), jnp.float32)

    scale = 1.0 / (3 * 3 * C) ** 0.5
    params = {
        "w1": jax.random.normal(k[1], (3, 3, C, C), jnp.float32) * scale,
        "b1": jax.random.normal(k[2], (1, C), jnp.float32) * 0.1,
        "g1": 1.0 + 0.1 * jax.random.normal(k[5], (1, C), jnp.float32),
        "be1": 0.1 * jax.random.normal(k[6], (1, C), jnp.float32),
        "w2": jax.random.normal(k[3], (3, 3, C, C), jnp.float32) * scale,
        "b2": jax.random.normal(k[4], (1, C), jnp.float32) * 0.1,
        "g2": 1.0 + 0.1 * jax.random.normal(k[7], (1, C), jnp.float32),
        "be2": 0.1 * jax.random.normal(k[8], (1, C), jnp.float32),
    }

    out = jax.block_until_ready(residual_layer(x, params))
    ref = jax.block_until_ready(residual_layer_ref(x, params))

    assert out.shape == (N, H, W, C)
    max_err = float(jnp.max(jnp.abs(out - ref)))
    # bf16 matmul operands with f32 accumulation -> loosened tolerance vs f32 ref.
    assert jnp.allclose(out, ref, atol=5e-2, rtol=5e-2), max_err

    print("KERNEL_OK")
</pallas_src>

<mosaic_0001>
module attributes {stable_mosaic.version = 11 : i64} {
  func.func @residual_kernel(%arg0: i32, %arg1: memref<1x16x16x128xf32, #tpu.memory_space<vmem>>, %arg2: memref<1152x128xbf16, #tpu.memory_space<vmem>>, %arg3: memref<1x128xf32, #tpu.memory_space<vmem>>, %arg4: memref<1x128xf32, #tpu.memory_space<vmem>>, %arg5: memref<1152x128xbf16, #tpu.memory_space<vmem>>, %arg6: memref<1x128xf32, #tpu.memory_space<vmem>>, %arg7: memref<1x128xf32, #tpu.memory_space<vmem>>, %arg8: memref<1x16x16x128xf32, #tpu.memory_space<vmem>>) attributes {dimension_semantics = [#tpu.dimension_semantics<parallel>], iteration_bounds = array<i64: 2>, scalar_prefetch = 0 : i64, scratch_operands = 0 : i64, tpu.core_type = #tpu.core_type<tc>, window_params = [{transform_indices = @transform_0, window_bounds = array<i64: 1, 16, 16, 128>}, {pipeline_mode = #tpu.pipeline_mode<synchronous>, transform_indices = @transform_1, window_bounds = array<i64: 1152, 128>}, {pipeline_mode = #tpu.pipeline_mode<synchronous>, transform_indices = @transform_2, window_bounds = array<i64: 1, 128>}, {pipeline_mode = #tpu.pipeline_mode<synchronous>, transform_indices = @transform_3, window_bounds = array<i64: 1, 128>}, {pipeline_mode = #tpu.pipeline_mode<synchronous>, transform_indices = @transform_4, window_bounds = array<i64: 1152, 128>}, {pipeline_mode = #tpu.pipeline_mode<synchronous>, transform_indices = @transform_5, window_bounds = array<i64: 1, 128>}, {pipeline_mode = #tpu.pipeline_mode<synchronous>, transform_indices = @transform_6, window_bounds = array<i64: 1, 128>}, {transform_indices = @transform_7, window_bounds = array<i64: 1, 16, 16, 128>}]} {
    %c0 = arith.constant 0 : index
    %c0_0 = arith.constant 0 : index
    %c0_1 = arith.constant 0 : index
    %c0_2 = arith.constant 0 : index
    %0 = vector.load %arg1[%c0, %c0_0, %c0_1, %c0_2] : memref<1x16x16x128xf32, #tpu.memory_space<vmem>>, vector<1x16x16x128xf32>
    %1 = vector.shape_cast %0 : vector<1x16x16x128xf32> to vector<16x16x128xf32>
    %2 = tpu.iota {dimensions = array<i32: 1>} : vector<1x16x128xi32>
    %c0_i32 = arith.constant 0 : i32
    %3 = vector.broadcast %c0_i32 : i32 to vector<1x16x128xi32>
    %4 = arith.cmpi eq, %2, %3 : vector<1x16x128xi32>
    %c15_i32 = arith.constant 15 : i32
    %5 = vector.broadcast %c15_i32 : i32 to vector<1x16x128xi32>
    %6 = arith.cmpi eq, %2, %5 : vector<1x16x128xi32>
    %7 = vector.extract_strided_slice %1 {offsets = [1, 0, 0], sizes = [1, 16, 128], strides = [1, 1, 1]} : vector<16x16x128xf32> to vector<1x16x128xf32>
    %8 = vector.extract_strided_slice %1 {offsets = [14, 0, 0], sizes = [1, 16, 128], strides = [1, 1, 1]} : vector<16x16x128xf32> to vector<1x16x128xf32>
    %9 = tpu.concatenate %7, %1, %8 in 0 : vector<1x16x128xf32>, vector<16x16x128xf32>, vector<1x16x128xf32> -> vector<18x16x128xf32>
    %c1_i32 = arith.constant 1 : i32
    %10 = tpu.dynamic_rotate %9 by %c1_i32 dim 1 : vector<18x16x128xf32>, i32 -> vector<18x16x128xf32>
    %c15_i32_3 = arith.constant 15 : i32
    %11 = tpu.dynamic_rotate %9 by %c15_i32_3 dim 1 : vector<18x16x128xf32>, i32 -> vector<18x16x128xf32>
    %12 = vector.shape_cast %4 : vector<1x16x128xi1> to vector<1x16x128xi1>
    %13 = vector.broadcast %12 : vector<1x16x128xi1> to vector<18x16x128xi1>
    %14 = arith.select %13, %11, %10 : vector<18x16x128xi1>, vector<18x16x128xf32>
    %15 = arith.truncf %14 : vector<18x16x128xf32> to vector<18x16x128xbf16>
    %16 = vector.shape_cast %6 : vector<1x16x128xi1> to vector<1x16x128xi1>
    %17 = vector.broadcast %16 : vector<1x16x128xi1> to vector<18x16x128xi1>
    %18 = arith.select %17, %10, %11 : vector<18x16x128xi1>, vector<18x16x128xf32>
    %19 = arith.truncf %18 : vector<18x16x128xf32> to vector<18x16x128xbf16>
    %20 = arith.truncf %9 : vector<18x16x128xf32> to vector<18x16x128xbf16>
    %21 = tpu.concatenate %15, %20, %19 in 2 : vector<18x16x128xbf16>, vector<18x16x128xbf16>, vector<18x16x128xbf16> -> vector<18x16x384xbf16>
    %22 = vector.shape_cast %21 : vector<18x16x384xbf16> to vector<288x384xbf16>
    %23 = vector.extract_strided_slice %22 {offsets = [0, 0], sizes = [256, 384], strides = [1, 1]} : vector<288x384xbf16> to vector<256x384xbf16>
    %c0_4 = arith.constant 0 : index
    %c0_5 = arith.constant 0 : index
    %24 = vector.load %arg2[%c0_4, %c0_5] : memref<1152x128xbf16, #tpu.memory_space<vmem>>, vector<384x128xbf16>
    %cst = arith.constant dense<0.000000e+00> : vector<256x128xf32>
    %25 = tpu.matmul %23, %24, %cst {dimension_numbers = #tpu.dot_dimension_numbers<[1], [0], [0], [1], [0, 0, 1, 1], [], []>} : vector<256x384xbf16>, vector<384x128xbf16>, vector<256x128xf32> -> vector<256x128xf32>
    %26 = vector.extract_strided_slice %22 {offsets = [16, 0], sizes = [256, 384], strides = [1, 1]} : vector<288x384xbf16> to vector<256x384xbf16>
    %c384 = arith.constant 384 : index
    %c0_6 = arith.constant 0 : index
    %27 = vector.load %arg2[%c384, %c0_6] : memref<1152x128xbf16, #tpu.memory_space<vmem>>, vector<384x128xbf16>
    %cst_7 = arith.constant dense<0.000000e+00> : vector<256x128xf32>
    %28 = tpu.matmul %26, %27, %cst_7 {dimension_numbers = #tpu.dot_dimension_numbers<[1], [0], [0], [1], [0, 0, 1, 1], [], []>} : vector<256x384xbf16>, vector<384x128xbf16>, vector<256x128xf32> -> vector<256x128xf32>
    %29 = arith.addf %25, %28 : vector<256x128xf32>
    %30 = vector.extract_strided_slice %22 {offsets = [32, 0], sizes = [256, 384], strides = [1, 1]} : vector<288x384xbf16> to vector<256x384xbf16>
    %c768 = arith.constant 768 : index
    %c0_8 = arith.constant 0 : index
    %31 = vector.load %arg2[%c768, %c0_8] : memref<1152x128xbf16, #tpu.memory_space<vmem>>, vector<384x128xbf16>
    %cst_9 = arith.constant dense<0.000000e+00> : vector<256x128xf32>
    %32 = tpu.matmul %30, %31, %cst_9 {dimension_numbers = #tpu.dot_dimension_numbers<[1], [0], [0], [1], [0, 0, 1, 1], [], []>} : vector<256x384xbf16>, vector<384x128xbf16>, vector<256x128xf32> -> vector<256x128xf32>
    %33 = arith.addf %29, %32 : vector<256x128xf32>
    %cst_10 = arith.constant dense<0.000000e+00> : vector<128xf32>
    %34 = vector.multi_reduction <add>, %33, %cst_10 [0] : vector<256x128xf32> to vector<128xf32>
    %35 = vector.shape_cast %34 : vector<128xf32> to vector<1x128xf32>
    %36 = arith.mulf %33, %33 : vector<256x128xf32>
    %cst_11 = arith.constant dense<0.000000e+00> : vector<128xf32>
    %37 = vector.multi_reduction <add>, %36, %cst_11 [0] : vector<256x128xf32> to vector<128xf32>
    %38 = vector.shape_cast %37 : vector<128xf32> to vector<1x128xf32>
    %cst_12 = arith.constant 3.906250e-03 : f32
    %39 = vector.broadcast %cst_12 : f32 to vector<1x128xf32>
    %40 = arith.mulf %35, %39 : vector<1x128xf32>
    %cst_13 = arith.constant 3.906250e-03 : f32
    %41 = vector.broadcast %cst_13 : f32 to vector<1x128xf32>
    %42 = arith.mulf %38, %41 : vector<1x128xf32>
    %43 = arith.mulf %40, %40 : vector<1x128xf32>
    %44 = arith.subf %42, %43 : vector<1x128xf32>
    %cst_14 = arith.constant 0.000000e+00 : f32
    %45 = vector.broadcast %cst_14 : f32 to vector<1x128xf32>
    %46 = arith.maximumf %44, %45 : vector<1x128xf32>
    %c0_15 = arith.constant 0 : index
    %c0_16 = arith.constant 0 : index
    %47 = vector.load %arg3[%c0_15, %c0_16] : memref<1x128xf32, #tpu.memory_space<vmem>>, vector<1x128xf32>
    %cst_17 = arith.constant 9.99999974E-6 : f32
    %48 = vector.broadcast %cst_17 : f32 to vector<1x128xf32>
    %49 = arith.addf %46, %48 : vector<1x128xf32>
    %50 = math.rsqrt %49 : vector<1x128xf32>
    %51 = arith.mulf %47, %50 : vector<1x128xf32>
    %c0_18 = arith.constant 0 : index
    %c0_19 = arith.constant 0 : index
    %52 = vector.load %arg4[%c0_18, %c0_19] : memref<1x128xf32, #tpu.memory_space<vmem>>, vector<1x128xf32>
    %53 = arith.mulf %40, %51 : vector<1x128xf32>
    %54 = arith.subf %52, %53 : vector<1x128xf32>
    %55 = vector.broadcast %51 : vector<1x128xf32> to vector<256x128xf32>
    %56 = arith.mulf %33, %55 : vector<256x128xf32>
    %57 = vector.broadcast %54 : vector<1x128xf32> to vector<256x128xf32>
    %58 = arith.addf %56, %57 : vector<256x128xf32>
    %cst_20 = arith.constant 0.000000e+00 : f32
    %59 = vector.broadcast %cst_20 : f32 to vector<256x128xf32>
    %60 = arith.maximumf %58, %59 : vector<256x128xf32>
    %61 = vector.shape_cast %60 : vector<256x128xf32> to vector<16x16x128xf32>
    %62 = vector.extract_strided_slice %61 {offsets = [1, 0, 0], sizes = [1, 16, 128], strides = [1, 1, 1]} : vector<16x16x128xf32> to vector<1x16x128xf32>
    %63 = vector.extract_strided_slice %61 {offsets = [14, 0, 0], sizes = [1, 16, 128], strides = [1, 1, 1]} : vector<16x16x128xf32> to vector<1x16x128xf32>
    %64 = tpu.concatenate %62, %61, %63 in 0 : vector<1x16x128xf32>, vector<16x16x128xf32>, vector<1x16x128xf32> -> vector<18x16x128xf32>
    %c1_i32_21 = arith.constant 1 : i32
    %65 = tpu.dynamic_rotate %64 by %c1_i32_21 dim 1 : vector<18x16x128xf32>, i32 -> vector<18x16x128xf32>
    %c15_i32_22 = arith.constant 15 : i32
    %66 = tpu.dynamic_rotate %64 by %c15_i32_22 dim 1 : vector<18x16x128xf32>, i32 -> vector<18x16x128xf32>
    %67 = vector.shape_cast %4 : vector<1x16x128xi1> to vector<1x16x128xi1>
    %68 = vector.broadcast %67 : vector<1x16x128xi1> to vector<18x16x128xi1>
    %69 = arith.select %68, %66, %65 : vector<18x16x128xi1>, vector<18x16x128xf32>
    %70 = arith.truncf %69 : vector<18x16x128xf32> to vector<18x16x128xbf16>
    %71 = vector.shape_cast %6 : vector<1x16x128xi1> to vector<1x16x128xi1>
    %72 = vector.broadcast %71 : vector<1x16x128xi1> to vector<18x16x128xi1>
    %73 = arith.select %72, %65, %66 : vector<18x16x128xi1>, vector<18x16x128xf32>
    %74 = arith.truncf %73 : vector<18x16x128xf32> to vector<18x16x128xbf16>
    %75 = arith.truncf %64 : vector<18x16x128xf32> to vector<18x16x128xbf16>
    %76 = tpu.concatenate %70, %75, %74 in 2 : vector<18x16x128xbf16>, vector<18x16x128xbf16>, vector<18x16x128xbf16> -> vector<18x16x384xbf16>
    %77 = vector.shape_cast %76 : vector<18x16x384xbf16> to vector<288x384xbf16>
    %78 = vector.extract_strided_slice %77 {offsets = [0, 0], sizes = [256, 384], strides = [1, 1]} : vector<288x384xbf16> to vector<256x384xbf16>
    %c0_23 = arith.constant 0 : index
    %c0_24 = arith.constant 0 : index
    %79 = vector.load %arg5[%c0_23, %c0_24] : memref<1152x128xbf16, #tpu.memory_space<vmem>>, vector<384x128xbf16>
    %cst_25 = arith.constant dense<0.000000e+00> : vector<256x128xf32>
    %80 = tpu.matmul %78, %79, %cst_25 {dimension_numbers = #tpu.dot_dimension_numbers<[1], [0], [0], [1], [0, 0, 1, 1], [], []>} : vector<256x384xbf16>, vector<384x128xbf16>, vector<256x128xf32> -> vector<256x128xf32>
    %81 = vector.extract_strided_slice %77 {offsets = [16, 0], sizes = [256, 384], strides = [1, 1]} : vector<288x384xbf16> to vector<256x384xbf16>
    %c384_26 = arith.constant 384 : index
    %c0_27 = arith.constant 0 : index
    %82 = vector.load %arg5[%c384_26, %c0_27] : memref<1152x128xbf16, #tpu.memory_space<vmem>>, vector<384x128xbf16>
    %cst_28 = arith.constant dense<0.000000e+00> : vector<256x128xf32>
    %83 = tpu.matmul %81, %82, %cst_28 {dimension_numbers = #tpu.dot_dimension_numbers<[1], [0], [0], [1], [0, 0, 1, 1], [], []>} : vector<256x384xbf16>, vector<384x128xbf16>, vector<256x128xf32> -> vector<256x128xf32>
    %84 = arith.addf %80, %83 : vector<256x128xf32>
    %85 = vector.extract_strided_slice %77 {offsets = [32, 0], sizes = [256, 384], strides = [1, 1]} : vector<288x384xbf16> to vector<256x384xbf16>
    %c768_29 = arith.constant 768 : index
    %c0_30 = arith.constant 0 : index
    %86 = vector.load %arg5[%c768_29, %c0_30] : memref<1152x128xbf16, #tpu.memory_space<vmem>>, vector<384x128xbf16>
    %cst_31 = arith.constant dense<0.000000e+00> : vector<256x128xf32>
    %87 = tpu.matmul %85, %86, %cst_31 {dimension_numbers = #tpu.dot_dimension_numbers<[1], [0], [0], [1], [0, 0, 1, 1], [], []>} : vector<256x384xbf16>, vector<384x128xbf16>, vector<256x128xf32> -> vector<256x128xf32>
    %88 = arith.addf %84, %87 : vector<256x128xf32>
    %cst_32 = arith.constant dense<0.000000e+00> : vector<128xf32>
    %89 = vector.multi_reduction <add>, %88, %cst_32 [0] : vector<256x128xf32> to vector<128xf32>
    %90 = vector.shape_cast %89 : vector<128xf32> to vector<1x128xf32>
    %91 = arith.mulf %88, %88 : vector<256x128xf32>
    %cst_33 = arith.constant dense<0.000000e+00> : vector<128xf32>
    %92 = vector.multi_reduction <add>, %91, %cst_33 [0] : vector<256x128xf32> to vector<128xf32>
    %93 = vector.shape_cast %92 : vector<128xf32> to vector<1x128xf32>
    %cst_34 = arith.constant 3.906250e-03 : f32
    %94 = vector.broadcast %cst_34 : f32 to vector<1x128xf32>
    %95 = arith.mulf %90, %94 : vector<1x128xf32>
    %cst_35 = arith.constant 3.906250e-03 : f32
    %96 = vector.broadcast %cst_35 : f32 to vector<1x128xf32>
    %97 = arith.mulf %93, %96 : vector<1x128xf32>
    %98 = arith.mulf %95, %95 : vector<1x128xf32>
    %99 = arith.subf %97, %98 : vector<1x128xf32>
    %cst_36 = arith.constant 0.000000e+00 : f32
    %100 = vector.broadcast %cst_36 : f32 to vector<1x128xf32>
    %101 = arith.maximumf %99, %100 : vector<1x128xf32>
    %c0_37 = arith.constant 0 : index
    %c0_38 = arith.constant 0 : index
    %102 = vector.load %arg6[%c0_37, %c0_38] : memref<1x128xf32, #tpu.memory_space<vmem>>, vector<1x128xf32>
    %cst_39 = arith.constant 9.99999974E-6 : f32
    %103 = vector.broadcast %cst_39 : f32 to vector<1x128xf32>
    %104 = arith.addf %101, %103 : vector<1x128xf32>
    %105 = math.rsqrt %104 : vector<1x128xf32>
    %106 = arith.mulf %102, %105 : vector<1x128xf32>
    %c0_40 = arith.constant 0 : index
    %c0_41 = arith.constant 0 : index
    %107 = vector.load %arg7[%c0_40, %c0_41] : memref<1x128xf32, #tpu.memory_space<vmem>>, vector<1x128xf32>
    %108 = arith.mulf %95, %106 : vector<1x128xf32>
    %109 = arith.subf %107, %108 : vector<1x128xf32>
    %110 = vector.broadcast %106 : vector<1x128xf32> to vector<256x128xf32>
    %111 = arith.mulf %88, %110 : vector<256x128xf32>
    %112 = vector.broadcast %109 : vector<1x128xf32> to vector<256x128xf32>
    %113 = arith.addf %111, %112 : vector<256x128xf32>
    %114 = vector.shape_cast %1 : vector<16x16x128xf32> to vector<256x128xf32>
    %115 = arith.addf %113, %114 : vector<256x128xf32>
    %116 = vector.shape_cast %115 : vector<256x128xf32> to vector<16x16x128xf32>
    %c0_42 = arith.constant 0 : index
    %c0_43 = arith.constant 0 : index
    %c0_44 = arith.constant 0 : index
    %c0_45 = arith.constant 0 : index
    %117 = vector.load %arg8[%c0_42, %c0_43, %c0_44, %c0_45] : memref<1x16x16x128xf32, #tpu.memory_space<vmem>>, vector<1x16x16x128xf32>
    %118 = vector.shape_cast %117 : vector<1x16x16x128xf32> to vector<16x16x128xf32>
    %119 = vector.shape_cast %116 : vector<16x16x128xf32> to vector<1x16x16x128xf32>
    tpu.vector_store %arg8[%c0_42, %c0_43, %c0_44, %c0_45], %119 {strides = array<i32>} : memref<1x16x16x128xf32, #tpu.memory_space<vmem>>, vector<1x16x16x128xf32>,
    return
  }
  func.func @transform_0(%arg0: i32) -> (i32, i32, i32, i32) {
    %c0_i32 = arith.constant 0 : i32
    %c0_i32_0 = arith.constant 0 : i32
    %c0_i32_1 = arith.constant 0 : i32
    %c0_i32_2 = arith.constant 0 : i32
    return %arg0, %c0_i32, %c0_i32_0, %c0_i32_1 : i32, i32, i32, i32
  }
  func.func @transform_1(%arg0: i32) -> (i32, i32) {
    %c0_i32 = arith.constant 0 : i32
    %c0_i32_0 = arith.constant 0 : i32
    %c0_i32_1 = arith.constant 0 : i32
    return %c0_i32, %c0_i32_0 : i32, i32
  }
  func.func @transform_2(%arg0: i32) -> (i32, i32) {
    %c0_i32 = arith.constant 0 : i32
    %c0_i32_0 = arith.constant 0 : i32
    %c0_i32_1 = arith.constant 0 : i32
    return %c0_i32, %c0_i32_0 : i32, i32
  }
  func.func @transform_3(%arg0: i32) -> (i32, i32) {
    %c0_i32 = arith.constant 0 : i32
    %c0_i32_0 = arith.constant 0 : i32
    %c0_i32_1 = arith.constant 0 : i32
    return %c0_i32, %c0_i32_0 : i32, i32
  }
  func.func @transform_4(%arg0: i32) -> (i32, i32) {
    %c0_i32 = arith.constant 0 : i32
    %c0_i32_0 = arith.constant 0 : i32
    %c0_i32_1 = arith.constant 0 : i32
    return %c0_i32, %c0_i32_0 : i32, i32
  }
  func.func @transform_5(%arg0: i32) -> (i32, i32) {
    %c0_i32 = arith.constant 0 : i32
    %c0_i32_0 = arith.constant 0 : i32
    %c0_i32_1 = arith.constant 0 : i32
    return %c0_i32, %c0_i32_0 : i32, i32
  }
  func.func @transform_6(%arg0: i32) -> (i32, i32) {
    %c0_i32 = arith.constant 0 : i32
    %c0_i32_0 = arith.constant 0 : i32
    %c0_i32_1 = arith.constant 0 : i32
    return %c0_i32, %c0_i32_0 : i32, i32
  }
  func.func @transform_7(%arg0: i32) -> (i32, i32, i32, i32) {
    %c0_i32 = arith.constant 0 : i32
    %c0_i32_0 = arith.constant 0 : i32
    %c0_i32_1 = arith.constant 0 : i32
    %c0_i32_2 = arith.constant 0 : i32
    return %arg0, %c0_i32, %c0_i32_0, %c0_i32_1 : i32, i32, i32, i32
  }
}

</mosaic_0001>

<llo_original>
// kernel: tpu_custom_call.1
$region0: #{tpu_custom_call.1}
  #allocation0 [shape = 'u32[]', space=smem, size = 0x4, offset = 0x4, fixed_abs, tag = 'smem constant byte address 0x4 - core index']
  #allocation1 [shape = 'u32[72,128]{1,0:T(1,128)}', space=vmem, size = 0x9000, scoped, tag = 'internal scratch']
  %s0 = inlined_call_operand.hbm [shape: f32[2,16,16,128], index: 0, kind: input, shape index: {}]
  %s1 = inlined_call_operand.hbm [shape: bf16[1152,128], index: 1, kind: input, shape index: {}]
  %s2 = inlined_call_operand.vmem [shape: f32[1,128], index: 2, kind: input, shape index: {}]
  %s3 = inlined_call_operand.vmem [shape: f32[1,128], index: 3, kind: input, shape index: {}]
  %s4 = inlined_call_operand.hbm [shape: bf16[1152,128], index: 4, kind: input, shape index: {}]
  %s5 = inlined_call_operand.vmem [shape: f32[1,128], index: 5, kind: input, shape index: {}]
  %s6 = inlined_call_operand.vmem [shape: f32[1,128], index: 6, kind: input, shape index: {}]
  %s7 = inlined_call_operand.hbm [shape: f32[2,16,16,128], index: 7, kind: output, shape index: {}]
  %s8 = sld [smem:[#allocation0]]
  $region73: #{tpu_custom_call.1} parent=0
    _
  %s10 = ssub.s32 1, %s8
  %s11 = scalar_select 0, %s10, %s8
  $region1: #{tpu_custom_call.1} parent=0
    #allocation2 [shape = 'u8[262144]{0}', space=vmem, size = 0x40000, scoped, tag = 'input window, operand 0']
    #allocation3 [shape = 's32[2]{0}', space=sflag, size = 0x8, scoped, tag = 'scoped memory for tpu_custom_call.1']
    #allocation4 [shape = 's32[2]{0}', space=sflag, size = 0x8, scoped, tag = 'scoped memory for tpu_custom_call.1']
    #allocation5 [shape = 'u8[294912]{0}', space=vmem, size = 0x48000, scoped, tag = 'input window, operand 1, single buffered']
    #allocation6 [shape = 's32[1]{0}', space=sflag, size = 0x4, scoped, tag = 'scoped memory for tpu_custom_call.1']
    #allocation7 [shape = 'u8[294912]{0}', space=vmem, size = 0x48000, scoped, tag = 'input window, operand 4, single buffered']
    #allocation8 [shape = 'u8[262144]{0}', space=vmem, size = 0x40000, scoped, tag = 'output window, operand 0']
    %12 = vsyncpa [#allocation3], 0
    %s13 = scalar_lea.sflag [#allocation3], 1
    %14 = vsyncpa %s13, 0
    %15 = vsyncpa [#allocation6], 0
    %16 = vsyncpa [#allocation4], 0
    %s17 = scalar_lea.sflag [#allocation4], 1
    %18 = vsyncpa %s17, 0
    loop: start=0, step=1, limit=4
    $region2: #{tpu_custom_call.1} parent=1 // loop_pre_header
      _
    $region3: #{tpu_custom_call.1} parent=1 // loop_header
      %s20 = sphi 0, %s24
      %p21 = scmp.ge.s32.totalorder %s20, 4
      %s30 = sphi 0, %s32
      %s33 = sphi 0, %s30
      %s34 = sphi 0, %s33
      %s50 = sphi 0, %s34
      %s54 = sphi 0, %s54
      %s56 = sphi 0, %s54
      %s57 = sphi 0, %s56
      %s71 = sphi 0, %s57
      %s75 = sphi 0, %s75
      %s77 = sphi 0, %s75
      %s78 = sphi 0, %s77
      %s92 = sphi 0, %s78
      %s96 = sphi 0, %s96
      %s98 = sphi 0, %s96
      %s99 = sphi 0, %s98
      %s113 = sphi 0, %s99
      %s117 = sphi 0, %s117
      %s119 = sphi 0, %s117
      %s120 = sphi 0, %s119
      %s134 = sphi 0, %s120
      %s138 = sphi 0, %s138
      %s140 = sphi 0, %s138
      %s141 = sphi 0, %s140
      %s155 = sphi 0, %s141
      %s159 = sphi 0, %s159
      %s161 = sphi 0, %s159
      %s162 = sphi 0, %s161
      %s176 = sphi 0, %s162
      %s182 = sphi 0, %s184
      %s185 = sphi 0, %s182
      %s186 = sphi 0, %s185
      %s202 = sphi 0, %s186
    $region4: #{tpu_custom_call.1} parent=1 // loop_header_branch
      %23 = sbr.rel (%p21) target = $region8
    $region5: #{tpu_custom_call.1} parent=1 // loop_body
      %s25 = ssub.s32 %s20, 1
      %s26 = ssub.s32 %s20, 2
      %s27 = sadd.s32 %s20, 1
      %s28 = ssub.s32 %s20, %s27
      %p29 = scmp.eq.s32.totalorder %s28, 0
      %s31 = sadd.s32 %s30, 1
      %s32 = scalar_select %p29, %s30, %s31
      %p35 = pneg %p29
      %p36 = scmp.eq.s32.totalorder %s20, 1
      %p37 = por %p35, %p36
      %p38 = scmp.ne.s32.totalorder %s30, %s33
      %p39 = scmp.eq.s32.totalorder %s20, 0
      %p40 = por %p38, %p39
      %p41 = scmp.ne.s32.totalorder %s30, %s33
      %p42 = scmp.eq.s32.totalorder %s25, 1
      %p43 = por %p41, %p42
      %p44 = scmp.ne.s32.totalorder %s33, %s34
      %p45 = scmp.eq.s32.totalorder %s25, 0
      %p46 = por %p44, %p45
      %p47 = scmp.ne.s32.totalorder %s33, %s34
      %p48 = scmp.eq.s32.totalorder %s26, 1
      %p49 = por %p47, %p48
      %p51 = scmp.ne.s32.totalorder %s34, %s50
      %p52 = scmp.eq.s32.totalorder %s26, 0
      %p53 = por %p51, %p52
      %s55 = sadd.s32 %s54, 1
      %p58 = scmp.eq.s32.totalorder %s20, 1
      %p59 = scmp.ne.s32.totalorder %s54, %s56
      %p60 = scmp.eq.s32.totalorder %s20, 0
      %p61 = por %p59, %p60
      %p62 = scmp.ne.s32.totalorder %s54, %s56
      %p63 = scmp.eq.s32.totalorder %s25, 1
      %p64 = por %p62, %p63
      %p65 = scmp.ne.s32.totalorder %s56, %s57
      %p66 = scmp.eq.s32.totalorder %s25, 0
      %p67 = por %p65, %p66
      %p68 = scmp.ne.s32.totalorder %s56, %s57
      %p69 = scmp.eq.s32.totalorder %s26, 1
      %p70 = por %p68, %p69
      %p72 = scmp.ne.s32.totalorder %s57, %s71
      %p73 = scmp.eq.s32.totalorder %s26, 0
      %p74 = por %p72, %p73
      %s76 = sadd.s32 %s75, 1
      %p79 = scmp.eq.s32.totalorder %s20, 1
      %p80 = scmp.ne.s32.totalorder %s75, %s77
      %p81 = scmp.eq.s32.totalorder %s20, 0
      %p82 = por %p80, %p81
      %p83 = scmp.ne.s32.totalorder %s75, %s77
      %p84 = scmp.eq.s32.totalorder %s25, 1
      %p85 = por %p83, %p84
      %p86 = scmp.ne.s32.totalorder %s77, %s78
      %p87 = scmp.eq.s32.totalorder %s25, 0
      %p88 = por %p86, %p87
      %p89 = scmp.ne.s32.totalorder %s77, %s78
      %p90 = scmp.eq.s32.totalorder %s26, 1
      %p91 = por %p89, %p90
      %p93 = scmp.ne.s32.totalorder %s78, %s92
      %p94 = scmp.eq.s32.totalorder %s26, 0
      %p95 = por %p93, %p94
      %s97 = sadd.s32 %s96, 1
      %p100 = scmp.eq.s32.totalorder %s20, 1
      %p101 = scmp.ne.s32.totalorder %s96, %s98
      %p102 = scmp.eq.s32.totalorder %s20, 0
      %p103 = por %p101, %p102
      %p104 = scmp.ne.s32.totalorder %s96, %s98
      %p105 = scmp.eq.s32.totalorder %s25, 1
      %p106 = por %p104, %p105
      %p107 = scmp.ne.s32.totalorder %s98, %s99
      %p108 = scmp.eq.s32.totalorder %s25, 0
      %p109 = por %p107, %p108
      %p110 = scmp.ne.s32.totalorder %s98, %s99
      %p111 = scmp.eq.s32.totalorder %s26, 1
      %p112 = por %p110, %p111
      %p114 = scmp.ne.s32.totalorder %s99, %s113
      %p115 = scmp.eq.s32.totalorder %s26, 0
      %p116 = por %p114, %p115
      %s118 = sadd.s32 %s117, 1
      %p121 = scmp.eq.s32.totalorder %s20, 1
      %p122 = scmp.ne.s32.totalorder %s117, %s119
      %p123 = scmp.eq.s32.totalorder %s20, 0
      %p124 = por %p122, %p123
      %p125 = scmp.ne.s32.totalorder %s117, %s119
      %p126 = scmp.eq.s32.totalorder %s25, 1
      %p127 = por %p125, %p126
      %p128 = scmp.ne.s32.totalorder %s119, %s120
      %p129 = scmp.eq.s32.totalorder %s25, 0
      %p130 = por %p128, %p129
      %p131 = scmp.ne.s32.totalorder %s119, %s120
      %p132 = scmp.eq.s32.totalorder %s26, 1
      %p133 = por %p131, %p132
      %p135 = scmp.ne.s32.totalorder %s120, %s134
      %p136 = scmp.eq.s32.totalorder %s26, 0
      %p137 = por %p135, %p136
      %s139 = sadd.s32 %s138, 1
      %p142 = scmp.eq.s32.totalorder %s20, 1
      %p143 = scmp.ne.s32.totalorder %s138, %s140
      %p144 = scmp.eq.s32.totalorder %s20, 0
      %p145 = por %p143, %p144
      %p146 = scmp.ne.s32.totalorder %s138, %s140
      %p147 = scmp.eq.s32.totalorder %s25, 1
      %p148 = por %p146, %p147
      %p149 = scmp.ne.s32.totalorder %s140, %s141
      %p150 = scmp.eq.s32.totalorder %s25, 0
      %p151 = por %p149, %p150
      %p152 = scmp.ne.s32.totalorder %s140, %s141
      %p153 = scmp.eq.s32.totalorder %s26, 1
      %p154 = por %p152, %p153
      %p156 = scmp.ne.s32.totalorder %s141, %s155
      %p157 = scmp.eq.s32.totalorder %s26, 0
      %p158 = por %p156, %p157
      %s160 = sadd.s32 %s159, 1
      %p163 = scmp.eq.s32.totalorder %s20, 1
      %p164 = scmp.ne.s32.totalorder %s159, %s161
      %p165 = scmp.eq.s32.totalorder %s20, 0
      %p166 = por %p164, %p165
      %p167 = scmp.ne.s32.totalorder %s159, %s161
      %p168 = scmp.eq.s32.totalorder %s25, 1
      %p169 = por %p167, %p168
      %p170 = scmp.ne.s32.totalorder %s161, %s162
      %p171 = scmp.eq.s32.totalorder %s25, 0
      %p172 = por %p170, %p171
      %p173 = scmp.ne.s32.totalorder %s161, %s162
      %p174 = scmp.eq.s32.totalorder %s26, 1
      %p175 = por %p173, %p174
      %p177 = scmp.ne.s32.totalorder %s162, %s176
      %p178 = scmp.eq.s32.totalorder %s26, 0
      %p179 = por %p177, %p178
      %s180 = ssub.s32 %s20, %s27
      %p181 = scmp.eq.s32.totalorder %s180, 0
      %s183 = sadd.s32 %s182, 1
      %s184 = scalar_select %p181, %s182, %s183
      %p187 = pneg %p181
      %p188 = scmp.eq.s32.totalorder %s20, 1
      %p189 = por %p187, %p188
      %p190 = scmp.ne.s32.totalorder %s182, %s185
      %p191 = scmp.eq.s32.totalorder %s20, 0
      %p192 = por %p190, %p191
      %p193 = scmp.ne.s32.totalorder %s182, %s185
      %p194 = scmp.eq.s32.totalorder %s25, 1
      %p195 = por %p193, %p194
      %p196 = scmp.ne.s32.totalorder %s185, %s186
      %p197 = scmp.eq.s32.totalorder %s25, 0
      %p198 = por %p196, %p197
      %p199 = scmp.ne.s32.totalorder %s185, %s186
      %p200 = scmp.eq.s32.totalorder %s26, 1
      %p201 = por %p199, %p200
      %p203 = scmp.ne.s32.totalorder %s186, %s202
      %p204 = scmp.eq.s32.totalorder %s26, 0
      %p205 = por %p203, %p204
      %p206 = scmp.le.s32.totalorder 1, %s20
      %p207 = scmp.lt.s32.totalorder %s20, 3
      %p208 = pnand %p206, %p207
      %p209 = pneg %p208
      // Predicated region
      $region9: #{tpu_custom_call.1} parent=5 // pred_check
        _
      $region10: #{tpu_custom_call.1} parent=5 // pred_check_branch
        %211 = sbr.rel (%p208) target = $region12
      $region11: #{tpu_custom_call.1} parent=5 // pred_region
        %s212 = ssub.s32 %s20, 1
        // Predicated region
        $region13: #{tpu_custom_call.1} parent=11 // pred_check
          %p213 = pneg %p67
        $region14: #{tpu_custom_call.1} parent=11 // pred_check_branch
          %215 = sbr.rel (%p213) target = $region16
        $region15: #{tpu_custom_call.1} parent=11 // pred_region
          %217 = vsyncadd [#allocation6], 0
          %s218 = sshll.u32 %s1, 4
          %s219 = int_to_ptr.hbm [resolvable:$true] %s218
          %s220 = sshll.u32 [#allocation5], 4
          %s221 = int_to_ptr.vmem [resolvable:$true] %s220
          %226 = dma.hbm_to_vmem [thread:$0]  %s219, 9216, %s221, [#allocation6], 64, 64, 4
        $region16: #{tpu_custom_call.1} parent=11 // pred_fallthru
          _
        // Predicated region
        $region17: #{tpu_custom_call.1} parent=11 // pred_check
          %p227 = pneg %p88
        $region18: #{tpu_custom_call.1} parent=11 // pred_check_branch
          %229 = sbr.rel (%p227) target = $region20
        $region19: #{tpu_custom_call.1} parent=11 // pred_region
          _
        $region20: #{tpu_custom_call.1} parent=11 // pred_fallthru
          _
        // Predicated region
        $region21: #{tpu_custom_call.1} parent=11 // pred_check
          %p230 = pneg %p109
        $region22: #{tpu_custom_call.1} parent=11 // pred_check_branch
          %232 = sbr.rel (%p230) target = $region24
        $region23: #{tpu_custom_call.1} parent=11 // pred_region
          _
        $region24: #{tpu_custom_call.1} parent=11 // pred_fallthru
          _
        // Predicated region
        $region25: #{tpu_custom_call.1} parent=11 // pred_check
          %p233 = pneg %p130
        $region26: #{tpu_custom_call.1} parent=11 // pred_check_branch
          %235 = sbr.rel (%p233) target = $region28
        $region27: #{tpu_custom_call.1} parent=11 // pred_region
          %237 = vsyncadd [#allocation6], 0
          %s238 = sshll.u32 %s4, 4
          %s239 = int_to_ptr.hbm [resolvable:$true] %s238
          %s240 = sshll.u32 [#allocation7], 4
          %s241 = int_to_ptr.vmem [resolvable:$true] %s240
          %246 = dma.hbm_to_vmem [thread:$0]  %s239, 9216, %s241, [#allocation6], 64, 64, 4
        $region28: #{tpu_custom_call.1} parent=11 // pred_fallthru
          _
        // Predicated region
        $region29: #{tpu_custom_call.1} parent=11 // pred_check
          %p247 = pneg %p151
        $region30: #{tpu_custom_call.1} parent=11 // pred_check_branch
          %249 = sbr.rel (%p247) target = $region32
        $region31: #{tpu_custom_call.1} parent=11 // pred_region
          _
        $region32: #{tpu_custom_call.1} parent=11 // pred_fallthru
          _
        // Predicated region
        $region33: #{tpu_custom_call.1} parent=11 // pred_check
          %p250 = pneg %p172
        $region34: #{tpu_custom_call.1} parent=11 // pred_check_branch
          %252 = sbr.rel (%p250) target = $region36
        $region35: #{tpu_custom_call.1} parent=11 // pred_region
          _
        $region36: #{tpu_custom_call.1} parent=11 // pred_fallthru
          _
      $region12: #{tpu_custom_call.1} parent=5 // pred_fallthru
        _
      %p253 = scmp.lt.s32.totalorder %s20, 2
      // Predicated region
      $region37: #{tpu_custom_call.1} parent=5 // pred_check
        %p254 = pneg %p253
      $region38: #{tpu_custom_call.1} parent=5 // pred_check_branch
        %256 = sbr.rel (%p254) target = $region40
      $region39: #{tpu_custom_call.1} parent=5 // pred_region
        // Predicated region
        $region41: #{tpu_custom_call.1} parent=39 // pred_check
          %p257 = pneg %p40
        $region42: #{tpu_custom_call.1} parent=39 // pred_check_branch
          %259 = sbr.rel (%p257) target = $region44
        $region43: #{tpu_custom_call.1} parent=39 // pred_region
          %s260 = sand.u32 %s30, 1
          %s261 = scalar_lea.sflag [#allocation3], %s260
          %s262 = sand.u32 %s30, 1
          %s263 = smul.addr %s262, 256
          %s264 = scalar_lea.vmem [#allocation2], %s263
          %266 = vsyncadd %s261, 0
          %s267 = smul.addr %s20, 32
          %s268 = smul.addr %s267, 8
          %s269 = scalar_lea.hbm %s0, %s268
          %s270 = sshll.u32 %s269, 4
          %s271 = int_to_ptr.hbm [resolvable:$true] %s270
          %s272 = sshll.u32 %s264, 4
          %s273 = int_to_ptr.vmem [resolvable:$true] %s272
          %278 = dma.hbm_to_vmem [thread:$0]  %s271, 4096, %s273, %s261, 128, 128, 8
        $region44: #{tpu_custom_call.1} parent=39 // pred_fallthru
          _
      $region40: #{tpu_custom_call.1} parent=5 // pred_fallthru
        _
      %p279 = scmp.le.s32.totalorder 1, %s20
      %p280 = scmp.lt.s32.totalorder %s20, 3
      %p281 = pnand %p279, %p280
      %p282 = pneg %p281
      // Predicated region
      $region45: #{tpu_custom_call.1} parent=5 // pred_check
        _
      $region46: #{tpu_custom_call.1} parent=5 // pred_check_branch
        %284 = sbr.rel (%p281) target = $region48
      $region47: #{tpu_custom_call.1} parent=5 // pred_region
        %s285 = ssub.s32 %s20, 1
        %s286 = sand.u32 %s33, 1
        %s287 = scalar_lea.sflag [#allocation3], %s286
        %s288 = sand.u32 %s33, 1
        %s289 = smul.addr %s288, 256
        %s290 = scalar_lea.vmem [#allocation2], %s289
        // Predicated region
        $region49: #{tpu_custom_call.1} parent=47 // pred_check
          %p291 = pneg %p46
        $region50: #{tpu_custom_call.1} parent=47 // pred_check_branch
          %293 = sbr.rel (%p291) target = $region52
        $region51: #{tpu_custom_call.1} parent=47 // pred_region
          %295 = dma.done %s287, 4096
        $region52: #{tpu_custom_call.1} parent=47 // pred_fallthru
          _
        // Predicated region
        $region53: #{tpu_custom_call.1} parent=47 // pred_check
          %p296 = pneg %p67
        $region54: #{tpu_custom_call.1} parent=47 // pred_check_branch
          %298 = sbr.rel (%p296) target = $region56
        $region55: #{tpu_custom_call.1} parent=47 // pred_region
          %300 = dma.done [#allocation6], 9216
        $region56: #{tpu_custom_call.1} parent=47 // pred_fallthru
          _
        // Predicated region
        $region57: #{tpu_custom_call.1} parent=47 // pred_check
          %p301 = pneg %p130
        $region58: #{tpu_custom_call.1} parent=47 // pred_check_branch
          %303 = sbr.rel (%p301) target = $region60
        $region59: #{tpu_custom_call.1} parent=47 // pred_region
          %305 = dma.done [#allocation6], 9216
        $region60: #{tpu_custom_call.1} parent=47 // pred_fallthru
          _
        %s306 = sand.u32 %s33, 1
        %s307 = scalar_lea.sflag [#allocation3], %s306
        %s308 = sand.u32 %s33, 1
        %s309 = smul.addr %s308, 256
        %s310 = scalar_lea.vmem [#allocation2], %s309
        %p311 = pneg %p46
        %p312 = pneg %p43
        %p313 = pneg %p67
        %p314 = pneg %p64
        %p315 = pneg %p88
        %p316 = pneg %p85
        %p317 = pneg %p109
        %p318 = pneg %p106
        %p319 = pneg %p130
        %p320 = pneg %p127
        %p321 = pneg %p151
        %p322 = pneg %p148
        %p323 = pneg %p172
        %p324 = pneg %p169
        %p325 = pneg %p198
        %p326 = pneg %p195
        %s327 = sand.u32 %s185, 1
        %s328 = scalar_lea.sflag [#allocation4], %s327
        %s329 = sand.u32 %s185, 1
        %s330 = smul.addr %s329, 256
        %s331 = scalar_lea.vmem [#allocation8], %s330
        %v332 = vld [vmem:[%s290] sm:$0xff]
        %v333 = vld [vmem:[%s290 + $0x8] sm:$0xff]
        %v334 = vld [vmem:[%s290 + $0x10] sm:$0xff]
        %v335 = vld [vmem:[%s290 + $0x18] sm:$0xff]
        %v336 = vld [vmem:[%s290 + $0x20] sm:$0xff]
        %v337 = vld [vmem:[%s290 + $0x28] sm:$0xff]
        %v338 = vld [vmem:[%s290 + $0x30] sm:$0xff]
        %v339 = vld [vmem:[%s290 + $0x38] sm:$0xff]
        %v340 = vld [vmem:[%s290 + $0x40] sm:$0xff]
        %v341 = vld [vmem:[%s290 + $0x48] sm:$0xff]
        %v342 = vld [vmem:[%s290 + $0x50] sm:$0xff]
        %v343 = vld [vmem:[%s290 + $0x58] sm:$0xff]
        %v344 = vld [vmem:[%s290 + $0x60] sm:$0xff]
        %v345 = vld [vmem:[%s290 + $0x68] sm:$0xff]
        %v346 = vld [vmem:[%s290 + $0x70] sm:$0xff]
        %v347 = vld [vmem:[%s290 + $0x78] sm:$0xff]
        %v348 = vld [vmem:[%s290 + $0x80] sm:$0xff]
        %v349 = vld [vmem:[%s290 + $0x88] sm:$0xff]
        %v350 = vld [vmem:[%s290 + $0x90] sm:$0xff]
        %v351 = vld [vmem:[%s290 + $0x98] sm:$0xff]
        %v352 = vld [vmem:[%s290 + $0xa0] sm:$0xff]
        %v353 = vld [vmem:[%s290 + $0xa8] sm:$0xff]
        %v354 = vld [vmem:[%s290 + $0xb0] sm:$0xff]
        %v355 = vld [vmem:[%s290 + $0xb8] sm:$0xff]
        %v356 = vld [vmem:[%s290 + $0xc0] sm:$0xff]
        %v357 = vld [vmem:[%s290 + $0xc8] sm:$0xff]
        %v358 = vld [vmem:[%s290 + $0xd0] sm:$0xff]
        %v359 = vld [vmem:[%s290 + $0xd8] sm:$0xff]
        %v360 = vld [vmem:[%s290 + $0xe0] sm:$0xff]
        %v361 = vld [vmem:[%s290 + $0xe8] sm:$0xff]
        %v362 = vld [vmem:[%s290 + $0xf0] sm:$0xff]
        %v363 = vld [vmem:[%s290 + $0xf8] sm:$0xff]
        %v364 = vlaneseq
        %v365 = vshrl.u32 %v364, 7
        %v366 = vadd.s32 %v365, 8
        %vm367 = vcmp.eq.s32.totalorder %v365, 0
        %vm368 = vcmp.eq.s32.totalorder %v366, 0
        %vm369 = vcmp.eq.s32.totalorder %v365, 15
        %vm370 = vcmp.eq.s32.totalorder %v366, 15
        %v371 = vrot.slane %v334, 7
        %v372 = vrot.slane %v332, 7
        %v373 = vrot.slane %v336, 7
        %v374 = vrot.slane %v338, 7
        %v375 = vrot.slane %v340, 7
        %v376 = vrot.slane %v342, 7
        %v377 = vrot.slane %v344, 7
        %v378 = vrot.slane %v346, 7
        %v379 = vrot.slane %v348, 7
        %v380 = vrot.slane %v350, 7
        %v381 = vrot.slane %v352, 7
        %v382 = vrot.slane %v354, 7
        %v383 = vrot.slane %v356, 7
        %v384 = vrot.slane %v358, 7
        %v385 = vrot.slane %v360, 7
        %v386 = vrot.slane %v362, 7
        %v387 = vrot.slane %v335, 7
        %v388 = vrot.slane %v333, 7
        %v389 = vrot.slane %v337, 7
        %v390 = vrot.slane %v339, 7
        %v391 = vrot.slane %v341, 7
        %v392 = vrot.slane %v343, 7
        %v393 = vrot.slane %v345, 7
        %v394 = vrot.slane %v347, 7
        %v395 = vrot.slane %v349, 7
        %v396 = vrot.slane %v351, 7
        %v397 = vrot.slane %v353, 7
        %v398 = vrot.slane %v355, 7
        %v399 = vrot.slane %v357, 7
        %v400 = vrot.slane %v359, 7
        %v401 = vrot.slane %v361, 7
        %v402 = vrot.slane %v363, 7
        %vm403 = vcmp.lt.s32.totalorder %v365, 1
        %v404 = vsel %vm403, %v371, %v387
        %v405 = vsel %vm403, %v372, %v388
        %v406 = vsel %vm403, %v373, %v389
        %v407 = vsel %vm403, %v374, %v390
        %v408 = vsel %vm403, %v375, %v391
        %v409 = vsel %vm403, %v376, %v392
        %v410 = vsel %vm403, %v377, %v393
        %v411 = vsel %vm403, %v378, %v394
        %v412 = vsel %vm403, %v379, %v395
        %v413 = vsel %vm403, %v380, %v396
        %v414 = vsel %vm403, %v381, %v397
        %v415 = vsel %vm403, %v382, %v398
        %v416 = vsel %vm403, %v383, %v399
        %v417 = vsel %vm403, %v384, %v400
        %v418 = vsel %vm403, %v385, %v401
        %v419 = vsel %vm403, %v386, %v402
        %v420 = vsel %vm403, %v387, %v371
        %v421 = vsel %vm403, %v388, %v372
        %v422 = vsel %vm403, %v389, %v373
        %v423 = vsel %vm403, %v390, %v374
        %v424 = vsel %vm403, %v391, %v375
        %v425 = vsel %vm403, %v392, %v376
        %v426 = vsel %vm403, %v393, %v377
        %v427 = vsel %vm403, %v394, %v378
        %v428 = vsel %vm403, %v395, %v379
        %v429 = vsel %vm403, %v396, %v380
        %v430 = vsel %vm403, %v397, %v381
        %v431 = vsel %vm403, %v398, %v382
        %v432 = vsel %vm403, %v399, %v383
        %v433 = vsel %vm403, %v400, %v384
        %v434 = vsel %vm403, %v401, %v385
        %v435 = vsel %vm403, %v402, %v386
        %v436 = vrot.slane %v334, 1
        %v437 = vrot.slane %v332, 1
        %v438 = vrot.slane %v336, 1
        %v439 = vrot.slane %v338, 1
        %v440 = vrot.slane %v340, 1
        %v441 = vrot.slane %v342, 1
        %v442 = vrot.slane %v344, 1
        %v443 = vrot.slane %v346, 1
        %v444 = vrot.slane %v348, 1
        %v445 = vrot.slane %v350, 1
        %v446 = vrot.slane %v352, 1
        %v447 = vrot.slane %v354, 1
        %v448 = vrot.slane %v356, 1
        %v449 = vrot.slane %v358, 1
        %v450 = vrot.slane %v360, 1
        %v451 = vrot.slane %v362, 1
        %v452 = vrot.slane %v335, 1
        %v453 = vrot.slane %v333, 1
        %v454 = vrot.slane %v337, 1
        %v455 = vrot.slane %v339, 1
        %v456 = vrot.slane %v341, 1
        %v457 = vrot.slane %v343, 1
        %v458 = vrot.slane %v345, 1
        %v459 = vrot.slane %v347, 1
        %v460 = vrot.slane %v349, 1
        %v461 = vrot.slane %v351, 1
        %v462 = vrot.slane %v353, 1
        %v463 = vrot.slane %v355, 1
        %v464 = vrot.slane %v357, 1
        %v465 = vrot.slane %v359, 1
        %v466 = vrot.slane %v361, 1
        %v467 = vrot.slane %v363, 1
        %vm468 = vcmp.lt.s32.totalorder %v365, 7
        %v469 = vsel %vm468, %v436, %v452
        %v470 = vsel %vm468, %v437, %v453
        %v471 = vsel %vm468, %v438, %v454
        %v472 = vsel %vm468, %v439, %v455
        %v473 = vsel %vm468, %v440, %v456
        %v474 = vsel %vm468, %v441, %v457
        %v475 = vsel %vm468, %v442, %v458
        %v476 = vsel %vm468, %v443, %v459
        %v477 = vsel %vm468, %v444, %v460
        %v478 = vsel %vm468, %v445, %v461
        %v479 = vsel %vm468, %v446, %v462
        %v480 = vsel %vm468, %v447, %v463
        %v481 = vsel %vm468, %v448, %v464
        %v482 = vsel %vm468, %v449, %v465
        %v483 = vsel %vm468, %v450, %v466
        %v484 = vsel %vm468, %v451, %v467
        %v485 = vsel %vm468, %v452, %v436
        %v486 = vsel %vm468, %v453, %v437
        %v487 = vsel %vm468, %v454, %v438
        %v488 = vsel %vm468, %v455, %v439
        %v489 = vsel %vm468, %v456, %v440
        %v490 = vsel %vm468, %v457, %v441
        %v491 = vsel %vm468, %v458, %v442
        %v492 = vsel %vm468, %v459, %v443
        %v493 = vsel %vm468, %v460, %v444
        %v494 = vsel %vm468, %v461, %v445
        %v495 = vsel %vm468, %v462, %v446
        %v496 = vsel %vm468, %v463, %v447
        %v497 = vsel %vm468, %v464, %v448
        %v498 = vsel %vm468, %v465, %v449
        %v499 = vsel %vm468, %v466, %v450
        %v500 = vsel %vm468, %v467, %v451
        %v501 = vsel %vm367, 1, 0
        %v502 = vsel %vm368, 1, 0
        %vm503 = vcmp.eq.s32.totalorder %v501, 1
        %vm504 = vcmp.eq.s32.totalorder %v502, 1
        %v505 = vsel %vm503, %v469, %v420
        %v506 = vsel %vm504, %v485, %v404
        %v507 = vsel %vm503, %v470, %v421
        %v508 = vsel %vm504, %v486, %v405
        %v509 = vsel %vm503, %v471, %v422
        %v510 = vsel %vm504, %v487, %v406
        %v511 = vsel %vm503, %v472, %v423
        %v512 = vsel %vm504, %v488, %v407
        %v513 = vsel %vm503, %v473, %v424
        %v514 = vsel %vm504, %v489, %v408
        %v515 = vsel %vm503, %v474, %v425
        %v516 = vsel %vm504, %v490, %v409
        %v517 = vsel %vm503, %v475, %v426
        %v518 = vsel %vm504, %v491, %v410
        %v519 = vsel %vm503, %v476, %v427
        %v520 = vsel %vm504, %v492, %v411
        %v521 = vsel %vm503, %v477, %v428
        %v522 = vsel %vm504, %v493, %v412
        %v523 = vsel %vm503, %v478, %v429
        %v524 = vsel %vm504, %v494, %v413
        %v525 = vsel %vm503, %v479, %v430
        %v526 = vsel %vm504, %v495, %v414
        %v527 = vsel %vm503, %v480, %v431
        %v528 = vsel %vm504, %v496, %v415
        %v529 = vsel %vm503, %v481, %v432
        %v530 = vsel %vm504, %v497, %v416
        %v531 = vsel %vm503, %v482, %v433
        %v532 = vsel %vm504, %v498, %v417
        %v533 = vsel %vm503, %v483, %v434
        %v534 = vsel %vm504, %v499, %v418
        %v535 = vsel %vm503, %v484, %v435
        %v536 = vsel %vm504, %v500, %v419
        %v537 = vpack.c.bf16 %v505, %v505
        %v538 = vpack.c.bf16 %v506, %v506
        %v539 = vpack.c.bf16 %v507, %v507
        %v540 = vpack.c.bf16 %v508, %v508
        %v541 = vpack.c.bf16 %v509, %v509
        %v542 = vpack.c.bf16 %v510, %v510
        %v543 = vpack.c.bf16 %v511, %v511
        %v544 = vpack.c.bf16 %v512, %v512
        %v545 = vpack.c.bf16 %v513, %v513
        %v546 = vpack.c.bf16 %v514, %v514
        %v547 = vpack.c.bf16 %v515, %v515
        %v548 = vpack.c.bf16 %v516, %v516
        %v549 = vpack.c.bf16 %v517, %v517
        %v550 = vpack.c.bf16 %v518, %v518
        %v551 = vpack.c.bf16 %v519, %v519
        %v552 = vpack.c.bf16 %v520, %v520
        %v553 = vpack.c.bf16 %v521, %v521
        %v554 = vpack.c.bf16 %v522, %v522
        %v555 = vpack.c.bf16 %v523, %v523
        %v556 = vpack.c.bf16 %v524, %v524
        %v557 = vpack.c.bf16 %v525, %v525
        %v558 = vpack.c.bf16 %v526, %v526
        %v559 = vpack.c.bf16 %v527, %v527
        %v560 = vpack.c.bf16 %v528, %v528
        %v561 = vpack.c.bf16 %v529, %v529
        %v562 = vpack.c.bf16 %v530, %v530
        %v563 = vpack.c.bf16 %v531, %v531
        %v564 = vpack.c.bf16 %v532, %v532
        %v565 = vpack.c.bf16 %v533, %v533
        %v566 = vpack.c.bf16 %v534, %v534
        %v567 = vpack.c.bf16 %v535, %v535
        %v568 = vpack.c.bf16 %v536, %v536
        %v569 = vsel %vm369, 1, 0
        %v570 = vsel %vm370, 1, 0
        %vm571 = vcmp.eq.s32.totalorder %v569, 1
        %vm572 = vcmp.eq.s32.totalorder %v570, 1
        %v573 = vsel %vm571, %v420, %v469
        %v574 = vsel %vm572, %v404, %v485
        %v575 = vsel %vm571, %v421, %v470
        %v576 = vsel %vm572, %v405, %v486
        %v577 = vsel %vm571, %v422, %v471
        %v578 = vsel %vm572, %v406, %v487
        %v579 = vsel %vm571, %v423, %v472
        %v580 = vsel %vm572, %v407, %v488
        %v581 = vsel %vm571, %v424, %v473
        %v582 = vsel %vm572, %v408, %v489
        %v583 = vsel %vm571, %v425, %v474
        %v584 = vsel %vm572, %v409, %v490
        %v585 = vsel %vm571, %v426, %v475
        %v586 = vsel %vm572, %v410, %v491
        %v587 = vsel %vm571, %v427, %v476
        %v588 = vsel %vm572, %v411, %v492
        %v589 = vsel %vm571, %v428, %v477
        %v590 = vsel %vm572, %v412, %v493
        %v591 = vsel %vm571, %v429, %v478
        %v592 = vsel %vm572, %v413, %v494
        %v593 = vsel %vm571, %v430, %v479
        %v594 = vsel %vm572, %v414, %v495
        %v595 = vsel %vm571, %v431, %v480
        %v596 = vsel %vm572, %v415, %v496
        %v597 = vsel %vm571, %v432, %v481
        %v598 = vsel %vm572, %v416, %v497
        %v599 = vsel %vm571, %v433, %v482
        %v600 = vsel %vm572, %v417, %v498
        %v601 = vsel %vm571, %v434, %v483
        %v602 = vsel %vm572, %v418, %v499
        %v603 = vsel %vm571, %v435, %v484
        %v604 = vsel %vm572, %v419, %v500
        %v605 = vpack.c.bf16 %v573, %v573
        %v606 = vpack.c.bf16 %v574, %v574
        %v607 = vpack.c.bf16 %v575, %v575
        %v608 = vpack.c.bf16 %v576, %v576
        %v609 = vpack.c.bf16 %v577, %v577
        %v610 = vpack.c.bf16 %v578, %v578
        %v611 = vpack.c.bf16 %v579, %v579
        %v612 = vpack.c.bf16 %v580, %v580
        %v613 = vpack.c.bf16 %v581, %v581
        %v614 = vpack.c.bf16 %v582, %v582
        %v615 = vpack.c.bf16 %v583, %v583
        %v616 = vpack.c.bf16 %v584, %v584
        %v617 = vpack.c.bf16 %v585, %v585
        %v618 = vpack.c.bf16 %v586, %v586
        %v619 = vpack.c.bf16 %v587, %v587
        %v620 = vpack.c.bf16 %v588, %v588
        %v621 = vpack.c.bf16 %v589, %v589
        %v622 = vpack.c.bf16 %v590, %v590
        %v623 = vpack.c.bf16 %v591, %v591
        %v624 = vpack.c.bf16 %v592, %v592
        %v625 = vpack.c.bf16 %v593, %v593
        %v626 = vpack.c.bf16 %v594, %v594
        %v627 = vpack.c.bf16 %v595, %v595
        %v628 = vpack.c.bf16 %v596, %v596
        %v629 = vpack.c.bf16 %v597, %v597
        %v630 = vpack.c.bf16 %v598, %v598
        %v631 = vpack.c.bf16 %v599, %v599
        %v632 = vpack.c.bf16 %v600, %v600
        %v633 = vpack.c.bf16 %v601, %v601
        %v634 = vpack.c.bf16 %v602, %v602
        %v635 = vpack.c.bf16 %v603, %v603
        %v636 = vpack.c.bf16 %v604, %v604
        %v637 = vpack.c.bf16 %v334, %v334
        %v638 = vpack.c.bf16 %v335, %v335
        %v639 = vpack.c.bf16 %v332, %v332
        %v640 = vpack.c.bf16 %v333, %v333
        %v641 = vpack.c.bf16 %v336, %v336
        %v642 = vpack.c.bf16 %v337, %v337
        %v643 = vpack.c.bf16 %v338, %v338
        %v644 = vpack.c.bf16 %v339, %v339
        %v645 = vpack.c.bf16 %v340, %v340
        %v646 = vpack.c.bf16 %v341, %v341
        %v647 = vpack.c.bf16 %v342, %v342
        %v648 = vpack.c.bf16 %v343, %v343
        %v649 = vpack.c.bf16 %v344, %v344
        %v650 = vpack.c.bf16 %v345, %v345
        %v651 = vpack.c.bf16 %v346, %v346
        %v652 = vpack.c.bf16 %v347, %v347
        %v653 = vpack.c.bf16 %v348, %v348
        %v654 = vpack.c.bf16 %v349, %v349
        %v655 = vpack.c.bf16 %v350, %v350
        %v656 = vpack.c.bf16 %v351, %v351
        %v657 = vpack.c.bf16 %v352, %v352
        %v658 = vpack.c.bf16 %v353, %v353
        %v659 = vpack.c.bf16 %v354, %v354
        %v660 = vpack.c.bf16 %v355, %v355
        %v661 = vpack.c.bf16 %v356, %v356
        %v662 = vpack.c.bf16 %v357, %v357
        %v663 = vpack.c.bf16 %v358, %v358
        %v664 = vpack.c.bf16 %v359, %v359
        %v665 = vpack.c.bf16 %v360, %v360
        %v666 = vpack.c.bf16 %v361, %v361
        %v667 = vpack.c.bf16 %v362, %v362
        %v668 = vpack.c.bf16 %v363, %v363
        %v701 = vunpack.c.l.b16 %v537
        %v702 = vunpack.c.l.b16 %v538
        %v703 = vunpack.c.l.b16 %v539
        %v704 = vunpack.c.l.b16 %v540
        %v705 = vunpack.c.l.b16 %v541
        %v706 = vunpack.c.l.b16 %v542
        %v707 = vunpack.c.l.b16 %v543
        %v708 = vunpack.c.l.b16 %v544
        %v709 = vunpack.c.l.b16 %v545
        %v710 = vunpack.c.l.b16 %v546
        %v711 = vunpack.c.l.b16 %v547
        %v712 = vunpack.c.l.b16 %v548
        %v713 = vunpack.c.l.b16 %v549
        %v714 = vunpack.c.l.b16 %v550
        %v715 = vunpack.c.l.b16 %v551
        %v716 = vunpack.c.l.b16 %v552
        %v717 = vunpack.c.l.b16 %v553
        %v718 = vunpack.c.l.b16 %v554
        %v719 = vunpack.c.l.b16 %v555
        %v720 = vunpack.c.l.b16 %v556
        %v721 = vunpack.c.l.b16 %v557
        %v722 = vunpack.c.l.b16 %v558
        %v723 = vunpack.c.l.b16 %v559
        %v724 = vunpack.c.l.b16 %v560
        %v725 = vunpack.c.l.b16 %v561
        %v726 = vunpack.c.l.b16 %v562
        %v727 = vunpack.c.l.b16 %v563
        %v728 = vunpack.c.l.b16 %v564
        %v729 = vunpack.c.l.b16 %v565
        %v730 = vunpack.c.l.b16 %v566
        %v731 = vunpack.c.l.b16 %v567
        %v732 = vunpack.c.l.b16 %v568
        %v733 = vpack.c.b16 %v702, %v701
        %v734 = vpack.c.b16 %v704, %v703
        %v735 = vpack.c.b16 %v706, %v705
        %v736 = vpack.c.b16 %v708, %v707
        %v737 = vpack.c.b16 %v710, %v709
        %v738 = vpack.c.b16 %v712, %v711
        %v739 = vpack.c.b16 %v714, %v713
        %v740 = vpack.c.b16 %v716, %v715
        %v741 = vpack.c.b16 %v718, %v717
        %v742 = vpack.c.b16 %v720, %v719
        %v743 = vpack.c.b16 %v722, %v721
        %v744 = vpack.c.b16 %v724, %v723
        %v745 = vpack.c.b16 %v726, %v725
        %v746 = vpack.c.b16 %v728, %v727
        %v747 = vpack.c.b16 %v730, %v729
        %v748 = vpack.c.b16 %v732, %v731
        %v797 = vunpack.c.l.b16 %v637
        %v798 = vunpack.c.l.b16 %v638
        %v799 = vunpack.c.l.b16 %v639
        %v800 = vunpack.c.l.b16 %v640
        %v801 = vunpack.c.l.b16 %v641
        %v802 = vunpack.c.l.b16 %v642
        %v803 = vunpack.c.l.b16 %v643
        %v804 = vunpack.c.l.b16 %v644
        %v805 = vunpack.c.l.b16 %v645
        %v806 = vunpack.c.l.b16 %v646
        %v807 = vunpack.c.l.b16 %v647
        %v808 = vunpack.c.l.b16 %v648
        %v809 = vunpack.c.l.b16 %v649
        %v810 = vunpack.c.l.b16 %v650
        %v811 = vunpack.c.l.b16 %v651
        %v812 = vunpack.c.l.b16 %v652
        %v813 = vunpack.c.l.b16 %v653
        %v814 = vunpack.c.l.b16 %v654
        %v815 = vunpack.c.l.b16 %v655
        %v816 = vunpack.c.l.b16 %v656
        %v817 = vunpack.c.l.b16 %v657
        %v818 = vunpack.c.l.b16 %v658
        %v819 = vunpack.c.l.b16 %v659
        %v820 = vunpack.c.l.b16 %v660
        %v821 = vunpack.c.l.b16 %v661
        %v822 = vunpack.c.l.b16 %v662
        %v823 = vunpack.c.l.b16 %v663
        %v824 = vunpack.c.l.b16 %v664
        %v825 = vunpack.c.l.b16 %v665
        %v826 = vunpack.c.l.b16 %v666
        %v827 = vunpack.c.l.b16 %v667
        %v828 = vunpack.c.l.b16 %v668
        %v829 = vpack.c.b16 %v798, %v797
        %v830 = vpack.c.b16 %v800, %v799
        %v831 = vpack.c.b16 %v802, %v801
        %v832 = vpack.c.b16 %v804, %v803
        %v833 = vpack.c.b16 %v806, %v805
        %v834 = vpack.c.b16 %v808, %v807
        %v835 = vpack.c.b16 %v810, %v809
        %v836 = vpack.c.b16 %v812, %v811
        %v837 = vpack.c.b16 %v814, %v813
        %v838 = vpack.c.b16 %v816, %v815
        %v839 = vpack.c.b16 %v818, %v817
        %v840 = vpack.c.b16 %v820, %v819
        %v841 = vpack.c.b16 %v822, %v821
        %v842 = vpack.c.b16 %v824, %v823
        %v843 = vpack.c.b16 %v826, %v825
        %v844 = vpack.c.b16 %v828, %v827
        %v893 = vunpack.c.l.b16 %v605
        %v894 = vunpack.c.l.b16 %v606
        %v895 = vunpack.c.l.b16 %v607
        %v896 = vunpack.c.l.b16 %v608
        %v897 = vunpack.c.l.b16 %v609
        %v898 = vunpack.c.l.b16 %v610
        %v899 = vunpack.c.l.b16 %v611
        %v900 = vunpack.c.l.b16 %v612
        %v901 = vunpack.c.l.b16 %v613
        %v902 = vunpack.c.l.b16 %v614
        %v903 = vunpack.c.l.b16 %v615
        %v904 = vunpack.c.l.b16 %v616
        %v905 = vunpack.c.l.b16 %v617
        %v906 = vunpack.c.l.b16 %v618
        %v907 = vunpack.c.l.b16 %v619
        %v908 = vunpack.c.l.b16 %v620
        %v909 = vunpack.c.l.b16 %v621
        %v910 = vunpack.c.l.b16 %v622
        %v911 = vunpack.c.l.b16 %v623
        %v912 = vunpack.c.l.b16 %v624
        %v913 = vunpack.c.l.b16 %v625
        %v914 = vunpack.c.l.b16 %v626
        %v915 = vunpack.c.l.b16 %v627
        %v916 = vunpack.c.l.b16 %v628
        %v917 = vunpack.c.l.b16 %v629
        %v918 = vunpack.c.l.b16 %v630
        %v919 = vunpack.c.l.b16 %v631
        %v920 = vunpack.c.l.b16 %v632
        %v921 = vunpack.c.l.b16 %v633
        %v922 = vunpack.c.l.b16 %v634
        %v923 = vunpack.c.l.b16 %v635
        %v924 = vunpack.c.l.b16 %v636
        %v925 = vpack.c.b16 %v894, %v893
        %v926 = vpack.c.b16 %v896, %v895
        %v927 = vpack.c.b16 %v898, %v897
        %v928 = vpack.c.b16 %v900, %v899
        %v929 = vpack.c.b16 %v902, %v901
        %v930 = vpack.c.b16 %v904, %v903
        %v931 = vpack.c.b16 %v906, %v905
        %v932 = vpack.c.b16 %v908, %v907
        %v933 = vpack.c.b16 %v910, %v909
        %v934 = vpack.c.b16 %v912, %v911
        %v935 = vpack.c.b16 %v914, %v913
        %v936 = vpack.c.b16 %v916, %v915
        %v937 = vpack.c.b16 %v918, %v917
        %v938 = vpack.c.b16 %v920, %v919
        %v939 = vpack.c.b16 %v922, %v921
        %v940 = vpack.c.b16 %v924, %v923
        %v957 = vld [vmem:[#allocation5] sm:$0xf]
        %v958 = vld [vmem:[#allocation5 + $0x4] sm:$0xf]
        %v959 = vld [vmem:[#allocation5 + $0x8] sm:$0xf]
        %v960 = vld [vmem:[#allocation5 + $0xc] sm:$0xf]
        %v961 = vld [vmem:[#allocation5 + $0x10] sm:$0xf]
        %v962 = vld [vmem:[#allocation5 + $0x14] sm:$0xf]
        %v963 = vld [vmem:[#allocation5 + $0x18] sm:$0xf]
        %v964 = vld [vmem:[#allocation5 + $0x1c] sm:$0xf]
        %v965 = vld [vmem:[#allocation5 + $0x20] sm:$0xf]
        %v966 = vld [vmem:[#allocation5 + $0x24] sm:$0xf]
        %v967 = vld [vmem:[#allocation5 + $0x28] sm:$0xf]
        %v968 = vld [vmem:[#allocation5 + $0x2c] sm:$0xf]
        %v969 = vld [vmem:[#allocation5 + $0x30] sm:$0xf]
        %v970 = vld [vmem:[#allocation5 + $0x34] sm:$0xf]
        %v971 = vld [vmem:[#allocation5 + $0x38] sm:$0xf]
        %v972 = vld [vmem:[#allocation5 + $0x3c] sm:$0xf]
        %v973 = vld [vmem:[#allocation5 + $0x40] sm:$0xf]
        %v974 = vld [vmem:[#allocation5 + $0x44] sm:$0xf]
        %v975 = vld [vmem:[#allocation5 + $0x48] sm:$0xf]
        %v976 = vld [vmem:[#allocation5 + $0x4c] sm:$0xf]
        %v977 = vld [vmem:[#allocation5 + $0x50] sm:$0xf]
        %v978 = vld [vmem:[#allocation5 + $0x54] sm:$0xf]
        %v979 = vld [vmem:[#allocation5 + $0x58] sm:$0xf]
        %v980 = vld [vmem:[#allocation5 + $0x5c] sm:$0xf]
        %v981 = vld [vmem:[#allocation5 + $0x60] sm:$0xf]
        %v982 = vld [vmem:[#allocation5 + $0x64] sm:$0xf]
        %v983 = vld [vmem:[#allocation5 + $0x68] sm:$0xf]
        %v984 = vld [vmem:[#allocation5 + $0x6c] sm:$0xf]
        %v985 = vld [vmem:[#allocation5 + $0x70] sm:$0xf]
        %v986 = vld [vmem:[#allocation5 + $0x74] sm:$0xf]
        %v987 = vld [vmem:[#allocation5 + $0x78] sm:$0xf]
        %v988 = vld [vmem:[#allocation5 + $0x7c] sm:$0xf]
        %v989 = vld [vmem:[#allocation5 + $0x80] sm:$0xf]
        %v990 = vld [vmem:[#allocation5 + $0x84] sm:$0xf]
        %v991 = vld [vmem:[#allocation5 + $0x88] sm:$0xf]
        %v992 = vld [vmem:[#allocation5 + $0x8c] sm:$0xf]
        %v993 = vld [vmem:[#allocation5 + $0x90] sm:$0xf]
        %v994 = vld [vmem:[#allocation5 + $0x94] sm:$0xf]
        %v995 = vld [vmem:[#allocation5 + $0x98] sm:$0xf]
        %v996 = vld [vmem:[#allocation5 + $0x9c] sm:$0xf]
        %v997 = vld [vmem:[#allocation5 + $0xa0] sm:$0xf]
        %v998 = vld [vmem:[#allocation5 + $0xa4] sm:$0xf]
        %v999 = vld [vmem:[#allocation5 + $0xa8] sm:$0xf]
        %v1000 = vld [vmem:[#allocation5 + $0xac] sm:$0xf]
        %v1001 = vld [vmem:[#allocation5 + $0xb0] sm:$0xf]
        %v1002 = vld [vmem:[#allocation5 + $0xb4] sm:$0xf]
        %v1003 = vld [vmem:[#allocation5 + $0xb8] sm:$0xf]
        %v1004 = vld [vmem:[#allocation5 + $0xbc] sm:$0xf]
        %v1005 = vld [vmem:[#allocation5 + $0xc0] sm:$0xf]
        %v1006 = vld [vmem:[#allocation5 + $0xc4] sm:$0xf]
        %v1007 = vld [vmem:[#allocation5 + $0xc8] sm:$0xf]
        %v1008 = vld [vmem:[#allocation5 + $0xcc] sm:$0xf]
        %v1009 = vld [vmem:[#allocation5 + $0xd0] sm:$0xf]
        %v1010 = vld [vmem:[#allocation5 + $0xd4] sm:$0xf]
        %v1011 = vld [vmem:[#allocation5 + $0xd8] sm:$0xf]
        %v1012 = vld [vmem:[#allocation5 + $0xdc] sm:$0xf]
        %v1013 = vld [vmem:[#allocation5 + $0xe0] sm:$0xf]
        %v1014 = vld [vmem:[#allocation5 + $0xe4] sm:$0xf]
        %v1015 = vld [vmem:[#allocation5 + $0xe8] sm:$0xf]
        %v1016 = vld [vmem:[#allocation5 + $0xec] sm:$0xf]
        %v1017 = vld [vmem:[#allocation5 + $0xf0] sm:$0xf]
        %v1018 = vld [vmem:[#allocation5 + $0xf4] sm:$0xf]
        %v1019 = vld [vmem:[#allocation5 + $0xf8] sm:$0xf]
        %v1020 = vld [vmem:[#allocation5 + $0xfc] sm:$0xf]
        %v1021 = vld [vmem:[#allocation5 + $0x100] sm:$0xf]
        %v1022 = vld [vmem:[#allocation5 + $0x104] sm:$0xf]
        %v1023 = vld [vmem:[#allocation5 + $0x108] sm:$0xf]
        %v1024 = vld [vmem:[#allocation5 + $0x10c] sm:$0xf]
        %v1025 = vld [vmem:[#allocation5 + $0x110] sm:$0xf]
        %v1026 = vld [vmem:[#allocation5 + $0x114] sm:$0xf]
        %v1027 = vld [vmem:[#allocation5 + $0x118] sm:$0xf]
        %v1028 = vld [vmem:[#allocation5 + $0x11c] sm:$0xf]
        %v1029 = vld [vmem:[#allocation5 + $0x120] sm:$0xf]
        %v1030 = vld [vmem:[#allocation5 + $0x124] sm:$0xf]
        %v1031 = vld [vmem:[#allocation5 + $0x128] sm:$0xf]
        %v1032 = vld [vmem:[#allocation5 + $0x12c] sm:$0xf]
        %v1033 = vld [vmem:[#allocation5 + $0x130] sm:$0xf]
        %v1034 = vld [vmem:[#allocation5 + $0x134] sm:$0xf]
        %v1035 = vld [vmem:[#allocation5 + $0x138] sm:$0xf]
        %v1036 = vld [vmem:[#allocation5 + $0x13c] sm:$0xf]
        %v1037 = vld [vmem:[#allocation5 + $0x140] sm:$0xf]
        %v1038 = vld [vmem:[#allocation5 + $0x144] sm:$0xf]
        %v1039 = vld [vmem:[#allocation5 + $0x148] sm:$0xf]
        %v1040 = vld [vmem:[#allocation5 + $0x14c] sm:$0xf]
        %v1041 = vld [vmem:[#allocation5 + $0x150] sm:$0xf]
        %v1042 = vld [vmem:[#allocation5 + $0x154] sm:$0xf]
        %v1043 = vld [vmem:[#allocation5 + $0x158] sm:$0xf]
        %v1044 = vld [vmem:[#allocation5 + $0x15c] sm:$0xf]
        %v1045 = vld [vmem:[#allocation5 + $0x160] sm:$0xf]
        %v1046 = vld [vmem:[#allocation5 + $0x164] sm:$0xf]
        %v1047 = vld [vmem:[#allocation5 + $0x168] sm:$0xf]
        %v1048 = vld [vmem:[#allocation5 + $0x16c] sm:$0xf]
        %v1049 = vld [vmem:[#allocation5 + $0x170] sm:$0xf]
        %v1050 = vld [vmem:[#allocation5 + $0x174] sm:$0xf]
        %v1051 = vld [vmem:[#allocation5 + $0x178] sm:$0xf]
        %v1052 = vld [vmem:[#allocation5 + $0x17c] sm:$0xf]
        %v1101 = vunpack.c.l.b16 %v1005
        %v1102 = vunpack.c.l.b16 %v1006
        %v1103 = vunpack.c.l.b16 %v1007
        %v1104 = vunpack.c.l.b16 %v1008
        %v1105 = vunpack.c.l.b16 %v1009
        %v1106 = vunpack.c.l.b16 %v1010
        %v1107 = vunpack.c.l.b16 %v1011
        %v1108 = vunpack.c.l.b16 %v1012
        %v1109 = vunpack.c.l.b16 %v1013
        %v1110 = vunpack.c.l.b16 %v1014
        %v1111 = vunpack.c.l.b16 %v1015
        %v1112 = vunpack.c.l.b16 %v1016
        %v1113 = vunpack.c.l.b16 %v1017
        %v1114 = vunpack.c.l.b16 %v1018
        %v1115 = vunpack.c.l.b16 %v1019
        %v1116 = vunpack.c.l.b16 %v1020
        %v1117 = vunpack.c.l.b16 %v1021
        %v1118 = vunpack.c.l.b16 %v1022
        %v1119 = vunpack.c.l.b16 %v1023
        %v1120 = vunpack.c.l.b16 %v1024
        %v1121 = vunpack.c.l.b16 %v1025
        %v1122 = vunpack.c.l.b16 %v1026
        %v1123 = vunpack.c.l.b16 %v1027
        %v1124 = vunpack.c.l.b16 %v1028
        %v1125 = vunpack.c.l.b16 %v1029
        %v1126 = vunpack.c.l.b16 %v1030
        %v1127 = vunpack.c.l.b16 %v1031
        %v1128 = vunpack.c.l.b16 %v1032
        %v1129 = vunpack.c.l.b16 %v1033
        %v1130 = vunpack.c.l.b16 %v1034
        %v1131 = vunpack.c.l.b16 %v1035
        %v1132 = vunpack.c.l.b16 %v1036
        %v1133 = vunpack.c.l.b16 %v1037
        %v1134 = vunpack.c.l.b16 %v1038
        %v1135 = vunpack.c.l.b16 %v1039
        %v1136 = vunpack.c.l.b16 %v1040
        %v1137 = vunpack.c.l.b16 %v1041
        %v1138 = vunpack.c.l.b16 %v1042
        %v1139 = vunpack.c.l.b16 %v1043
        %v1140 = vunpack.c.l.b16 %v1044
        %v1141 = vunpack.c.l.b16 %v1045
        %v1142 = vunpack.c.l.b16 %v1046
        %v1143 = vunpack.c.l.b16 %v1047
        %v1144 = vunpack.c.l.b16 %v1048
        %v1145 = vunpack.c.l.b16 %v1049
        %v1146 = vunpack.c.l.b16 %v1050
        %v1147 = vunpack.c.l.b16 %v1051
        %v1148 = vunpack.c.l.b16 %v1052
        %v1149 = vpack.c.b16 %v1102, %v1101
        %v1150 = vpack.c.b16 %v1104, %v1103
        %v1151 = vpack.c.b16 %v1106, %v1105
        %v1152 = vpack.c.b16 %v1108, %v1107
        %v1153 = vpack.c.b16 %v1110, %v1109
        %v1154 = vpack.c.b16 %v1112, %v1111
        %v1155 = vpack.c.b16 %v1114, %v1113
        %v1156 = vpack.c.b16 %v1116, %v1115
        %v1157 = vpack.c.b16 %v1118, %v1117
        %v1158 = vpack.c.b16 %v1120, %v1119
        %v1159 = vpack.c.b16 %v1122, %v1121
        %v1160 = vpack.c.b16 %v1124, %v1123
        %v1161 = vpack.c.b16 %v1126, %v1125
        %v1162 = vpack.c.b16 %v1128, %v1127
        %v1163 = vpack.c.b16 %v1130, %v1129
        %v1164 = vpack.c.b16 %v1132, %v1131
        %v1165 = vpack.c.b16 %v1134, %v1133
        %v1166 = vpack.c.b16 %v1136, %v1135
        %v1167 = vpack.c.b16 %v1138, %v1137
        %v1168 = vpack.c.b16 %v1140, %v1139
        %v1169 = vpack.c.b16 %v1142, %v1141
        %v1170 = vpack.c.b16 %v1144, %v1143
        %v1171 = vpack.c.b16 %v1146, %v1145
        %v1172 = vpack.c.b16 %v1148, %v1147
        %1197 = vmatpush.bf16.msra.mxu0 %v1156
        %1198 = vmatpush.bf16.msra.mxu0 %v1155
        %1199 = vmatpush.bf16.msra.mxu0 %v1154
        %1200 = vmatpush.bf16.msra.mxu0 %v1153
        %1201 = vmatpush.bf16.msra.mxu0 %v1152
        %1202 = vmatpush.bf16.msra.mxu0 %v1151
        %1203 = vmatpush.bf16.msra.mxu0 %v1150
        %1204 = vmatpush.bf16.msra.mxu0 %v1149
        %1205 = vmatmul.bf16.gmra.mxu0 %v734
        %v1206 = vpop.f32.mrf.mxu0
        %v1207 = vadd.f32 0.0, %v1206
        %v1208 = vpop.f32.mrf.mxu0
        %v1209 = vadd.f32 0.0, %v1208
        %1210 = vmatmul.bf16.gmra.mxu0 %v733
        %v1211 = vpop.f32.mrf.mxu0
        %v1212 = vadd.f32 0.0, %v1211
        %v1213 = vpop.f32.mrf.mxu0
        %v1214 = vadd.f32 0.0, %v1213
        %1215 = vmatmul.bf16.gmra.mxu0 %v735
        %v1216 = vpop.f32.mrf.mxu0
        %v1217 = vadd.f32 0.0, %v1216
        %v1218 = vpop.f32.mrf.mxu0
        %v1219 = vadd.f32 0.0, %v1218
        %1220 = vmatmul.bf16.gmra.mxu0 %v736
        %v1221 = vpop.f32.mrf.mxu0
        %v1222 = vadd.f32 0.0, %v1221
        %v1223 = vpop.f32.mrf.mxu0
        %v1224 = vadd.f32 0.0, %v1223
        %1225 = vmatmul.bf16.gmra.mxu0 %v737
        %v1226 = vpop.f32.mrf.mxu0
        %v1227 = vadd.f32 0.0, %v1226
        %v1228 = vpop.f32.mrf.mxu0
        %v1229 = vadd.f32 0.0, %v1228
        %1230 = vmatmul.bf16.gmra.mxu0 %v738
        %v1231 = vpop.f32.mrf.mxu0
        %v1232 = vadd.f32 0.0, %v1231
        %v1233 = vpop.f32.mrf.mxu0
        %v1234 = vadd.f32 0.0, %v1233
        %1235 = vmatmul.bf16.gmra.mxu0 %v739
        %v1236 = vpop.f32.mrf.mxu0
        %v1237 = vadd.f32 0.0, %v1236
        %v1238 = vpop.f32.mrf.mxu0
        %v1239 = vadd.f32 0.0, %v1238
        %1240 = vmatmul.bf16.gmra.mxu0 %v740
        %v1241 = vpop.f32.mrf.mxu0
        %v1242 = vadd.f32 0.0, %v1241
        %v1243 = vpop.f32.mrf.mxu0
        %v1244 = vadd.f32 0.0, %v1243
        %1245 = vmatmul.bf16.gmra.mxu0 %v741
        %v1246 = vpop.f32.mrf.mxu0
        %v1247 = vadd.f32 0.0, %v1246
        %v1248 = vpop.f32.mrf.mxu0
        %v1249 = vadd.f32 0.0, %v1248
        %1250 = vmatmul.bf16.gmra.mxu0 %v742
        %v1251 = vpop.f32.mrf.mxu0
        %v1252 = vadd.f32 0.0, %v1251
        %v1253 = vpop.f32.mrf.mxu0
        %v1254 = vadd.f32 0.0, %v1253
        %1255 = vmatmul.bf16.gmra.mxu0 %v743
        %v1256 = vpop.f32.mrf.mxu0
        %v1257 = vadd.f32 0.0, %v1256
        %v1258 = vpop.f32.mrf.mxu0
        %v1259 = vadd.f32 0.0, %v1258
        %1260 = vmatmul.bf16.gmra.mxu0 %v744
        %v1261 = vpop.f32.mrf.mxu0
        %v1262 = vadd.f32 0.0, %v1261
        %v1263 = vpop.f32.mrf.mxu0
        %v1264 = vadd.f32 0.0, %v1263
        %1265 = vmatmul.bf16.gmra.mxu0 %v745
        %v1266 = vpop.f32.mrf.mxu0
        %v1267 = vadd.f32 0.0, %v1266
        %v1268 = vpop.f32.mrf.mxu0
        %v1269 = vadd.f32 0.0, %v1268
        %1270 = vmatmul.bf16.gmra.mxu0 %v746
        %v1271 = vpop.f32.mrf.mxu0
        %v1272 = vadd.f32 0.0, %v1271
        %v1273 = vpop.f32.mrf.mxu0
        %v1274 = vadd.f32 0.0, %v1273
        %1275 = vmatmul.bf16.gmra.mxu0 %v747
        %v1276 = vpop.f32.mrf.mxu0
        %v1277 = vadd.f32 0.0, %v1276
        %v1278 = vpop.f32.mrf.mxu0
        %v1279 = vadd.f32 0.0, %v1278
        %1280 = vmatmul.bf16.gmra.mxu0 %v748
        %v1281 = vpop.f32.mrf.mxu0
        %v1282 = vadd.f32 0.0, %v1281
        %v1283 = vpop.f32.mrf.mxu0
        %v1284 = vadd.f32 0.0, %v1283
        %1285 = vdwg.mxu0
        %1286 = vmatpush.bf16.msra.mxu0 %v1164
        %1287 = vmatpush.bf16.msra.mxu0 %v1163
        %1288 = vmatpush.bf16.msra.mxu0 %v1162
        %1289 = vmatpush.bf16.msra.mxu0 %v1161
        %1290 = vmatpush.bf16.msra.mxu0 %v1160
        %1291 = vmatpush.bf16.msra.mxu0 %v1159
        %1292 = vmatpush.bf16.msra.mxu0 %v1158
        %1293 = vmatpush.bf16.msra.mxu0 %v1157
        %1294 = vmatmul.bf16.gmra.mxu0 %v830
        %v1295 = vpop.f32.mrf.mxu0
        %v1296 = vadd.f32 %v1207, %v1295
        %v1297 = vpop.f32.mrf.mxu0
        %v1298 = vadd.f32 %v1209, %v1297
        %1299 = vmatmul.bf16.gmra.mxu0 %v829
        %v1300 = vpop.f32.mrf.mxu0
        %v1301 = vadd.f32 %v1212, %v1300
        %v1302 = vpop.f32.mrf.mxu0
        %v1303 = vadd.f32 %v1214, %v1302
        %1304 = vmatmul.bf16.gmra.mxu0 %v831
        %v1305 = vpop.f32.mrf.mxu0
        %v1306 = vadd.f32 %v1217, %v1305
        %v1307 = vpop.f32.mrf.mxu0
        %v1308 = vadd.f32 %v1219, %v1307
        %1309 = vmatmul.bf16.gmra.mxu0 %v832
        %v1310 = vpop.f32.mrf.mxu0
        %v1311 = vadd.f32 %v1222, %v1310
        %v1312 = vpop.f32.mrf.mxu0
        %v1313 = vadd.f32 %v1224, %v1312
        %1314 = vmatmul.bf16.gmra.mxu0 %v833
        %v1315 = vpop.f32.mrf.mxu0
        %v1316 = vadd.f32 %v1227, %v1315
        %v1317 = vpop.f32.mrf.mxu0
        %v1318 = vadd.f32 %v1229, %v1317
        %1319 = vmatmul.bf16.gmra.mxu0 %v834
        %v1320 = vpop.f32.mrf.mxu0
        %v1321 = vadd.f32 %v1232, %v1320
        %v1322 = vpop.f32.mrf.mxu0
        %v1323 = vadd.f32 %v1234, %v1322
        %1324 = vmatmul.bf16.gmra.mxu0 %v835
        %v1325 = vpop.f32.mrf.mxu0
        %v1326 = vadd.f32 %v1237, %v1325
        %v1327 = vpop.f32.mrf.mxu0
        %v1328 = vadd.f32 %v1239, %v1327
        %1329 = vmatmul.bf16.gmra.mxu0 %v836
        %v1330 = vpop.f32.mrf.mxu0
        %v1331 = vadd.f32 %v1242, %v1330
        %v1332 = vpop.f32.mrf.mxu0
        %v1333 = vadd.f32 %v1244, %v1332
        %1334 = vmatmul.bf16.gmra.mxu0 %v837
        %v1335 = vpop.f32.mrf.mxu0
        %v1336 = vadd.f32 %v1247, %v1335
        %v1337 = vpop.f32.mrf.mxu0
        %v1338 = vadd.f32 %v1249, %v1337
        %1339 = vmatmul.bf16.gmra.mxu0 %v838
        %v1340 = vpop.f32.mrf.mxu0
        %v1341 = vadd.f32 %v1252, %v1340
        %v1342 = vpop.f32.mrf.mxu0
        %v1343 = vadd.f32 %v1254, %v1342
        %1344 = vmatmul.bf16.gmra.mxu0 %v839
        %v1345 = vpop.f32.mrf.mxu0
        %v1346 = vadd.f32 %v1257, %v1345
        %v1347 = vpop.f32.mrf.mxu0
        %v1348 = vadd.f32 %v1259, %v1347
        %1349 = vmatmul.bf16.gmra.mxu0 %v840
        %v1350 = vpop.f32.mrf.mxu0
        %v1351 = vadd.f32 %v1262, %v1350
        %v1352 = vpop.f32.mrf.mxu0
        %v1353 = vadd.f32 %v1264, %v1352
        %1354 = vmatmul.bf16.gmra.mxu0 %v841
        %v1355 = vpop.f32.mrf.mxu0
        %v1356 = vadd.f32 %v1267, %v1355
        %v1357 = vpop.f32.mrf.mxu0
        %v1358 = vadd.f32 %v1269, %v1357
        %1359 = vmatmul.bf16.gmra.mxu0 %v842
        %v1360 = vpop.f32.mrf.mxu0
        %v1361 = vadd.f32 %v1272, %v1360
        %v1362 = vpop.f32.mrf.mxu0
        %v1363 = vadd.f32 %v1274, %v1362
        %1364 = vmatmul.bf16.gmra.mxu0 %v843
        %v1365 = vpop.f32.mrf.mxu0
        %v1366 = vadd.f32 %v1277, %v1365
        %v1367 = vpop.f32.mrf.mxu0
        %v1368 = vadd.f32 %v1279, %v1367
        %1369 = vmatmul.bf16.gmra.mxu0 %v844
        %v1370 = vpop.f32.mrf.mxu0
        %v1371 = vadd.f32 %v1282, %v1370
        %v1372 = vpop.f32.mrf.mxu0
        %v1373 = vadd.f32 %v1284, %v1372
        %1374 = vdwg.mxu0
        %1375 = vmatpush.bf16.msra.mxu0 %v1172
        %1376 = vmatpush.bf16.msra.mxu0 %v1171
        %1377 = vmatpush.bf16.msra.mxu0 %v1170
        %1378 = vmatpush.bf16.msra.mxu0 %v1169
        %1379 = vmatpush.bf16.msra.mxu0 %v1168
        %1380 = vmatpush.bf16.msra.mxu0 %v1167
        %1381 = vmatpush.bf16.msra.mxu0 %v1166
        %1382 = vmatpush.bf16.msra.mxu0 %v1165
        %1383 = vmatmul.bf16.gmra.mxu0 %v926
        %v1384 = vpop.f32.mrf.mxu0
        %v1385 = vadd.f32 %v1296, %v1384
        %v1386 = vpop.f32.mrf.mxu0
        %v1387 = vadd.f32 %v1298, %v1386
        %1388 = vmatmul.bf16.gmra.mxu0 %v925
        %v1389 = vpop.f32.mrf.mxu0
        %v1390 = vadd.f32 %v1301, %v1389
        %v1391 = vpop.f32.mrf.mxu0
        %v1392 = vadd.f32 %v1303, %v1391
        %1393 = vmatmul.bf16.gmra.mxu0 %v927
        %v1394 = vpop.f32.mrf.mxu0
        %v1395 = vadd.f32 %v1306, %v1394
        %v1396 = vpop.f32.mrf.mxu0
        %v1397 = vadd.f32 %v1308, %v1396
        %1398 = vmatmul.bf16.gmra.mxu0 %v928
        %v1399 = vpop.f32.mrf.mxu0
        %v1400 = vadd.f32 %v1311, %v1399
        %v1401 = vpop.f32.mrf.mxu0
        %v1402 = vadd.f32 %v1313, %v1401
        %1403 = vmatmul.bf16.gmra.mxu0 %v929
        %v1404 = vpop.f32.mrf.mxu0
        %v1405 = vadd.f32 %v1316, %v1404
        %v1406 = vpop.f32.mrf.mxu0
        %v1407 = vadd.f32 %v1318, %v1406
        %1408 = vmatmul.bf16.gmra.mxu0 %v930
        %v1409 = vpop.f32.mrf.mxu0
        %v1410 = vadd.f32 %v1321, %v1409
        %v1411 = vpop.f32.mrf.mxu0
        %v1412 = vadd.f32 %v1323, %v1411
        %1413 = vmatmul.bf16.gmra.mxu0 %v931
        %v1414 = vpop.f32.mrf.mxu0
        %v1415 = vadd.f32 %v1326, %v1414
        %v1416 = vpop.f32.mrf.mxu0
        %v1417 = vadd.f32 %v1328, %v1416
        %1418 = vmatmul.bf16.gmra.mxu0 %v932
        %v1419 = vpop.f32.mrf.mxu0
        %v1420 = vadd.f32 %v1331, %v1419
        %v1421 = vpop.f32.mrf.mxu0
        %v1422 = vadd.f32 %v1333, %v1421
        %1423 = vmatmul.bf16.gmra.mxu0 %v933
        %v1424 = vpop.f32.mrf.mxu0
        %v1425 = vadd.f32 %v1336, %v1424
        %v1426 = vpop.f32.mrf.mxu0
        %v1427 = vadd.f32 %v1338, %v1426
        %1428 = vmatmul.bf16.gmra.mxu0 %v934
        %v1429 = vpop.f32.mrf.mxu0
        %v1430 = vadd.f32 %v1341, %v1429
        %v1431 = vpop.f32.mrf.mxu0
        %v1432 = vadd.f32 %v1343, %v1431
        %1433 = vmatmul.bf16.gmra.mxu0 %v935
        %v1434 = vpop.f32.mrf.mxu0
        %v1435 = vadd.f32 %v1346, %v1434
        %v1436 = vpop.f32.mrf.mxu0
        %v1437 = vadd.f32 %v1348, %v1436
        %1438 = vmatmul.bf16.gmra.mxu0 %v936
        %v1439 = vpop.f32.mrf.mxu0
        %v1440 = vadd.f32 %v1351, %v1439
        %v1441 = vpop.f32.mrf.mxu0
        %v1442 = vadd.f32 %v1353, %v1441
        %1443 = vmatmul.bf16.gmra.mxu0 %v937
        %v1444 = vpop.f32.mrf.mxu0
        %v1445 = vadd.f32 %v1356, %v1444
        %v1446 = vpop.f32.mrf.mxu0
        %v1447 = vadd.f32 %v1358, %v1446
        %1448 = vmatmul.bf16.gmra.mxu0 %v938
        %v1449 = vpop.f32.mrf.mxu0
        %v1450 = vadd.f32 %v1361, %v1449
        %v1451 = vpop.f32.mrf.mxu0
        %v1452 = vadd.f32 %v1363, %v1451
        %1453 = vmatmul.bf16.gmra.mxu0 %v939
        %v1454 = vpop.f32.mrf.mxu0
        %v1455 = vadd.f32 %v1366, %v1454
        %v1456 = vpop.f32.mrf.mxu0
        %v1457 = vadd.f32 %v1368, %v1456
        %1458 = vmatmul.bf16.gmra.mxu0 %v940
        %v1459 = vpop.f32.mrf.mxu0
        %v1460 = vadd.f32 %v1371, %v1459
        %v1461 = vpop.f32.mrf.mxu0
        %v1462 = vadd.f32 %v1373, %v1461
        %1463 = vdwg.mxu0
        %v1512 = vunpack.c.l.b16 %v957
        %v1513 = vunpack.c.l.b16 %v958
        %v1514 = vunpack.c.l.b16 %v959
        %v1515 = vunpack.c.l.b16 %v960
        %v1516 = vunpack.c.l.b16 %v961
        %v1517 = vunpack.c.l.b16 %v962
        %v1518 = vunpack.c.l.b16 %v963
        %v1519 = vunpack.c.l.b16 %v964
        %v1520 = vunpack.c.l.b16 %v965
        %v1521 = vunpack.c.l.b16 %v966
        %v1522 = vunpack.c.l.b16 %v967
        %v1523 = vunpack.c.l.b16 %v968
        %v1524 = vunpack.c.l.b16 %v969
        %v1525 = vunpack.c.l.b16 %v970
        %v1526 = vunpack.c.l.b16 %v971
        %v1527 = vunpack.c.l.b16 %v972
        %v1528 = vunpack.c.l.b16 %v973
        %v1529 = vunpack.c.l.b16 %v974
        %v1530 = vunpack.c.l.b16 %v975
        %v1531 = vunpack.c.l.b16 %v976
        %v1532 = vunpack.c.l.b16 %v977
        %v1533 = vunpack.c.l.b16 %v978
        %v1534 = vunpack.c.l.b16 %v979
        %v1535 = vunpack.c.l.b16 %v980
        %v1536 = vunpack.c.l.b16 %v981
        %v1537 = vunpack.c.l.b16 %v982
        %v1538 = vunpack.c.l.b16 %v983
        %v1539 = vunpack.c.l.b16 %v984
        %v1540 = vunpack.c.l.b16 %v985
        %v1541 = vunpack.c.l.b16 %v986
        %v1542 = vunpack.c.l.b16 %v987
        %v1543 = vunpack.c.l.b16 %v988
        %v1544 = vunpack.c.l.b16 %v989
        %v1545 = vunpack.c.l.b16 %v990
        %v1546 = vunpack.c.l.b16 %v991
        %v1547 = vunpack.c.l.b16 %v992
        %v1548 = vunpack.c.l.b16 %v993
        %v1549 = vunpack.c.l.b16 %v994
        %v1550 = vunpack.c.l.b16 %v995
        %v1551 = vunpack.c.l.b16 %v996
        %v1552 = vunpack.c.l.b16 %v997
        %v1553 = vunpack.c.l.b16 %v998
        %v1554 = vunpack.c.l.b16 %v999
        %v1555 = vunpack.c.l.b16 %v1000
        %v1556 = vunpack.c.l.b16 %v1001
        %v1557 = vunpack.c.l.b16 %v1002
        %v1558 = vunpack.c.l.b16 %v1003
        %v1559 = vunpack.c.l.b16 %v1004
        %v1560 = vpack.c.b16 %v1513, %v1512
        %v1561 = vpack.c.b16 %v1515, %v1514
        %v1562 = vpack.c.b16 %v1517, %v1516
        %v1563 = vpack.c.b16 %v1519, %v1518
        %v1564 = vpack.c.b16 %v1521, %v1520
        %v1565 = vpack.c.b16 %v1523, %v1522
        %v1566 = vpack.c.b16 %v1525, %v1524
        %v1567 = vpack.c.b16 %v1527, %v1526
        %v1568 = vpack.c.b16 %v1529, %v1528
        %v1569 = vpack.c.b16 %v1531, %v1530
        %v1570 = vpack.c.b16 %v1533, %v1532
        %v1571 = vpack.c.b16 %v1535, %v1534
        %v1572 = vpack.c.b16 %v1537, %v1536
        %v1573 = vpack.c.b16 %v1539, %v1538
        %v1574 = vpack.c.b16 %v1541, %v1540
        %v1575 = vpack.c.b16 %v1543, %v1542
        %v1576 = vpack.c.b16 %v1545, %v1544
        %v1577 = vpack.c.b16 %v1547, %v1546
        %v1578 = vpack.c.b16 %v1549, %v1548
        %v1579 = vpack.c.b16 %v1551, %v1550
        %v1580 = vpack.c.b16 %v1553, %v1552
        %v1581 = vpack.c.b16 %v1555, %v1554
        %v1582 = vpack.c.b16 %v1557, %v1556
        %v1583 = vpack.c.b16 %v1559, %v1558
        %1608 = vmatpush.bf16.msra.mxu0 %v1567
        %1609 = vmatpush.bf16.msra.mxu0 %v1566
        %1610 = vmatpush.bf16.msra.mxu0 %v1565
        %1611 = vmatpush.bf16.msra.mxu0 %v1564
        %1612 = vmatpush.bf16.msra.mxu0 %v1563
        %1613 = vmatpush.bf16.msra.mxu0 %v1562
        %1614 = vmatpush.bf16.msra.mxu0 %v1561
        %1615 = vmatpush.bf16.msra.mxu0 %v1560
        %1616 = vmatmul.bf16.gmra.mxu0 %v733
        %v1617 = vpop.f32.mrf.mxu0
        %v1618 = vadd.f32 %v1385, %v1617
        %v1619 = vpop.f32.mrf.mxu0
        %v1620 = vadd.f32 %v1387, %v1619
        %1621 = vmatmul.bf16.gmra.mxu0 %v734
        %v1622 = vpop.f32.mrf.mxu0
        %v1623 = vadd.f32 %v1390, %v1622
        %v1624 = vpop.f32.mrf.mxu0
        %v1625 = vadd.f32 %v1392, %v1624
        %1626 = vmatmul.bf16.gmra.mxu0 %v733
        %v1627 = vpop.f32.mrf.mxu0
        %v1628 = vadd.f32 %v1395, %v1627
        %v1629 = vpop.f32.mrf.mxu0
        %v1630 = vadd.f32 %v1397, %v1629
        %1631 = vmatmul.bf16.gmra.mxu0 %v735
        %v1632 = vpop.f32.mrf.mxu0
        %v1633 = vadd.f32 %v1400, %v1632
        %v1634 = vpop.f32.mrf.mxu0
        %v1635 = vadd.f32 %v1402, %v1634
        %1636 = vmatmul.bf16.gmra.mxu0 %v736
        %v1637 = vpop.f32.mrf.mxu0
        %v1638 = vadd.f32 %v1405, %v1637
        %v1639 = vpop.f32.mrf.mxu0
        %v1640 = vadd.f32 %v1407, %v1639
        %1641 = vmatmul.bf16.gmra.mxu0 %v737
        %v1642 = vpop.f32.mrf.mxu0
        %v1643 = vadd.f32 %v1410, %v1642
        %v1644 = vpop.f32.mrf.mxu0
        %v1645 = vadd.f32 %v1412, %v1644
        %1646 = vmatmul.bf16.gmra.mxu0 %v738
        %v1647 = vpop.f32.mrf.mxu0
        %v1648 = vadd.f32 %v1415, %v1647
        %v1649 = vpop.f32.mrf.mxu0
        %v1650 = vadd.f32 %v1417, %v1649
        %1651 = vmatmul.bf16.gmra.mxu0 %v739
        %v1652 = vpop.f32.mrf.mxu0
        %v1653 = vadd.f32 %v1420, %v1652
        %v1654 = vpop.f32.mrf.mxu0
        %v1655 = vadd.f32 %v1422, %v1654
        %1656 = vmatmul.bf16.gmra.mxu0 %v740
        %v1657 = vpop.f32.mrf.mxu0
        %v1658 = vadd.f32 %v1425, %v1657
        %v1659 = vpop.f32.mrf.mxu0
        %v1660 = vadd.f32 %v1427, %v1659
        %1661 = vmatmul.bf16.gmra.mxu0 %v741
        %v1662 = vpop.f32.mrf.mxu0
        %v1663 = vadd.f32 %v1430, %v1662
        %v1664 = vpop.f32.mrf.mxu0
        %v1665 = vadd.f32 %v1432, %v1664
        %1666 = vmatmul.bf16.gmra.mxu0 %v742
        %v1667 = vpop.f32.mrf.mxu0
        %v1668 = vadd.f32 %v1435, %v1667
        %v1669 = vpop.f32.mrf.mxu0
        %v1670 = vadd.f32 %v1437, %v1669
        %1671 = vmatmul.bf16.gmra.mxu0 %v743
        %v1672 = vpop.f32.mrf.mxu0
        %v1673 = vadd.f32 %v1440, %v1672
        %v1674 = vpop.f32.mrf.mxu0
        %v1675 = vadd.f32 %v1442, %v1674
        %1676 = vmatmul.bf16.gmra.mxu0 %v744
        %v1677 = vpop.f32.mrf.mxu0
        %v1678 = vadd.f32 %v1445, %v1677
        %v1679 = vpop.f32.mrf.mxu0
        %v1680 = vadd.f32 %v1447, %v1679
        %1681 = vmatmul.bf16.gmra.mxu0 %v745
        %v1682 = vpop.f32.mrf.mxu0
        %v1683 = vadd.f32 %v1450, %v1682
        %v1684 = vpop.f32.mrf.mxu0
        %v1685 = vadd.f32 %v1452, %v1684
        %1686 = vmatmul.bf16.gmra.mxu0 %v746
        %v1687 = vpop.f32.mrf.mxu0
        %v1688 = vadd.f32 %v1455, %v1687
        %v1689 = vpop.f32.mrf.mxu0
        %v1690 = vadd.f32 %v1457, %v1689
        %1691 = vmatmul.bf16.gmra.mxu0 %v747
        %v1692 = vpop.f32.mrf.mxu0
        %v1693 = vadd.f32 %v1460, %v1692
        %v1694 = vpop.f32.mrf.mxu0
        %v1695 = vadd.f32 %v1462, %v1694
        %1696 = vdwg.mxu0
        %1697 = vmatpush.bf16.msra.mxu0 %v1575
        %1698 = vmatpush.bf16.msra.mxu0 %v1574
        %1699 = vmatpush.bf16.msra.mxu0 %v1573
        %1700 = vmatpush.bf16.msra.mxu0 %v1572
        %1701 = vmatpush.bf16.msra.mxu0 %v1571
        %1702 = vmatpush.bf16.msra.mxu0 %v1570
        %1703 = vmatpush.bf16.msra.mxu0 %v1569
        %1704 = vmatpush.bf16.msra.mxu0 %v1568
        %1705 = vmatmul.bf16.gmra.mxu0 %v829
        %v1706 = vpop.f32.mrf.mxu0
        %v1707 = vadd.f32 %v1618, %v1706
        %v1708 = vpop.f32.mrf.mxu0
        %v1709 = vadd.f32 %v1620, %v1708
        %1710 = vmatmul.bf16.gmra.mxu0 %v830
        %v1711 = vpop.f32.mrf.mxu0
        %v1712 = vadd.f32 %v1623, %v1711
        %v1713 = vpop.f32.mrf.mxu0
        %v1714 = vadd.f32 %v1625, %v1713
        %1715 = vmatmul.bf16.gmra.mxu0 %v829
        %v1716 = vpop.f32.mrf.mxu0
        %v1717 = vadd.f32 %v1628, %v1716
        %v1718 = vpop.f32.mrf.mxu0
        %v1719 = vadd.f32 %v1630, %v1718
        %1720 = vmatmul.bf16.gmra.mxu0 %v831
        %v1721 = vpop.f32.mrf.mxu0
        %v1722 = vadd.f32 %v1633, %v1721
        %v1723 = vpop.f32.mrf.mxu0
        %v1724 = vadd.f32 %v1635, %v1723
        %1725 = vmatmul.bf16.gmra.mxu0 %v832
        %v1726 = vpop.f32.mrf.mxu0
        %v1727 = vadd.f32 %v1638, %v1726
        %v1728 = vpop.f32.mrf.mxu0
        %v1729 = vadd.f32 %v1640, %v1728
        %1730 = vmatmul.bf16.gmra.mxu0 %v833
        %v1731 = vpop.f32.mrf.mxu0
        %v1732 = vadd.f32 %v1643, %v1731
        %v1733 = vpop.f32.mrf.mxu0
        %v1734 = vadd.f32 %v1645, %v1733
        %1735 = vmatmul.bf16.gmra.mxu0 %v834
        %v1736 = vpop.f32.mrf.mxu0
        %v1737 = vadd.f32 %v1648, %v1736
        %v1738 = vpop.f32.mrf.mxu0
        %v1739 = vadd.f32 %v1650, %v1738
        %1740 = vmatmul.bf16.gmra.mxu0 %v835
        %v1741 = vpop.f32.mrf.mxu0
        %v1742 = vadd.f32 %v1653, %v1741
        %v1743 = vpop.f32.mrf.mxu0
        %v1744 = vadd.f32 %v1655, %v1743
        %1745 = vmatmul.bf16.gmra.mxu0 %v836
        %v1746 = vpop.f32.mrf.mxu0
        %v1747 = vadd.f32 %v1658, %v1746
        %v1748 = vpop.f32.mrf.mxu0
        %v1749 = vadd.f32 %v1660, %v1748
        %1750 = vmatmul.bf16.gmra.mxu0 %v837
        %v1751 = vpop.f32.mrf.mxu0
        %v1752 = vadd.f32 %v1663, %v1751
        %v1753 = vpop.f32.mrf.mxu0
        %v1754 = vadd.f32 %v1665, %v1753
        %1755 = vmatmul.bf16.gmra.mxu0 %v838
        %v1756 = vpop.f32.mrf.mxu0
        %v1757 = vadd.f32 %v1668, %v1756
        %v1758 = vpop.f32.mrf.mxu0
        %v1759 = vadd.f32 %v1670, %v1758
        %1760 = vmatmul.bf16.gmra.mxu0 %v839
        %v1761 = vpop.f32.mrf.mxu0
        %v1762 = vadd.f32 %v1673, %v1761
        %v1763 = vpop.f32.mrf.mxu0
        %v1764 = vadd.f32 %v1675, %v1763
        %1765 = vmatmul.bf16.gmra.mxu0 %v840
        %v1766 = vpop.f32.mrf.mxu0
        %v1767 = vadd.f32 %v1678, %v1766
        %v1768 = vpop.f32.mrf.mxu0
        %v1769 = vadd.f32 %v1680, %v1768
        %1770 = vmatmul.bf16.gmra.mxu0 %v841
        %v1771 = vpop.f32.mrf.mxu0
        %v1772 = vadd.f32 %v1683, %v1771
        %v1773 = vpop.f32.mrf.mxu0
        %v1774 = vadd.f32 %v1685, %v1773
        %1775 = vmatmul.bf16.gmra.mxu0 %v842
        %v1776 = vpop.f32.mrf.mxu0
        %v1777 = vadd.f32 %v1688, %v1776
        %v1778 = vpop.f32.mrf.mxu0
        %v1779 = vadd.f32 %v1690, %v1778
        %1780 = vmatmul.bf16.gmra.mxu0 %v843
        %v1781 = vpop.f32.mrf.mxu0
        %v1782 = vadd.f32 %v1693, %v1781
        %v1783 = vpop.f32.mrf.mxu0
        %v1784 = vadd.f32 %v1695, %v1783
        %1785 = vdwg.mxu0
        %1786 = vmatpush.bf16.msra.mxu0 %v1583
        %1787 = vmatpush.bf16.msra.mxu0 %v1582
        %1788 = vmatpush.bf16.msra.mxu0 %v1581
        %1789 = vmatpush.bf16.msra.mxu0 %v1580
        %1790 = vmatpush.bf16.msra.mxu0 %v1579
        %1791 = vmatpush.bf16.msra.mxu0 %v1578
        %1792 = vmatpush.bf16.msra.mxu0 %v1577
        %1793 = vmatpush.bf16.msra.mxu0 %v1576
        %1794 = vmatmul.bf16.gmra.mxu0 %v925
        %v1795 = vpop.f32.mrf.mxu0
        %v1796 = vadd.f32 %v1707, %v1795
        %v1797 = vpop.f32.mrf.mxu0
        %v1798 = vadd.f32 %v1709, %v1797
        %1799 = vmatmul.bf16.gmra.mxu0 %v926
        %v1800 = vpop.f32.mrf.mxu0
        %v1801 = vadd.f32 %v1712, %v1800
        %v1802 = vpop.f32.mrf.mxu0
        %v1803 = vadd.f32 %v1714, %v1802
        %1804 = vmatmul.bf16.gmra.mxu0 %v925
        %v1805 = vpop.f32.mrf.mxu0
        %v1806 = vadd.f32 %v1717, %v1805
        %v1807 = vpop.f32.mrf.mxu0
        %v1808 = vadd.f32 %v1719, %v1807
        %1809 = vmatmul.bf16.gmra.mxu0 %v927
        %v1810 = vpop.f32.mrf.mxu0
        %v1811 = vadd.f32 %v1722, %v1810
        %v1812 = vpop.f32.mrf.mxu0
        %v1813 = vadd.f32 %v1724, %v1812
        %1814 = vmatmul.bf16.gmra.mxu0 %v928
        %v1815 = vpop.f32.mrf.mxu0
        %v1816 = vadd.f32 %v1727, %v1815
        %v1817 = vpop.f32.mrf.mxu0
        %v1818 = vadd.f32 %v1729, %v1817
        %1819 = vmatmul.bf16.gmra.mxu0 %v929
        %v1820 = vpop.f32.mrf.mxu0
        %v1821 = vadd.f32 %v1732, %v1820
        %v1822 = vpop.f32.mrf.mxu0
        %v1823 = vadd.f32 %v1734, %v1822
        %1824 = vmatmul.bf16.gmra.mxu0 %v930
        %v1825 = vpop.f32.mrf.mxu0
        %v1826 = vadd.f32 %v1737, %v1825
        %v1827 = vpop.f32.mrf.mxu0
        %v1828 = vadd.f32 %v1739, %v1827
        %1829 = vmatmul.bf16.gmra.mxu0 %v931
        %v1830 = vpop.f32.mrf.mxu0
        %v1831 = vadd.f32 %v1742, %v1830
        %v1832 = vpop.f32.mrf.mxu0
        %v1833 = vadd.f32 %v1744, %v1832
        %1834 = vmatmul.bf16.gmra.mxu0 %v932
        %v1835 = vpop.f32.mrf.mxu0
        %v1836 = vadd.f32 %v1747, %v1835
        %v1837 = vpop.f32.mrf.mxu0
        %v1838 = vadd.f32 %v1749, %v1837
        %1839 = vmatmul.bf16.gmra.mxu0 %v933
        %v1840 = vpop.f32.mrf.mxu0
        %v1841 = vadd.f32 %v1752, %v1840
        %v1842 = vpop.f32.mrf.mxu0
        %v1843 = vadd.f32 %v1754, %v1842
        %1844 = vmatmul.bf16.gmra.mxu0 %v934
        %v1845 = vpop.f32.mrf.mxu0
        %v1846 = vadd.f32 %v1757, %v1845
        %v1847 = vpop.f32.mrf.mxu0
        %v1848 = vadd.f32 %v1759, %v1847
        %1849 = vmatmul.bf16.gmra.mxu0 %v935
        %v1850 = vpop.f32.mrf.mxu0
        %v1851 = vadd.f32 %v1762, %v1850
        %v1852 = vpop.f32.mrf.mxu0
        %v1853 = vadd.f32 %v1764, %v1852
        %1854 = vmatmul.bf16.gmra.mxu0 %v936
        %v1855 = vpop.f32.mrf.mxu0
        %v1856 = vadd.f32 %v1767, %v1855
        %v1857 = vpop.f32.mrf.mxu0
        %v1858 = vadd.f32 %v1769, %v1857
        %1859 = vmatmul.bf16.gmra.mxu0 %v937
        %v1860 = vpop.f32.mrf.mxu0
        %v1861 = vadd.f32 %v1772, %v1860
        %v1862 = vpop.f32.mrf.mxu0
        %v1863 = vadd.f32 %v1774, %v1862
        %1864 = vmatmul.bf16.gmra.mxu0 %v938
        %v1865 = vpop.f32.mrf.mxu0
        %v1866 = vadd.f32 %v1777, %v1865
        %v1867 = vpop.f32.mrf.mxu0
        %v1868 = vadd.f32 %v1779, %v1867
        %1869 = vmatmul.bf16.gmra.mxu0 %v939
        %v1870 = vpop.f32.mrf.mxu0
        %v1871 = vadd.f32 %v1782, %v1870
        %v1872 = vpop.f32.mrf.mxu0
        %v1873 = vadd.f32 %v1784, %v1872
        %1874 = vdwg.mxu0
        %v1875 = vld [vmem:[#allocation5 + $0x180] sm:$0xf]
        %v1876 = vld [vmem:[#allocation5 + $0x184] sm:$0xf]
        %v1877 = vld [vmem:[#allocation5 + $0x188] sm:$0xf]
        %v1878 = vld [vmem:[#allocation5 + $0x18c] sm:$0xf]
        %v1879 = vld [vmem:[#allocation5 + $0x190] sm:$0xf]
        %v1880 = vld [vmem:[#allocation5 + $0x194] sm:$0xf]
        %v1881 = vld [vmem:[#allocation5 + $0x198] sm:$0xf]
        %v1882 = vld [vmem:[#allocation5 + $0x19c] sm:$0xf]
        %v1883 = vld [vmem:[#allocation5 + $0x1a0] sm:$0xf]
        %v1884 = vld [vmem:[#allocation5 + $0x1a4] sm:$0xf]
        %v1885 = vld [vmem:[#allocation5 + $0x1a8] sm:$0xf]
        %v1886 = vld [vmem:[#allocation5 + $0x1ac] sm:$0xf]
        %v1887 = vld [vmem:[#allocation5 + $0x1b0] sm:$0xf]
        %v1888 = vld [vmem:[#allocation5 + $0x1b4] sm:$0xf]
        %v1889 = vld [vmem:[#allocation5 + $0x1b8] sm:$0xf]
        %v1890 = vld [vmem:[#allocation5 + $0x1bc] sm:$0xf]
        %v1891 = vld [vmem:[#allocation5 + $0x1c0] sm:$0xf]
        %v1892 = vld [vmem:[#allocation5 + $0x1c4] sm:$0xf]
        %v1893 = vld [vmem:[#allocation5 + $0x1c8] sm:$0xf]
        %v1894 = vld [vmem:[#allocation5 + $0x1cc] sm:$0xf]
        %v1895 = vld [vmem:[#allocation5 + $0x1d0] sm:$0xf]
        %v1896 = vld [vmem:[#allocation5 + $0x1d4] sm:$0xf]
        %v1897 = vld [vmem:[#allocation5 + $0x1d8] sm:$0xf]
        %v1898 = vld [vmem:[#allocation5 + $0x1dc] sm:$0xf]
        %v1899 = vld [vmem:[#allocation5 + $0x1e0] sm:$0xf]
        %v1900 = vld [vmem:[#allocation5 + $0x1e4] sm:$0xf]
        %v1901 = vld [vmem:[#allocation5 + $0x1e8] sm:$0xf]
        %v1902 = vld [vmem:[#allocation5 + $0x1ec] sm:$0xf]
        %v1903 = vld [vmem:[#allocation5 + $0x1f0] sm:$0xf]
        %v1904 = vld [vmem:[#allocation5 + $0x1f4] sm:$0xf]
        %v1905 = vld [vmem:[#allocation5 + $0x1f8] sm:$0xf]
        %v1906 = vld [vmem:[#allocation5 + $0x1fc] sm:$0xf]
        %v1907 = vld [vmem:[#allocation5 + $0x200] sm:$0xf]
        %v1908 = vld [vmem:[#allocation5 + $0x204] sm:$0xf]
        %v1909 = vld [vmem:[#allocation5 + $0x208] sm:$0xf]
        %v1910 = vld [vmem:[#allocation5 + $0x20c] sm:$0xf]
        %v1911 = vld [vmem:[#allocation5 + $0x210] sm:$0xf]
        %v1912 = vld [vmem:[#allocation5 + $0x214] sm:$0xf]
        %v1913 = vld [vmem:[#allocation5 + $0x218] sm:$0xf]
        %v1914 = vld [vmem:[#allocation5 + $0x21c] sm:$0xf]
        %v1915 = vld [vmem:[#allocation5 + $0x220] sm:$0xf]
        %v1916 = vld [vmem:[#allocation5 + $0x224] sm:$0xf]
        %v1917 = vld [vmem:[#allocation5 + $0x228] sm:$0xf]
        %v1918 = vld [vmem:[#allocation5 + $0x22c] sm:$0xf]
        %v1919 = vld [vmem:[#allocation5 + $0x230] sm:$0xf]
        %v1920 = vld [vmem:[#allocation5 + $0x234] sm:$0xf]
        %v1921 = vld [vmem:[#allocation5 + $0x238] sm:$0xf]
        %v1922 = vld [vmem:[#allocation5 + $0x23c] sm:$0xf]
        %v1971 = vunpack.c.l.b16 %v1875
        %v1972 = vunpack.c.l.b16 %v1876
        %v1973 = vunpack.c.l.b16 %v1877
        %v1974 = vunpack.c.l.b16 %v1878
        %v1975 = vunpack.c.l.b16 %v1879
        %v1976 = vunpack.c.l.b16 %v1880
        %v1977 = vunpack.c.l.b16 %v1881
        %v1978 = vunpack.c.l.b16 %v1882
        %v1979 = vunpack.c.l.b16 %v1883
        %v1980 = vunpack.c.l.b16 %v1884
        %v1981 = vunpack.c.l.b16 %v1885
        %v1982 = vunpack.c.l.b16 %v1886
        %v1983 = vunpack.c.l.b16 %v1887
        %v1984 = vunpack.c.l.b16 %v1888
        %v1985 = vunpack.c.l.b16 %v1889
        %v1986 = vunpack.c.l.b16 %v1890
        %v1987 = vunpack.c.l.b16 %v1891
        %v1988 = vunpack.c.l.b16 %v1892
        %v1989 = vunpack.c.l.b16 %v1893
        %v1990 = vunpack.c.l.b16 %v1894
        %v1991 = vunpack.c.l.b16 %v1895
        %v1992 = vunpack.c.l.b16 %v1896
        %v1993 = vunpack.c.l.b16 %v1897
        %v1994 = vunpack.c.l.b16 %v1898
        %v1995 = vunpack.c.l.b16 %v1899
        %v1996 = vunpack.c.l.b16 %v1900
        %v1997 = vunpack.c.l.b16 %v1901
        %v1998 = vunpack.c.l.b16 %v1902
        %v1999 = vunpack.c.l.b16 %v1903
        %v2000 = vunpack.c.l.b16 %v1904
        %v2001 = vunpack.c.l.b16 %v1905
        %v2002 = vunpack.c.l.b16 %v1906
        %v2003 = vunpack.c.l.b16 %v1907
        %v2004 = vunpack.c.l.b16 %v1908
        %v2005 = vunpack.c.l.b16 %v1909
        %v2006 = vunpack.c.l.b16 %v1910
        %v2007 = vunpack.c.l.b16 %v1911
        %v2008 = vunpack.c.l.b16 %v1912
        %v2009 = vunpack.c.l.b16 %v1913
        %v2010 = vunpack.c.l.b16 %v1914
        %v2011 = vunpack.c.l.b16 %v1915
        %v2012 = vunpack.c.l.b16 %v1916
        %v2013 = vunpack.c.l.b16 %v1917
        %v2014 = vunpack.c.l.b16 %v1918
        %v2015 = vunpack.c.l.b16 %v1919
        %v2016 = vunpack.c.l.b16 %v1920
        %v2017 = vunpack.c.l.b16 %v1921
        %v2018 = vunpack.c.l.b16 %v1922
        %v2019 = vpack.c.b16 %v1972, %v1971
        %v2020 = vpack.c.b16 %v1974, %v1973
        %v2021 = vpack.c.b16 %v1976, %v1975
        %v2022 = vpack.c.b16 %v1978, %v1977
        %v2023 = vpack.c.b16 %v1980, %v1979
        %v2024 = vpack.c.b16 %v1982, %v1981
        %v2025 = vpack.c.b16 %v1984, %v1983
        %v2026 = vpack.c.b16 %v1986, %v1985
        %v2027 = vpack.c.b16 %v1988, %v1987
        %v2028 = vpack.c.b16 %v1990, %v1989
        %v2029 = vpack.c.b16 %v1992, %v1991
        %v2030 = vpack.c.b16 %v1994, %v1993
        %v2031 = vpack.c.b16 %v1996, %v1995
        %v2032 = vpack.c.b16 %v1998, %v1997
        %v2033 = vpack.c.b16 %v2000, %v1999
        %v2034 = vpack.c.b16 %v2002, %v2001
        %v2035 = vpack.c.b16 %v2004, %v2003
        %v2036 = vpack.c.b16 %v2006, %v2005
        %v2037 = vpack.c.b16 %v2008, %v2007
        %v2038 = vpack.c.b16 %v2010, %v2009
        %v2039 = vpack.c.b16 %v2012, %v2011
        %v2040 = vpack.c.b16 %v2014, %v2013
        %v2041 = vpack.c.b16 %v2016, %v2015
        %v2042 = vpack.c.b16 %v2018, %v2017
        %2067 = vmatpush.bf16.msra.mxu0 %v2026
        %2068 = vmatpush.bf16.msra.mxu0 %v2025
        %2069 = vmatpush.bf16.msra.mxu0 %v2024
        %2070 = vmatpush.bf16.msra.mxu0 %v2023
        %2071 = vmatpush.bf16.msra.mxu0 %v2022
        %2072 = vmatpush.bf16.msra.mxu0 %v2021
        %2073 = vmatpush.bf16.msra.mxu0 %v2020
        %2074 = vmatpush.bf16.msra.mxu0 %v2019
        %2075 = vmatmul.bf16.gmra.mxu0 %v733
        %v2076 = vpop.f32.mrf.mxu0
        %v2077 = vadd.f32 0.0, %v2076
        %v2078 = vpop.f32.mrf.mxu0
        %v2079 = vadd.f32 0.0, %v2078
        %2080 = vmatmul.bf16.gmra.mxu0 %v735
        %v2081 = vpop.f32.mrf.mxu0
        %v2082 = vadd.f32 0.0, %v2081
        %v2083 = vpop.f32.mrf.mxu0
        %v2084 = vadd.f32 0.0, %v2083
        %2085 = vmatmul.bf16.gmra.mxu0 %v736
        %v2086 = vpop.f32.mrf.mxu0
        %v2087 = vadd.f32 0.0, %v2086
        %v2088 = vpop.f32.mrf.mxu0
        %v2089 = vadd.f32 0.0, %v2088
        %2090 = vmatmul.bf16.gmra.mxu0 %v737
        %v2091 = vpop.f32.mrf.mxu0
        %v2092 = vadd.f32 0.0, %v2091
        %v2093 = vpop.f32.mrf.mxu0
        %v2094 = vadd.f32 0.0, %v2093
        %2095 = vmatmul.bf16.gmra.mxu0 %v738
        %v2096 = vpop.f32.mrf.mxu0
        %v2097 = vadd.f32 0.0, %v2096
        %v2098 = vpop.f32.mrf.mxu0
        %v2099 = vadd.f32 0.0, %v2098
        %2100 = vmatmul.bf16.gmra.mxu0 %v739
        %v2101 = vpop.f32.mrf.mxu0
        %v2102 = vadd.f32 0.0, %v2101
        %v2103 = vpop.f32.mrf.mxu0
        %v2104 = vadd.f32 0.0, %v2103
        %2105 = vmatmul.bf16.gmra.mxu0 %v740
        %v2106 = vpop.f32.mrf.mxu0
        %v2107 = vadd.f32 0.0, %v2106
        %v2108 = vpop.f32.mrf.mxu0
        %v2109 = vadd.f32 0.0, %v2108
        %2110 = vmatmul.bf16.gmra.mxu0 %v741
        %v2111 = vpop.f32.mrf.mxu0
        %v2112 = vadd.f32 0.0, %v2111
        %v2113 = vpop.f32.mrf.mxu0
        %v2114 = vadd.f32 0.0, %v2113
        %2115 = vmatmul.bf16.gmra.mxu0 %v742
        %v2116 = vpop.f32.mrf.mxu0
        %v2117 = vadd.f32 0.0, %v2116
        %v2118 = vpop.f32.mrf.mxu0
        %v2119 = vadd.f32 0.0, %v2118
        %2120 = vmatmul.bf16.gmra.mxu0 %v743
        %v2121 = vpop.f32.mrf.mxu0
        %v2122 = vadd.f32 0.0, %v2121
        %v2123 = vpop.f32.mrf.mxu0
        %v2124 = vadd.f32 0.0, %v2123
        %2125 = vmatmul.bf16.gmra.mxu0 %v744
        %v2126 = vpop.f32.mrf.mxu0
        %v2127 = vadd.f32 0.0, %v2126
        %v2128 = vpop.f32.mrf.mxu0
        %v2129 = vadd.f32 0.0, %v2128
        %2130 = vmatmul.bf16.gmra.mxu0 %v745
        %v2131 = vpop.f32.mrf.mxu0
        %v2132 = vadd.f32 0.0, %v2131
        %v2133 = vpop.f32.mrf.mxu0
        %v2134 = vadd.f32 0.0, %v2133
        %2135 = vmatmul.bf16.gmra.mxu0 %v746
        %v2136 = vpop.f32.mrf.mxu0
        %v2137 = vadd.f32 0.0, %v2136
        %v2138 = vpop.f32.mrf.mxu0
        %v2139 = vadd.f32 0.0, %v2138
        %2140 = vmatmul.bf16.gmra.mxu0 %v747
        %v2141 = vpop.f32.mrf.mxu0
        %v2142 = vadd.f32 0.0, %v2141
        %v2143 = vpop.f32.mrf.mxu0
        %v2144 = vadd.f32 0.0, %v2143
        %2145 = vmatmul.bf16.gmra.mxu0 %v748
        %v2146 = vpop.f32.mrf.mxu0
        %v2147 = vadd.f32 0.0, %v2146
        %v2148 = vpop.f32.mrf.mxu0
        %v2149 = vadd.f32 0.0, %v2148
        %2150 = vmatmul.bf16.gmra.mxu0 %v747
        %v2151 = vpop.f32.mrf.mxu0
        %v2152 = vadd.f32 0.0, %v2151
        %v2153 = vpop.f32.mrf.mxu0
        %v2154 = vadd.f32 0.0, %v2153
        %2155 = vdwg.mxu0
        %2156 = vmatpush.bf16.msra.mxu0 %v2034
        %2157 = vmatpush.bf16.msra.mxu0 %v2033
        %2158 = vmatpush.bf16.msra.mxu0 %v2032
        %2159 = vmatpush.bf16.msra.mxu0 %v2031
        %2160 = vmatpush.bf16.msra.mxu0 %v2030
        %2161 = vmatpush.bf16.msra.mxu0 %v2029
        %2162 = vmatpush.bf16.msra.mxu0 %v2028
        %2163 = vmatpush.bf16.msra.mxu0 %v2027
        %2164 = vmatmul.bf16.gmra.mxu0 %v829
        %v2165 = vpop.f32.mrf.mxu0
        %v2166 = vadd.f32 %v2077, %v2165
        %v2167 = vpop.f32.mrf.mxu0
        %v2168 = vadd.f32 %v2079, %v2167
        %2169 = vmatmul.bf16.gmra.mxu0 %v831
        %v2170 = vpop.f32.mrf.mxu0
        %v2171 = vadd.f32 %v2082, %v2170
        %v2172 = vpop.f32.mrf.mxu0
        %v2173 = vadd.f32 %v2084, %v2172
        %2174 = vmatmul.bf16.gmra.mxu0 %v832
        %v2175 = vpop.f32.mrf.mxu0
        %v2176 = vadd.f32 %v2087, %v2175
        %v2177 = vpop.f32.mrf.mxu0
        %v2178 = vadd.f32 %v2089, %v2177
        %2179 = vmatmul.bf16.gmra.mxu0 %v833
        %v2180 = vpop.f32.mrf.mxu0
        %v2181 = vadd.f32 %v2092, %v2180
        %v2182 = vpop.f32.mrf.mxu0
        %v2183 = vadd.f32 %v2094, %v2182
        %2184 = vmatmul.bf16.gmra.mxu0 %v834
        %v2185 = vpop.f32.mrf.mxu0
        %v2186 = vadd.f32 %v2097, %v2185
        %v2187 = vpop.f32.mrf.mxu0
        %v2188 = vadd.f32 %v2099, %v2187
        %2189 = vmatmul.bf16.gmra.mxu0 %v835
        %v2190 = vpop.f32.mrf.mxu0
        %v2191 = vadd.f32 %v2102, %v2190
        %v2192 = vpop.f32.mrf.mxu0
        %v2193 = vadd.f32 %v2104, %v2192
        %2194 = vmatmul.bf16.gmra.mxu0 %v836
        %v2195 = vpop.f32.mrf.mxu0
        %v2196 = vadd.f32 %v2107, %v2195
        %v2197 = vpop.f32.mrf.mxu0
        %v2198 = vadd.f32 %v2109, %v2197
        %2199 = vmatmul.bf16.gmra.mxu0 %v837
        %v2200 = vpop.f32.mrf.mxu0
        %v2201 = vadd.f32 %v2112, %v2200
        %v2202 = vpop.f32.mrf.mxu0
        %v2203 = vadd.f32 %v2114, %v2202
        %2204 = vmatmul.bf16.gmra.mxu0 %v838
        %v2205 = vpop.f32.mrf.mxu0
        %v2206 = vadd.f32 %v2117, %v2205
        %v2207 = vpop.f32.mrf.mxu0
        %v2208 = vadd.f32 %v2119, %v2207
        %2209 = vmatmul.bf16.gmra.mxu0 %v839
        %v2210 = vpop.f32.mrf.mxu0
        %v2211 = vadd.f32 %v2122, %v2210
        %v2212 = vpop.f32.mrf.mxu0
        %v2213 = vadd.f32 %v2124, %v2212
        %2214 = vmatmul.bf16.gmra.mxu0 %v840
        %v2215 = vpop.f32.mrf.mxu0
        %v2216 = vadd.f32 %v2127, %v2215
        %v2217 = vpop.f32.mrf.mxu0
        %v2218 = vadd.f32 %v2129, %v2217
        %2219 = vmatmul.bf16.gmra.mxu0 %v841
        %v2220 = vpop.f32.mrf.mxu0
        %v2221 = vadd.f32 %v2132, %v2220
        %v2222 = vpop.f32.mrf.mxu0
        %v2223 = vadd.f32 %v2134, %v2222
        %2224 = vmatmul.bf16.gmra.mxu0 %v842
        %v2225 = vpop.f32.mrf.mxu0
        %v2226 = vadd.f32 %v2137, %v2225
        %v2227 = vpop.f32.mrf.mxu0
        %v2228 = vadd.f32 %v2139, %v2227
        %2229 = vmatmul.bf16.gmra.mxu0 %v843
        %v2230 = vpop.f32.mrf.mxu0
        %v2231 = vadd.f32 %v2142, %v2230
        %v2232 = vpop.f32.mrf.mxu0
        %v2233 = vadd.f32 %v2144, %v2232
        %2234 = vmatmul.bf16.gmra.mxu0 %v844
        %v2235 = vpop.f32.mrf.mxu0
        %v2236 = vadd.f32 %v2147, %v2235
        %v2237 = vpop.f32.mrf.mxu0
        %v2238 = vadd.f32 %v2149, %v2237
        %2239 = vmatmul.bf16.gmra.mxu0 %v843
        %v2240 = vpop.f32.mrf.mxu0
        %v2241 = vadd.f32 %v2152, %v2240
        %v2242 = vpop.f32.mrf.mxu0
        %v2243 = vadd.f32 %v2154, %v2242
        %2244 = vdwg.mxu0
        %2245 = vmatpush.bf16.msra.mxu0 %v2042
        %2246 = vmatpush.bf16.msra.mxu0 %v2041
        %2247 = vmatpush.bf16.msra.mxu0 %v2040
        %2248 = vmatpush.bf16.msra.mxu0 %v2039
        %2249 = vmatpush.bf16.msra.mxu0 %v2038
        %2250 = vmatpush.bf16.msra.mxu0 %v2037
        %2251 = vmatpush.bf16.msra.mxu0 %v2036
        %2252 = vmatpush.bf16.msra.mxu0 %v2035
        %2253 = vmatmul.bf16.gmra.mxu0 %v925
        %v2254 = vpop.f32.mrf.mxu0
        %v2255 = vadd.f32 %v2166, %v2254
        %v2256 = vpop.f32.mrf.mxu0
        %v2257 = vadd.f32 %v2168, %v2256
        %2258 = vmatmul.bf16.gmra.mxu0 %v927
        %v2259 = vpop.f32.mrf.mxu0
        %v2260 = vadd.f32 %v2171, %v2259
        %v2261 = vpop.f32.mrf.mxu0
        %v2262 = vadd.f32 %v2173, %v2261
        %2263 = vmatmul.bf16.gmra.mxu0 %v928
        %v2264 = vpop.f32.mrf.mxu0
        %v2265 = vadd.f32 %v2176, %v2264
        %v2266 = vpop.f32.mrf.mxu0
        %v2267 = vadd.f32 %v2178, %v2266
        %2268 = vmatmul.bf16.gmra.mxu0 %v929
        %v2269 = vpop.f32.mrf.mxu0
        %v2270 = vadd.f32 %v2181, %v2269
        %v2271 = vpop.f32.mrf.mxu0
        %v2272 = vadd.f32 %v2183, %v2271
        %2273 = vmatmul.bf16.gmra.mxu0 %v930
        %v2274 = vpop.f32.mrf.mxu0
        %v2275 = vadd.f32 %v2186, %v2274
        %v2276 = vpop.f32.mrf.mxu0
        %v2277 = vadd.f32 %v2188, %v2276
        %2278 = vmatmul.bf16.gmra.mxu0 %v931
        %v2279 = vpop.f32.mrf.mxu0
        %v2280 = vadd.f32 %v2191, %v2279
        %v2281 = vpop.f32.mrf.mxu0
        %v2282 = vadd.f32 %v2193, %v2281
        %2283 = vmatmul.bf16.gmra.mxu0 %v932
        %v2284 = vpop.f32.mrf.mxu0
        %v2285 = vadd.f32 %v2196, %v2284
        %v2286 = vpop.f32.mrf.mxu0
        %v2287 = vadd.f32 %v2198, %v2286
        %2288 = vmatmul.bf16.gmra.mxu0 %v933
        %v2289 = vpop.f32.mrf.mxu0
        %v2290 = vadd.f32 %v2201, %v2289
        %v2291 = vpop.f32.mrf.mxu0
        %v2292 = vadd.f32 %v2203, %v2291
        %2293 = vmatmul.bf16.gmra.mxu0 %v934
        %v2294 = vpop.f32.mrf.mxu0
        %v2295 = vadd.f32 %v2206, %v2294
        %v2296 = vpop.f32.mrf.mxu0
        %v2297 = vadd.f32 %v2208, %v2296
        %2298 = vmatmul.bf16.gmra.mxu0 %v935
        %v2299 = vpop.f32.mrf.mxu0
        %v2300 = vadd.f32 %v2211, %v2299
        %v2301 = vpop.f32.mrf.mxu0
        %v2302 = vadd.f32 %v2213, %v2301
        %2303 = vmatmul.bf16.gmra.mxu0 %v936
        %v2304 = vpop.f32.mrf.mxu0
        %v2305 = vadd.f32 %v2216, %v2304
        %v2306 = vpop.f32.mrf.mxu0
        %v2307 = vadd.f32 %v2218, %v2306
        %2308 = vmatmul.bf16.gmra.mxu0 %v937
        %v2309 = vpop.f32.mrf.mxu0
        %v2310 = vadd.f32 %v2221, %v2309
        %v2311 = vpop.f32.mrf.mxu0
        %v2312 = vadd.f32 %v2223, %v2311
        %2313 = vmatmul.bf16.gmra.mxu0 %v938
        %v2314 = vpop.f32.mrf.mxu0
        %v2315 = vadd.f32 %v2226, %v2314
        %v2316 = vpop.f32.mrf.mxu0
        %v2317 = vadd.f32 %v2228, %v2316
        %2318 = vmatmul.bf16.gmra.mxu0 %v939
        %v2319 = vpop.f32.mrf.mxu0
        %v2320 = vadd.f32 %v2231, %v2319
        %v2321 = vpop.f32.mrf.mxu0
        %v2322 = vadd.f32 %v2233, %v2321
        %2323 = vmatmul.bf16.gmra.mxu0 %v940
        %v2324 = vpop.f32.mrf.mxu0
        %v2325 = vadd.f32 %v2236, %v2324
        %v2326 = vpop.f32.mrf.mxu0
        %v2327 = vadd.f32 %v2238, %v2326
        %2328 = vmatmul.bf16.gmra.mxu0 %v939
        %v2329 = vpop.f32.mrf.mxu0
        %v2330 = vadd.f32 %v2241, %v2329
        %v2331 = vpop.f32.mrf.mxu0
        %v2332 = vadd.f32 %v2243, %v2331
        %2333 = vdwg.mxu0
        %v2334 = vadd.f32 %v1796, %v2255
        %v2335 = vadd.f32 %v1798, %v2257
        %v2336 = vadd.f32 %v1801, %v2260
        %v2337 = vadd.f32 %v1803, %v2262
        %v2338 = vadd.f32 %v1806, %v2265
        %v2339 = vadd.f32 %v1808, %v2267
        %v2340 = vadd.f32 %v1811, %v2270
        %v2341 = vadd.f32 %v1813, %v2272
        %v2342 = vadd.f32 %v1816, %v2275
        %v2343 = vadd.f32 %v1818, %v2277
        %v2344 = vadd.f32 %v1821, %v2280
        %v2345 = vadd.f32 %v1823, %v2282
        %v2346 = vadd.f32 %v1826, %v2285
        %v2347 = vadd.f32 %v1828, %v2287
        %v2348 = vadd.f32 %v1831, %v2290
        %v2349 = vadd.f32 %v1833, %v2292
        %v2350 = vadd.f32 %v1836, %v2295
        %v2351 = vadd.f32 %v1838, %v2297
        %v2352 = vadd.f32 %v1841, %v2300
        %v2353 = vadd.f32 %v1843, %v2302
        %v2354 = vadd.f32 %v1846, %v2305
        %v2355 = vadd.f32 %v1848, %v2307
        %v2356 = vadd.f32 %v1851, %v2310
        %v2357 = vadd.f32 %v1853, %v2312
        %v2358 = vadd.f32 %v1856, %v2315
        %v2359 = vadd.f32 %v1858, %v2317
        %v2360 = vadd.f32 %v1861, %v2320
        %v2361 = vadd.f32 %v1863, %v2322
        %v2362 = vadd.f32 %v1866, %v2325
        %v2363 = vadd.f32 %v1868, %v2327
        %v2364 = vadd.f32 %v1871, %v2330
        %v2365 = vadd.f32 %v1873, %v2332
        %v2366 = vadd.f32 %v2334, %v2335
        %v2367 = vadd.f32 %v2366, %v2336
        %v2368 = vadd.f32 %v2367, %v2337
        %v2369 = vadd.f32 %v2368, %v2338
        %v2370 = vadd.f32 %v2369, %v2339
        %v2371 = vadd.f32 %v2370, %v2340
        %v2372 = vadd.f32 %v2371, %v2341
        %v2373 = vadd.f32 %v2372, %v2342
        %v2374 = vadd.f32 %v2373, %v2343
        %v2375 = vadd.f32 %v2374, %v2344
        %v2376 = vadd.f32 %v2375, %v2345
        %v2377 = vadd.f32 %v2376, %v2346
        %v2378 = vadd.f32 %v2377, %v2347
        %v2379 = vadd.f32 %v2378, %v2348
        %v2380 = vadd.f32 %v2379, %v2349
        %v2381 = vadd.f32 %v2380, %v2350
        %v2382 = vadd.f32 %v2381, %v2351
        %v2383 = vadd.f32 %v2382, %v2352
        %v2384 = vadd.f32 %v2383, %v2353
        %v2385 = vadd.f32 %v2384, %v2354
        %v2386 = vadd.f32 %v2385, %v2355
        %v2387 = vadd.f32 %v2386, %v2356
        %v2388 = vadd.f32 %v2387, %v2357
        %v2389 = vadd.f32 %v2388, %v2358
        %v2390 = vadd.f32 %v2389, %v2359
        %v2391 = vadd.f32 %v2390, %v2360
        %v2392 = vadd.f32 %v2391, %v2361
        %v2393 = vadd.f32 %v2392, %v2362
        %v2394 = vadd.f32 %v2393, %v2363
        %v2395 = vadd.f32 %v2394, %v2364
        %v2396 = vadd.f32 %v2395, %v2365
        %v2397 = vrot.slane %v2396, 4
        %v2398 = vadd.f32 %v2396, %v2397
        %v2399 = vrot.slane %v2398, 2
        %v2400 = vadd.f32 %v2398, %v2399
        %v2401 = vrot.slane %v2400, 1
        %v2402 = vadd.f32 %v2400, %v2401
        %v2403 = vmul.f32 %v2334, %v2334
        %v2404 = vmul.f32 %v2335, %v2335
        %v2405 = vmul.f32 %v2336, %v2336
        %v2406 = vmul.f32 %v2337, %v2337
        %v2407 = vmul.f32 %v2338, %v2338
        %v2408 = vmul.f32 %v2339, %v2339
        %v2409 = vmul.f32 %v2340, %v2340
        %v2410 = vmul.f32 %v2341, %v2341
        %v2411 = vmul.f32 %v2342, %v2342
        %v2412 = vmul.f32 %v2343, %v2343
        %v2413 = vmul.f32 %v2344, %v2344
        %v2414 = vmul.f32 %v2345, %v2345
        %v2415 = vmul.f32 %v2346, %v2346
        %v2416 = vmul.f32 %v2347, %v2347
        %v2417 = vmul.f32 %v2348, %v2348
        %v2418 = vmul.f32 %v2349, %v2349
        %v2419 = vmul.f32 %v2350, %v2350
        %v2420 = vmul.f32 %v2351, %v2351
        %v2421 = vmul.f32 %v2352, %v2352
        %v2422 = vmul.f32 %v2353, %v2353
        %v2423 = vmul.f32 %v2354, %v2354
        %v2424 = vmul.f32 %v2355, %v2355
        %v2425 = vmul.f32 %v2356, %v2356
        %v2426 = vmul.f32 %v2357, %v2357
        %v2427 = vmul.f32 %v2358, %v2358
        %v2428 = vmul.f32 %v2359, %v2359
        %v2429 = vmul.f32 %v2360, %v2360
        %v2430 = vmul.f32 %v2361, %v2361
        %v2431 = vmul.f32 %v2362, %v2362
        %v2432 = vmul.f32 %v2363, %v2363
        %v2433 = vmul.f32 %v2364, %v2364
        %v2434 = vmul.f32 %v2365, %v2365
        %v2435 = vadd.f32 %v2403, %v2404
        %v2436 = vadd.f32 %v2435, %v2405
        %v2437 = vadd.f32 %v2436, %v2406
        %v2438 = vadd.f32 %v2437, %v2407
        %v2439 = vadd.f32 %v2438, %v2408
        %v2440 = vadd.f32 %v2439, %v2409
        %v2441 = vadd.f32 %v2440, %v2410
        %v2442 = vadd.f32 %v2441, %v2411
        %v2443 = vadd.f32 %v2442, %v2412
        %v2444 = vadd.f32 %v2443, %v2413
        %v2445 = vadd.f32 %v2444, %v2414
        %v2446 = vadd.f32 %v2445, %v2415
        %v2447 = vadd.f32 %v2446, %v2416
        %v2448 = vadd.f32 %v2447, %v2417
        %v2449 = vadd.f32 %v2448, %v2418
        %v2450 = vadd.f32 %v2449, %v2419
        %v2451 = vadd.f32 %v2450, %v2420
        %v2452 = vadd.f32 %v2451, %v2421
        %v2453 = vadd.f32 %v2452, %v2422
        %v2454 = vadd.f32 %v2453, %v2423
        %v2455 = vadd.f32 %v2454, %v2424
        %v2456 = vadd.f32 %v2455, %v2425
        %v2457 = vadd.f32 %v2456, %v2426
        %v2458 = vadd.f32 %v2457, %v2427
        %v2459 = vadd.f32 %v2458, %v2428
        %v2460 = vadd.f32 %v2459, %v2429
        %v2461 = vadd.f32 %v2460, %v2430
        %v2462 = vadd.f32 %v2461, %v2431
        %v2463 = vadd.f32 %v2462, %v2432
        %v2464 = vadd.f32 %v2463, %v2433
        %v2465 = vadd.f32 %v2464, %v2434
        %v2466 = vrot.slane %v2465, 4
        %v2467 = vadd.f32 %v2465, %v2466
        %v2468 = vrot.slane %v2467, 2
        %v2469 = vadd.f32 %v2467, %v2468
        %v2470 = vrot.slane %v2469, 1
        %v2471 = vadd.f32 %v2469, %v2470
        %v2472 = vmul.f32 %v2402, 0.00390625
        %v2473 = vmul.f32 %v2471, 0.00390625
        %v2474 = vmul.f32 %v2472, %v2472
        %v2475 = vsub.f32 %v2473, %v2474
        %v2476 = vmax.f32 %v2475, 0.0
        %v2477 = vld [vmem:[%s2] sm:$0x1]
        %v2478 = vadd.f32 %v2476, 1e-05
        %v2479 = vrsqrt.pop %v2478
        %v2480 = vmul.f32 %v2479, %v2478
        %v2481 = vmul.f32 %v2480, %v2479
        %v2482 = vmul.f32 0.5, %v2481
        %v2483 = vsub.f32 1.5, %v2482
        %v2484 = vmul.f32 %v2479, %v2483
        %vm2485 = vweird.f32 %v2478
        %vm2486 = vweird.f32 %v2479
        %vm2487 = vmor %vm2485, %vm2486
        %v2488 = vsel %vm2487, %v2479, %v2484
        %v2489 = vmul.f32 %v2477, %v2488
        %v2490 = vld [vmem:[%s3] sm:$0x1]
        %v2491 = vmul.f32 %v2472, %v2489
        %v2492 = vsub.f32 %v2490, %v2491
        %v2494 = vperm.slane %v2489, 0
        %v2496 = vmul.f32 %v2334, %v2494
        %v2497 = vmul.f32 %v2335, %v2494
        %v2498 = vmul.f32 %v2336, %v2494
        %v2499 = vmul.f32 %v2337, %v2494
        %v2500 = vmul.f32 %v2338, %v2494
        %v2501 = vmul.f32 %v2339, %v2494
        %v2502 = vmul.f32 %v2340, %v2494
        %v2503 = vmul.f32 %v2341, %v2494
        %v2504 = vmul.f32 %v2342, %v2494
        %v2505 = vmul.f32 %v2343, %v2494
        %v2506 = vmul.f32 %v2344, %v2494
        %v2507 = vmul.f32 %v2345, %v2494
        %v2508 = vmul.f32 %v2346, %v2494
        %v2509 = vmul.f32 %v2347, %v2494
        %v2510 = vmul.f32 %v2348, %v2494
        %v2511 = vmul.f32 %v2349, %v2494
        %v2512 = vmul.f32 %v2350, %v2494
        %v2513 = vmul.f32 %v2351, %v2494
        %v2514 = vmul.f32 %v2352, %v2494
        %v2515 = vmul.f32 %v2353, %v2494
        %v2516 = vmul.f32 %v2354, %v2494
        %v2517 = vmul.f32 %v2355, %v2494
        %v2518 = vmul.f32 %v2356, %v2494
        %v2519 = vmul.f32 %v2357, %v2494
        %v2520 = vmul.f32 %v2358, %v2494
        %v2521 = vmul.f32 %v2359, %v2494
        %v2522 = vmul.f32 %v2360, %v2494
        %v2523 = vmul.f32 %v2361, %v2494
        %v2524 = vmul.f32 %v2362, %v2494
        %v2525 = vmul.f32 %v2363, %v2494
        %v2526 = vmul.f32 %v2364, %v2494
        %v2527 = vmul.f32 %v2365, %v2494
        %v2529 = vperm.slane %v2492, 0
        %v2531 = vadd.f32 %v2496, %v2529
        %v2532 = vadd.f32 %v2497, %v2529
        %v2533 = vadd.f32 %v2498, %v2529
        %v2534 = vadd.f32 %v2499, %v2529
        %v2535 = vadd.f32 %v2500, %v2529
        %v2536 = vadd.f32 %v2501, %v2529
        %v2537 = vadd.f32 %v2502, %v2529
        %v2538 = vadd.f32 %v2503, %v2529
        %v2539 = vadd.f32 %v2504, %v2529
        %v2540 = vadd.f32 %v2505, %v2529
        %v2541 = vadd.f32 %v2506, %v2529
        %v2542 = vadd.f32 %v2507, %v2529
        %v2543 = vadd.f32 %v2508, %v2529
        %v2544 = vadd.f32 %v2509, %v2529
        %v2545 = vadd.f32 %v2510, %v2529
        %v2546 = vadd.f32 %v2511, %v2529
        %v2547 = vadd.f32 %v2512, %v2529
        %v2548 = vadd.f32 %v2513, %v2529
        %v2549 = vadd.f32 %v2514, %v2529
        %v2550 = vadd.f32 %v2515, %v2529
        %v2551 = vadd.f32 %v2516, %v2529
        %v2552 = vadd.f32 %v2517, %v2529
        %v2553 = vadd.f32 %v2518, %v2529
        %v2554 = vadd.f32 %v2519, %v2529
        %v2555 = vadd.f32 %v2520, %v2529
        %v2556 = vadd.f32 %v2521, %v2529
        %v2557 = vadd.f32 %v2522, %v2529
        %v2558 = vadd.f32 %v2523, %v2529
        %v2559 = vadd.f32 %v2524, %v2529
        %v2560 = vadd.f32 %v2525, %v2529
        %v2561 = vadd.f32 %v2526, %v2529
        %v2562 = vadd.f32 %v2527, %v2529
        %v2563 = vmax.f32 %v2531, 0.0
        %v2564 = vmax.f32 %v2532, 0.0
        %v2565 = vmax.f32 %v2533, 0.0
        %v2566 = vmax.f32 %v2534, 0.0
        %v2567 = vmax.f32 %v2535, 0.0
        %v2568 = vmax.f32 %v2536, 0.0
        %v2569 = vmax.f32 %v2537, 0.0
        %v2570 = vmax.f32 %v2538, 0.0
        %v2571 = vmax.f32 %v2539, 0.0
        %v2572 = vmax.f32 %v2540, 0.0
        %v2573 = vmax.f32 %v2541, 0.0
        %v2574 = vmax.f32 %v2542, 0.0
        %v2575 = vmax.f32 %v2543, 0.0
        %v2576 = vmax.f32 %v2544, 0.0
        %v2577 = vmax.f32 %v2545, 0.0
        %v2578 = vmax.f32 %v2546, 0.0
        %v2579 = vmax.f32 %v2547, 0.0
        %v2580 = vmax.f32 %v2548, 0.0
        %v2581 = vmax.f32 %v2549, 0.0
        %v2582 = vmax.f32 %v2550, 0.0
        %v2583 = vmax.f32 %v2551, 0.0
        %v2584 = vmax.f32 %v2552, 0.0
        %v2585 = vmax.f32 %v2553, 0.0
        %v2586 = vmax.f32 %v2554, 0.0
        %v2587 = vmax.f32 %v2555, 0.0
        %v2588 = vmax.f32 %v2556, 0.0
        %v2589 = vmax.f32 %v2557, 0.0
        %v2590 = vmax.f32 %v2558, 0.0
        %v2591 = vmax.f32 %v2559, 0.0
        %v2592 = vmax.f32 %v2560, 0.0
        %v2593 = vmax.f32 %v2561, 0.0
        %v2594 = vmax.f32 %v2562, 0.0
        %v2595 = vrot.slane %v2565, 7
        %v2596 = vrot.slane %v2563, 7
        %v2597 = vrot.slane %v2567, 7
        %v2598 = vrot.slane %v2569, 7
        %v2599 = vrot.slane %v2571, 7
        %v2600 = vrot.slane %v2573, 7
        %v2601 = vrot.slane %v2575, 7
        %v2602 = vrot.slane %v2577, 7
        %v2603 = vrot.slane %v2579, 7
        %v2604 = vrot.slane %v2581, 7
        %v2605 = vrot.slane %v2583, 7
        %v2606 = vrot.slane %v2585, 7
        %v2607 = vrot.slane %v2587, 7
        %v2608 = vrot.slane %v2589, 7
        %v2609 = vrot.slane %v2591, 7
        %v2610 = vrot.slane %v2593, 7
        %v2611 = vrot.slane %v2566, 7
        %v2612 = vrot.slane %v2564, 7
        %v2613 = vrot.slane %v2568, 7
        %v2614 = vrot.slane %v2570, 7
        %v2615 = vrot.slane %v2572, 7
        %v2616 = vrot.slane %v2574, 7
        %v2617 = vrot.slane %v2576, 7
        %v2618 = vrot.slane %v2578, 7
        %v2619 = vrot.slane %v2580, 7
        %v2620 = vrot.slane %v2582, 7
        %v2621 = vrot.slane %v2584, 7
        %v2622 = vrot.slane %v2586, 7
        %v2623 = vrot.slane %v2588, 7
        %v2624 = vrot.slane %v2590, 7
        %v2625 = vrot.slane %v2592, 7
        %v2626 = vrot.slane %v2594, 7
        %v2627 = vsel %vm403, %v2595, %v2611
        %v2628 = vsel %vm403, %v2596, %v2612
        %v2629 = vsel %vm403, %v2597, %v2613
        %v2630 = vsel %vm403, %v2598, %v2614
        %v2631 = vsel %vm403, %v2599, %v2615
        %v2632 = vsel %vm403, %v2600, %v2616
        %v2633 = vsel %vm403, %v2601, %v2617
        %v2634 = vsel %vm403, %v2602, %v2618
        %v2635 = vsel %vm403, %v2603, %v2619
        %v2636 = vsel %vm403, %v2604, %v2620
        %v2637 = vsel %vm403, %v2605, %v2621
        %v2638 = vsel %vm403, %v2606, %v2622
        %v2639 = vsel %vm403, %v2607, %v2623
        %v2640 = vsel %vm403, %v2608, %v2624
        %v2641 = vsel %vm403, %v2609, %v2625
        %v2642 = vsel %vm403, %v2610, %v2626
        %v2643 = vsel %vm403, %v2611, %v2595
        %v2644 = vsel %vm403, %v2612, %v2596
        %v2645 = vsel %vm403, %v2613, %v2597
        %v2646 = vsel %vm403, %v2614, %v2598
        %v2647 = vsel %vm403, %v2615, %v2599
        %v2648 = vsel %vm403, %v2616, %v2600
        %v2649 = vsel %vm403, %v2617, %v2601
        %v2650 = vsel %vm403, %v2618, %v2602
        %v2651 = vsel %vm403, %v2619, %v2603
        %v2652 = vsel %vm403, %v2620, %v2604
        %v2653 = vsel %vm403, %v2621, %v2605
        %v2654 = vsel %vm403, %v2622, %v2606
        %v2655 = vsel %vm403, %v2623, %v2607
        %v2656 = vsel %vm403, %v2624, %v2608
        %v2657 = vsel %vm403, %v2625, %v2609
        %v2658 = vsel %vm403, %v2626, %v2610
        %v2659 = vrot.slane %v2565, 1
        %v2660 = vrot.slane %v2563, 1
        %v2661 = vrot.slane %v2567, 1
        %v2662 = vrot.slane %v2569, 1
        %v2663 = vrot.slane %v2571, 1
        %v2664 = vrot.slane %v2573, 1
        %v2665 = vrot.slane %v2575, 1
        %v2666 = vrot.slane %v2577, 1
        %v2667 = vrot.slane %v2579, 1
        %v2668 = vrot.slane %v2581, 1
        %v2669 = vrot.slane %v2583, 1
        %v2670 = vrot.slane %v2585, 1
        %v2671 = vrot.slane %v2587, 1
        %v2672 = vrot.slane %v2589, 1
        %v2673 = vrot.slane %v2591, 1
        %v2674 = vrot.slane %v2593, 1
        %v2675 = vrot.slane %v2566, 1
        %v2676 = vrot.slane %v2564, 1
        %v2677 = vrot.slane %v2568, 1
        %v2678 = vrot.slane %v2570, 1
        %v2679 = vrot.slane %v2572, 1
        %v2680 = vrot.slane %v2574, 1
        %v2681 = vrot.slane %v2576, 1
        %v2682 = vrot.slane %v2578, 1
        %v2683 = vrot.slane %v2580, 1
        %v2684 = vrot.slane %v2582, 1
        %v2685 = vrot.slane %v2584, 1
        %v2686 = vrot.slane %v2586, 1
        %v2687 = vrot.slane %v2588, 1
        %v2688 = vrot.slane %v2590, 1
        %v2689 = vrot.slane %v2592, 1
        %v2690 = vrot.slane %v2594, 1
        %v2691 = vsel %vm468, %v2659, %v2675
        %v2692 = vsel %vm468, %v2660, %v2676
        %v2693 = vsel %vm468, %v2661, %v2677
        %v2694 = vsel %vm468, %v2662, %v2678
        %v2695 = vsel %vm468, %v2663, %v2679
        %v2696 = vsel %vm468, %v2664, %v2680
        %v2697 = vsel %vm468, %v2665, %v2681
        %v2698 = vsel %vm468, %v2666, %v2682
        %v2699 = vsel %vm468, %v2667, %v2683
        %v2700 = vsel %vm468, %v2668, %v2684
        %v2701 = vsel %vm468, %v2669, %v2685
        %v2702 = vsel %vm468, %v2670, %v2686
        %v2703 = vsel %vm468, %v2671, %v2687
        %v2704 = vsel %vm468, %v2672, %v2688
        %v2705 = vsel %vm468, %v2673, %v2689
        %v2706 = vsel %vm468, %v2674, %v2690
        %v2707 = vsel %vm468, %v2675, %v2659
        %v2708 = vsel %vm468, %v2676, %v2660
        %v2709 = vsel %vm468, %v2677, %v2661
        %v2710 = vsel %vm468, %v2678, %v2662
        %v2711 = vsel %vm468, %v2679, %v2663
        %v2712 = vsel %vm468, %v2680, %v2664
        %v2713 = vsel %vm468, %v2681, %v2665
        %v2714 = vsel %vm468, %v2682, %v2666
        %v2715 = vsel %vm468, %v2683, %v2667
        %v2716 = vsel %vm468, %v2684, %v2668
        %v2717 = vsel %vm468, %v2685, %v2669
        %v2718 = vsel %vm468, %v2686, %v2670
        %v2719 = vsel %vm468, %v2687, %v2671
        %v2720 = vsel %vm468, %v2688, %v2672
        %v2721 = vsel %vm468, %v2689, %v2673
        %v2722 = vsel %vm468, %v2690, %v2674
        %v2723 = vsel %vm503, %v2691, %v2643
        %v2724 = vsel %vm504, %v2707, %v2627
        %v2725 = vsel %vm503, %v2692, %v2644
        %v2726 = vsel %vm504, %v2708, %v2628
        %v2727 = vsel %vm503, %v2693, %v2645
        %v2728 = vsel %vm504, %v2709, %v2629
        %v2729 = vsel %vm503, %v2694, %v2646
        %v2730 = vsel %vm504, %v2710, %v2630
        %v2731 = vsel %vm503, %v2695, %v2647
        %v2732 = vsel %vm504, %v2711, %v2631
        %v2733 = vsel %vm503, %v2696, %v2648
        %v2734 = vsel %vm504, %v2712, %v2632
        %v2735 = vsel %vm503, %v2697, %v2649
        %v2736 = vsel %vm504, %v2713, %v2633
        %v2737 = vsel %vm503, %v2698, %v2650
        %v2738 = vsel %vm504, %v2714, %v2634
        %v2739 = vsel %vm503, %v2699, %v2651
        %v2740 = vsel %vm504, %v2715, %v2635
        %v2741 = vsel %vm503, %v2700, %v2652
        %v2742 = vsel %vm504, %v2716, %v2636
        %v2743 = vsel %vm503, %v2701, %v2653
        %v2744 = vsel %vm504, %v2717, %v2637
        %v2745 = vsel %vm503, %v2702, %v2654
        %v2746 = vsel %vm504, %v2718, %v2638
        %v2747 = vsel %vm503, %v2703, %v2655
        %v2748 = vsel %vm504, %v2719, %v2639
        %v2749 = vsel %vm503, %v2704, %v2656
        %v2750 = vsel %vm504, %v2720, %v2640
        %v2751 = vsel %vm503, %v2705, %v2657
        %v2752 = vsel %vm504, %v2721, %v2641
        %v2753 = vsel %vm503, %v2706, %v2658
        %v2754 = vsel %vm504, %v2722, %v2642
        %v2755 = vpack.c.bf16 %v2723, %v2723
        %v2756 = vpack.c.bf16 %v2724, %v2724
        %v2757 = vpack.c.bf16 %v2725, %v2725
        %v2758 = vpack.c.bf16 %v2726, %v2726
        %v2759 = vpack.c.bf16 %v2727, %v2727
        %v2760 = vpack.c.bf16 %v2728, %v2728
        %v2761 = vpack.c.bf16 %v2729, %v2729
        %v2762 = vpack.c.bf16 %v2730, %v2730
        %v2763 = vpack.c.bf16 %v2731, %v2731
        %v2764 = vpack.c.bf16 %v2732, %v2732
        %v2765 = vpack.c.bf16 %v2733, %v2733
        %v2766 = vpack.c.bf16 %v2734, %v2734
        %v2767 = vpack.c.bf16 %v2735, %v2735
        %v2768 = vpack.c.bf16 %v2736, %v2736
        %v2769 = vpack.c.bf16 %v2737, %v2737
        %v2770 = vpack.c.bf16 %v2738, %v2738
        %v2771 = vpack.c.bf16 %v2739, %v2739
        %v2772 = vpack.c.bf16 %v2740, %v2740
        %v2773 = vpack.c.bf16 %v2741, %v2741
        %v2774 = vpack.c.bf16 %v2742, %v2742
        %v2775 = vpack.c.bf16 %v2743, %v2743
        %v2776 = vpack.c.bf16 %v2744, %v2744
        %v2777 = vpack.c.bf16 %v2745, %v2745
        %v2778 = vpack.c.bf16 %v2746, %v2746
        %v2779 = vpack.c.bf16 %v2747, %v2747
        %v2780 = vpack.c.bf16 %v2748, %v2748
        %v2781 = vpack.c.bf16 %v2749, %v2749
        %v2782 = vpack.c.bf16 %v2750, %v2750
        %v2783 = vpack.c.bf16 %v2751, %v2751
        %v2784 = vpack.c.bf16 %v2752, %v2752
        %v2785 = vpack.c.bf16 %v2753, %v2753
        %v2786 = vpack.c.bf16 %v2754, %v2754
        %v2787 = vsel %vm571, %v2643, %v2691
        %v2788 = vsel %vm572, %v2627, %v2707
        %v2789 = vsel %vm571, %v2644, %v2692
        %v2790 = vsel %vm572, %v2628, %v2708
        %v2791 = vsel %vm571, %v2645, %v2693
        %v2792 = vsel %vm572, %v2629, %v2709
        %v2793 = vsel %vm571, %v2646, %v2694
        %v2794 = vsel %vm572, %v2630, %v2710
        %v2795 = vsel %vm571, %v2647, %v2695
        %v2796 = vsel %vm572, %v2631, %v2711
        %v2797 = vsel %vm571, %v2648, %v2696
        %v2798 = vsel %vm572, %v2632, %v2712
        %v2799 = vsel %vm571, %v2649, %v2697
        %v2800 = vsel %vm572, %v2633, %v2713
        %v2801 = vsel %vm571, %v2650, %v2698
        %v2802 = vsel %vm572, %v2634, %v2714
        %v2803 = vsel %vm571, %v2651, %v2699
        %v2804 = vsel %vm572, %v2635, %v2715
        %v2805 = vsel %vm571, %v2652, %v2700
        %v2806 = vsel %vm572, %v2636, %v2716
        %v2807 = vsel %vm571, %v2653, %v2701
        %v2808 = vsel %vm572, %v2637, %v2717
        %v2809 = vsel %vm571, %v2654, %v2702
        %v2810 = vsel %vm572, %v2638, %v2718
        %v2811 = vsel %vm571, %v2655, %v2703
        %v2812 = vsel %vm572, %v2639, %v2719
        %v2813 = vsel %vm571, %v2656, %v2704
        %v2814 = vsel %vm572, %v2640, %v2720
        %v2815 = vsel %vm571, %v2657, %v2705
        %v2816 = vsel %vm572, %v2641, %v2721
        %v2817 = vsel %vm571, %v2658, %v2706
        %v2818 = vsel %vm572, %v2642, %v2722
        %v2819 = vpack.c.bf16 %v2787, %v2787
        %v2820 = vpack.c.bf16 %v2788, %v2788
        %v2821 = vpack.c.bf16 %v2789, %v2789
        %v2822 = vpack.c.bf16 %v2790, %v2790
        %v2823 = vpack.c.bf16 %v2791, %v2791
        %v2824 = vpack.c.bf16 %v2792, %v2792
        %v2825 = vpack.c.bf16 %v2793, %v2793
        %v2826 = vpack.c.bf16 %v2794, %v2794
        %v2827 = vpack.c.bf16 %v2795, %v2795
        %v2828 = vpack.c.bf16 %v2796, %v2796
        %v2829 = vpack.c.bf16 %v2797, %v2797
        %v2830 = vpack.c.bf16 %v2798, %v2798
        %v2831 = vpack.c.bf16 %v2799, %v2799
        %v2832 = vpack.c.bf16 %v2800, %v2800
        %v2833 = vpack.c.bf16 %v2801, %v2801
        %v2834 = vpack.c.bf16 %v2802, %v2802
        %v2835 = vpack.c.bf16 %v2803, %v2803
        %v2836 = vpack.c.bf16 %v2804, %v2804
        %v2837 = vpack.c.bf16 %v2805, %v2805
        %v2838 = vpack.c.bf16 %v2806, %v2806
        %v2839 = vpack.c.bf16 %v2807, %v2807
        %v2840 = vpack.c.bf16 %v2808, %v2808
        %v2841 = vpack.c.bf16 %v2809, %v2809
        %v2842 = vpack.c.bf16 %v2810, %v2810
        %v2843 = vpack.c.bf16 %v2811, %v2811
        %v2844 = vpack.c.bf16 %v2812, %v2812
        %v2845 = vpack.c.bf16 %v2813, %v2813
        %v2846 = vpack.c.bf16 %v2814, %v2814
        %v2847 = vpack.c.bf16 %v2815, %v2815
        %v2848 = vpack.c.bf16 %v2816, %v2816
        %v2849 = vpack.c.bf16 %v2817, %v2817
        %v2850 = vpack.c.bf16 %v2818, %v2818
        %v2851 = vpack.c.bf16 %v2565, %v2565
        %v2852 = vpack.c.bf16 %v2566, %v2566
        %v2853 = vpack.c.bf16 %v2563, %v2563
        %v2854 = vpack.c.bf16 %v2564, %v2564
        %v2855 = vpack.c.bf16 %v2567, %v2567
        %v2856 = vpack.c.bf16 %v2568, %v2568
        %v2857 = vpack.c.bf16 %v2569, %v2569
        %v2858 = vpack.c.bf16 %v2570, %v2570
        %v2859 = vpack.c.bf16 %v2571, %v2571
        %v2860 = vpack.c.bf16 %v2572, %v2572
        %v2861 = vpack.c.bf16 %v2573, %v2573
        %v2862 = vpack.c.bf16 %v2574, %v2574
        %v2863 = vpack.c.bf16 %v2575, %v2575
        %v2864 = vpack.c.bf16 %v2576, %v2576
        %v2865 = vpack.c.bf16 %v2577, %v2577
        %v2866 = vpack.c.bf16 %v2578, %v2578
        %v2867 = vpack.c.bf16 %v2579, %v2579
        %v2868 = vpack.c.bf16 %v2580, %v2580
        %v2869 = vpack.c.bf16 %v2581, %v2581
        %v2870 = vpack.c.bf16 %v2582, %v2582
        %v2871 = vpack.c.bf16 %v2583, %v2583
        %v2872 = vpack.c.bf16 %v2584, %v2584
        %v2873 = vpack.c.bf16 %v2585, %v2585
        %v2874 = vpack.c.bf16 %v2586, %v2586
        %v2875 = vpack.c.bf16 %v2587, %v2587
        %v2876 = vpack.c.bf16 %v2588, %v2588
        %v2877 = vpack.c.bf16 %v2589, %v2589
        %v2878 = vpack.c.bf16 %v2590, %v2590
        %v2879 = vpack.c.bf16 %v2591, %v2591
        %v2880 = vpack.c.bf16 %v2592, %v2592
        %v2881 = vpack.c.bf16 %v2593, %v2593
        %v2882 = vpack.c.bf16 %v2594, %v2594
        %v2915 = vunpack.c.l.b16 %v2755
        %v2916 = vunpack.c.l.b16 %v2756
        %v2917 = vunpack.c.l.b16 %v2757
        %v2918 = vunpack.c.l.b16 %v2758
        %v2919 = vunpack.c.l.b16 %v2759
        %v2920 = vunpack.c.l.b16 %v2760
        %v2921 = vunpack.c.l.b16 %v2761
        %v2922 = vunpack.c.l.b16 %v2762
        %v2923 = vunpack.c.l.b16 %v2763
        %v2924 = vunpack.c.l.b16 %v2764
        %v2925 = vunpack.c.l.b16 %v2765
        %v2926 = vunpack.c.l.b16 %v2766
        %v2927 = vunpack.c.l.b16 %v2767
        %v2928 = vunpack.c.l.b16 %v2768
        %v2929 = vunpack.c.l.b16 %v2769
        %v2930 = vunpack.c.l.b16 %v2770
        %v2931 = vunpack.c.l.b16 %v2771
        %v2932 = vunpack.c.l.b16 %v2772
        %v2933 = vunpack.c.l.b16 %v2773
        %v2934 = vunpack.c.l.b16 %v2774
        %v2935 = vunpack.c.l.b16 %v2775
        %v2936 = vunpack.c.l.b16 %v2776
        %v2937 = vunpack.c.l.b16 %v2777
        %v2938 = vunpack.c.l.b16 %v2778
        %v2939 = vunpack.c.l.b16 %v2779
        %v2940 = vunpack.c.l.b16 %v2780
        %v2941 = vunpack.c.l.b16 %v2781
        %v2942 = vunpack.c.l.b16 %v2782
        %v2943 = vunpack.c.l.b16 %v2783
        %v2944 = vunpack.c.l.b16 %v2784
        %v2945 = vunpack.c.l.b16 %v2785
        %v2946 = vunpack.c.l.b16 %v2786
        %v2947 = vpack.c.b16 %v2916, %v2915
        %v2948 = vpack.c.b16 %v2918, %v2917
        %v2949 = vpack.c.b16 %v2920, %v2919
        %v2950 = vpack.c.b16 %v2922, %v2921
        %v2951 = vpack.c.b16 %v2924, %v2923
        %v2952 = vpack.c.b16 %v2926, %v2925
        %v2953 = vpack.c.b16 %v2928, %v2927
        %v2954 = vpack.c.b16 %v2930, %v2929
        %v2955 = vpack.c.b16 %v2932, %v2931
        %v2956 = vpack.c.b16 %v2934, %v2933
        %v2957 = vpack.c.b16 %v2936, %v2935
        %v2958 = vpack.c.b16 %v2938, %v2937
        %v2959 = vpack.c.b16 %v2940, %v2939
        %v2960 = vpack.c.b16 %v2942, %v2941
        %v2961 = vpack.c.b16 %v2944, %v2943
        %v2962 = vpack.c.b16 %v2946, %v2945
        %v3011 = vunpack.c.l.b16 %v2851
        %v3012 = vunpack.c.l.b16 %v2852
        %v3013 = vunpack.c.l.b16 %v2853
        %v3014 = vunpack.c.l.b16 %v2854
        %v3015 = vunpack.c.l.b16 %v2855
        %v3016 = vunpack.c.l.b16 %v2856
        %v3017 = vunpack.c.l.b16 %v2857
        %v3018 = vunpack.c.l.b16 %v2858
        %v3019 = vunpack.c.l.b16 %v2859
        %v3020 = vunpack.c.l.b16 %v2860
        %v3021 = vunpack.c.l.b16 %v2861
        %v3022 = vunpack.c.l.b16 %v2862
        %v3023 = vunpack.c.l.b16 %v2863
        %v3024 = vunpack.c.l.b16 %v2864
        %v3025 = vunpack.c.l.b16 %v2865
        %v3026 = vunpack.c.l.b16 %v2866
        %v3027 = vunpack.c.l.b16 %v2867
        %v3028 = vunpack.c.l.b16 %v2868
        %v3029 = vunpack.c.l.b16 %v2869
        %v3030 = vunpack.c.l.b16 %v2870
        %v3031 = vunpack.c.l.b16 %v2871
        %v3032 = vunpack.c.l.b16 %v2872
        %v3033 = vunpack.c.l.b16 %v2873
        %v3034 = vunpack.c.l.b16 %v2874
        %v3035 = vunpack.c.l.b16 %v2875
        %v3036 = vunpack.c.l.b16 %v2876
        %v3037 = vunpack.c.l.b16 %v2877
        %v3038 = vunpack.c.l.b16 %v2878
        %v3039 = vunpack.c.l.b16 %v2879
        %v3040 = vunpack.c.l.b16 %v2880
        %v3041 = vunpack.c.l.b16 %v2881
        %v3042 = vunpack.c.l.b16 %v2882
        %v3043 = vpack.c.b16 %v3012, %v3011
        %v3044 = vpack.c.b16 %v3014, %v3013
        %v3045 = vpack.c.b16 %v3016, %v3015
        %v3046 = vpack.c.b16 %v3018, %v3017
        %v3047 = vpack.c.b16 %v3020, %v3019
        %v3048 = vpack.c.b16 %v3022, %v3021
        %v3049 = vpack.c.b16 %v3024, %v3023
        %v3050 = vpack.c.b16 %v3026, %v3025
        %v3051 = vpack.c.b16 %v3028, %v3027
        %v3052 = vpack.c.b16 %v3030, %v3029
        %v3053 = vpack.c.b16 %v3032, %v3031
        %v3054 = vpack.c.b16 %v3034, %v3033
        %v3055 = vpack.c.b16 %v3036, %v3035
        %v3056 = vpack.c.b16 %v3038, %v3037
        %v3057 = vpack.c.b16 %v3040, %v3039
        %v3058 = vpack.c.b16 %v3042, %v3041
        %v3107 = vunpack.c.l.b16 %v2819
        %v3108 = vunpack.c.l.b16 %v2820
        %v3109 = vunpack.c.l.b16 %v2821
        %v3110 = vunpack.c.l.b16 %v2822
        %v3111 = vunpack.c.l.b16 %v2823
        %v3112 = vunpack.c.l.b16 %v2824
        %v3113 = vunpack.c.l.b16 %v2825
        %v3114 = vunpack.c.l.b16 %v2826
        %v3115 = vunpack.c.l.b16 %v2827
        %v3116 = vunpack.c.l.b16 %v2828
        %v3117 = vunpack.c.l.b16 %v2829
        %v3118 = vunpack.c.l.b16 %v2830
        %v3119 = vunpack.c.l.b16 %v2831
        %v3120 = vunpack.c.l.b16 %v2832
        %v3121 = vunpack.c.l.b16 %v2833
        %v3122 = vunpack.c.l.b16 %v2834
        %v3123 = vunpack.c.l.b16 %v2835
        %v3124 = vunpack.c.l.b16 %v2836
        %v3125 = vunpack.c.l.b16 %v2837
        %v3126 = vunpack.c.l.b16 %v2838
        %v3127 = vunpack.c.l.b16 %v2839
        %v3128 = vunpack.c.l.b16 %v2840
        %v3129 = vunpack.c.l.b16 %v2841
        %v3130 = vunpack.c.l.b16 %v2842
        %v3131 = vunpack.c.l.b16 %v2843
        %v3132 = vunpack.c.l.b16 %v2844
        %v3133 = vunpack.c.l.b16 %v2845
        %v3134 = vunpack.c.l.b16 %v2846
        %v3135 = vunpack.c.l.b16 %v2847
        %v3136 = vunpack.c.l.b16 %v2848
        %v3137 = vunpack.c.l.b16 %v2849
        %v3138 = vunpack.c.l.b16 %v2850
        %v3139 = vpack.c.b16 %v3108, %v3107
        %v3140 = vpack.c.b16 %v3110, %v3109
        %v3141 = vpack.c.b16 %v3112, %v3111
        %v3142 = vpack.c.b16 %v3114, %v3113
        %v3143 = vpack.c.b16 %v3116, %v3115
        %v3144 = vpack.c.b16 %v3118, %v3117
        %v3145 = vpack.c.b16 %v3120, %v3119
        %v3146 = vpack.c.b16 %v3122, %v3121
        %v3147 = vpack.c.b16 %v3124, %v3123
        %v3148 = vpack.c.b16 %v3126, %v3125
        %v3149 = vpack.c.b16 %v3128, %v3127
        %v3150 = vpack.c.b16 %v3130, %v3129
        %v3151 = vpack.c.b16 %v3132, %v3131
        %v3152 = vpack.c.b16 %v3134, %v3133
        %v3153 = vpack.c.b16 %v3136, %v3135
        %v3154 = vpack.c.b16 %v3138, %v3137
        %v3171 = vld [vmem:[#allocation7] sm:$0xf]
        %v3172 = vld [vmem:[#allocation7 + $0x4] sm:$0xf]
        %v3173 = vld [vmem:[#allocation7 + $0x8] sm:$0xf]
        %v3174 = vld [vmem:[#allocation7 + $0xc] sm:$0xf]
        %v3175 = vld [vmem:[#allocation7 + $0x10] sm:$0xf]
        %v3176 = vld [vmem:[#allocation7 + $0x14] sm:$0xf]
        %v3177 = vld [vmem:[#allocation7 + $0x18] sm:$0xf]
        %v3178 = vld [vmem:[#allocation7 + $0x1c] sm:$0xf]
        %v3179 = vld [vmem:[#allocation7 + $0x20] sm:$0xf]
        %v3180 = vld [vmem:[#allocation7 + $0x24] sm:$0xf]
        %v3181 = vld [vmem:[#allocation7 + $0x28] sm:$0xf]
        %v3182 = vld [vmem:[#allocation7 + $0x2c] sm:$0xf]
        %v3183 = vld [vmem:[#allocation7 + $0x30] sm:$0xf]
        %v3184 = vld [vmem:[#allocation7 + $0x34] sm:$0xf]
        %v3185 = vld [vmem:[#allocation7 + $0x38] sm:$0xf]
        %v3186 = vld [vmem:[#allocation7 + $0x3c] sm:$0xf]
        %v3187 = vld [vmem:[#allocation7 + $0x40] sm:$0xf]
        %v3188 = vld [vmem:[#allocation7 + $0x44] sm:$0xf]
        %v3189 = vld [vmem:[#allocation7 + $0x48] sm:$0xf]
        %v3190 = vld [vmem:[#allocation7 + $0x4c] sm:$0xf]
        %v3191 = vld [vmem:[#allocation7 + $0x50] sm:$0xf]
        %v3192 = vld [vmem:[#allocation7 + $0x54] sm:$0xf]
        %v3193 = vld [vmem:[#allocation7 + $0x58] sm:$0xf]
        %v3194 = vld [vmem:[#allocation7 + $0x5c] sm:$0xf]
        %v3195 = vld [vmem:[#allocation7 + $0x60] sm:$0xf]
        %v3196 = vld [vmem:[#allocation7 + $0x64] sm:$0xf]
        %v3197 = vld [vmem:[#allocation7 + $0x68] sm:$0xf]
        %v3198 = vld [vmem:[#allocation7 + $0x6c] sm:$0xf]
        %v3199 = vld [vmem:[#allocation7 + $0x70] sm:$0xf]
        %v3200 = vld [vmem:[#allocation7 + $0x74] sm:$0xf]
        %v3201 = vld [vmem:[#allocation7 + $0x78] sm:$0xf]
        %v3202 = vld [vmem:[#allocation7 + $0x7c] sm:$0xf]
        %v3203 = vld [vmem:[#allocation7 + $0x80] sm:$0xf]
        %v3204 = vld [vmem:[#allocation7 + $0x84] sm:$0xf]
        %v3205 = vld [vmem:[#allocation7 + $0x88] sm:$0xf]
        %v3206 = vld [vmem:[#allocation7 + $0x8c] sm:$0xf]
        %v3207 = vld [vmem:[#allocation7 + $0x90] sm:$0xf]
        %v3208 = vld [vmem:[#allocation7 + $0x94] sm:$0xf]
        %v3209 = vld [vmem:[#allocation7 + $0x98] sm:$0xf]
        %v3210 = vld [vmem:[#allocation7 + $0x9c] sm:$0xf]
        %v3211 = vld [vmem:[#allocation7 + $0xa0] sm:$0xf]
        %v3212 = vld [vmem:[#allocation7 + $0xa4] sm:$0xf]
        %v3213 = vld [vmem:[#allocation7 + $0xa8] sm:$0xf]
        %v3214 = vld [vmem:[#allocation7 + $0xac] sm:$0xf]
        %v3215 = vld [vmem:[#allocation7 + $0xb0] sm:$0xf]
        %v3216 = vld [vmem:[#allocation7 + $0xb4] sm:$0xf]
        %v3217 = vld [vmem:[#allocation7 + $0xb8] sm:$0xf]
        %v3218 = vld [vmem:[#allocation7 + $0xbc] sm:$0xf]
        %v3219 = vld [vmem:[#allocation7 + $0xc0] sm:$0xf]
        %v3220 = vld [vmem:[#allocation7 + $0xc4] sm:$0xf]
        %v3221 = vld [vmem:[#allocation7 + $0xc8] sm:$0xf]
        %v3222 = vld [vmem:[#allocation7 + $0xcc] sm:$0xf]
        %v3223 = vld [vmem:[#allocation7 + $0xd0] sm:$0xf]
        %v3224 = vld [vmem:[#allocation7 + $0xd4] sm:$0xf]
        %v3225 = vld [vmem:[#allocation7 + $0xd8] sm:$0xf]
        %v3226 = vld [vmem:[#allocation7 + $0xdc] sm:$0xf]
        %v3227 = vld [vmem:[#allocation7 + $0xe0] sm:$0xf]
        %v3228 = vld [vmem:[#allocation7 + $0xe4] sm:$0xf]
        %v3229 = vld [vmem:[#allocation7 + $0xe8] sm:$0xf]
        %v3230 = vld [vmem:[#allocation7 + $0xec] sm:$0xf]
        %v3231 = vld [vmem:[#allocation7 + $0xf0] sm:$0xf]
        %v3232 = vld [vmem:[#allocation7 + $0xf4] sm:$0xf]
        %v3233 = vld [vmem:[#allocation7 + $0xf8] sm:$0xf]
        %v3234 = vld [vmem:[#allocation7 + $0xfc] sm:$0xf]
        %v3235 = vld [vmem:[#allocation7 + $0x100] sm:$0xf]
        %v3236 = vld [vmem:[#allocation7 + $0x104] sm:$0xf]
        %v3237 = vld [vmem:[#allocation7 + $0x108] sm:$0xf]
        %v3238 = vld [vmem:[#allocation7 + $0x10c] sm:$0xf]
        %v3239 = vld [vmem:[#allocation7 + $0x110] sm:$0xf]
        %v3240 = vld [vmem:[#allocation7 + $0x114] sm:$0xf]
        %v3241 = vld [vmem:[#allocation7 + $0x118] sm:$0xf]
        %v3242 = vld [vmem:[#allocation7 + $0x11c] sm:$0xf]
        %v3243 = vld [vmem:[#allocation7 + $0x120] sm:$0xf]
        %v3244 = vld [vmem:[#allocation7 + $0x124] sm:$0xf]
        %v3245 = vld [vmem:[#allocation7 + $0x128] sm:$0xf]
        %v3246 = vld [vmem:[#allocation7 + $0x12c] sm:$0xf]
        %v3247 = vld [vmem:[#allocation7 + $0x130] sm:$0xf]
        %v3248 = vld [vmem:[#allocation7 + $0x134] sm:$0xf]
        %v3249 = vld [vmem:[#allocation7 + $0x138] sm:$0xf]
        %v3250 = vld [vmem:[#allocation7 + $0x13c] sm:$0xf]
        %v3251 = vld [vmem:[#allocation7 + $0x140] sm:$0xf]
        %v3252 = vld [vmem:[#allocation7 + $0x144] sm:$0xf]
        %v3253 = vld [vmem:[#allocation7 + $0x148] sm:$0xf]
        %v3254 = vld [vmem:[#allocation7 + $0x14c] sm:$0xf]
        %v3255 = vld [vmem:[#allocation7 + $0x150] sm:$0xf]
        %v3256 = vld [vmem:[#allocation7 + $0x154] sm:$0xf]
        %v3257 = vld [vmem:[#allocation7 + $0x158] sm:$0xf]
        %v3258 = vld [vmem:[#allocation7 + $0x15c] sm:$0xf]
        %v3259 = vld [vmem:[#allocation7 + $0x160] sm:$0xf]
        %v3260 = vld [vmem:[#allocation7 + $0x164] sm:$0xf]
        %v3261 = vld [vmem:[#allocation7 + $0x168] sm:$0xf]
        %v3262 = vld [vmem:[#allocation7 + $0x16c] sm:$0xf]
        %v3263 = vld [vmem:[#allocation7 + $0x170] sm:$0xf]
        %v3264 = vld [vmem:[#allocation7 + $0x174] sm:$0xf]
        %v3265 = vld [vmem:[#allocation7 + $0x178] sm:$0xf]
        %v3266 = vld [vmem:[#allocation7 + $0x17c] sm:$0xf]
        %v3315 = vunpack.c.l.b16 %v3219
        %v3316 = vunpack.c.l.b16 %v3220
        %v3317 = vunpack.c.l.b16 %v3221
        %v3318 = vunpack.c.l.b16 %v3222
        %v3319 = vunpack.c.l.b16 %v3223
        %v3320 = vunpack.c.l.b16 %v3224
        %v3321 = vunpack.c.l.b16 %v3225
        %v3322 = vunpack.c.l.b16 %v3226
        %v3323 = vunpack.c.l.b16 %v3227
        %v3324 = vunpack.c.l.b16 %v3228
        %v3325 = vunpack.c.l.b16 %v3229
        %v3326 = vunpack.c.l.b16 %v3230
        %v3327 = vunpack.c.l.b16 %v3231
        %v3328 = vunpack.c.l.b16 %v3232
        %v3329 = vunpack.c.l.b16 %v3233
        %v3330 = vunpack.c.l.b16 %v3234
        %v3331 = vunpack.c.l.b16 %v3235
        %v3332 = vunpack.c.l.b16 %v3236
        %v3333 = vunpack.c.l.b16 %v3237
        %v3334 = vunpack.c.l.b16 %v3238
        %v3335 = vunpack.c.l.b16 %v3239
        %v3336 = vunpack.c.l.b16 %v3240
        %v3337 = vunpack.c.l.b16 %v3241
        %v3338 = vunpack.c.l.b16 %v3242
        %v3339 = vunpack.c.l.b16 %v3243
        %v3340 = vunpack.c.l.b16 %v3244
        %v3341 = vunpack.c.l.b16 %v3245
        %v3342 = vunpack.c.l.b16 %v3246
        %v3343 = vunpack.c.l.b16 %v3247
        %v3344 = vunpack.c.l.b16 %v3248
        %v3345 = vunpack.c.l.b16 %v3249
        %v3346 = vunpack.c.l.b16 %v3250
        %v3347 = vunpack.c.l.b16 %v3251
        %v3348 = vunpack.c.l.b16 %v3252
        %v3349 = vunpack.c.l.b16 %v3253
        %v3350 = vunpack.c.l.b16 %v3254
        %v3351 = vunpack.c.l.b16 %v3255
        %v3352 = vunpack.c.l.b16 %v3256
        %v3353 = vunpack.c.l.b16 %v3257
        %v3354 = vunpack.c.l.b16 %v3258
        %v3355 = vunpack.c.l.b16 %v3259
        %v3356 = vunpack.c.l.b16 %v3260
        %v3357 = vunpack.c.l.b16 %v3261
        %v3358 = vunpack.c.l.b16 %v3262
        %v3359 = vunpack.c.l.b16 %v3263
        %v3360 = vunpack.c.l.b16 %v3264
        %v3361 = vunpack.c.l.b16 %v3265
        %v3362 = vunpack.c.l.b16 %v3266
        %v3363 = vpack.c.b16 %v3316, %v3315
        %v3364 = vpack.c.b16 %v3318, %v3317
        %v3365 = vpack.c.b16 %v3320, %v3319
        %v3366 = vpack.c.b16 %v3322, %v3321
        %v3367 = vpack.c.b16 %v3324, %v3323
        %v3368 = vpack.c.b16 %v3326, %v3325
        %v3369 = vpack.c.b16 %v3328, %v3327
        %v3370 = vpack.c.b16 %v3330, %v3329
        %v3371 = vpack.c.b16 %v3332, %v3331
        %v3372 = vpack.c.b16 %v3334, %v3333
        %v3373 = vpack.c.b16 %v3336, %v3335
        %v3374 = vpack.c.b16 %v3338, %v3337
        %v3375 = vpack.c.b16 %v3340, %v3339
        %v3376 = vpack.c.b16 %v3342, %v3341
        %v3377 = vpack.c.b16 %v3344, %v3343
        %v3378 = vpack.c.b16 %v3346, %v3345
        %v3379 = vpack.c.b16 %v3348, %v3347
        %v3380 = vpack.c.b16 %v3350, %v3349
        %v3381 = vpack.c.b16 %v3352, %v3351
        %v3382 = vpack.c.b16 %v3354, %v3353
        %v3383 = vpack.c.b16 %v3356, %v3355
        %v3384 = vpack.c.b16 %v3358, %v3357
        %v3385 = vpack.c.b16 %v3360, %v3359
        %v3386 = vpack.c.b16 %v3362, %v3361
        %3411 = vmatpush.bf16.msra.mxu0 %v3370
        %3412 = vmatpush.bf16.msra.mxu0 %v3369
        %3413 = vmatpush.bf16.msra.mxu0 %v3368
        %3414 = vmatpush.bf16.msra.mxu0 %v3367
        %3415 = vmatpush.bf16.msra.mxu0 %v3366
        %3416 = vmatpush.bf16.msra.mxu0 %v3365
        %3417 = vmatpush.bf16.msra.mxu0 %v3364
        %3418 = vmatpush.bf16.msra.mxu0 %v3363
        %3419 = vmatmul.bf16.gmra.mxu0 %v2948
        %v3420 = vpop.f32.mrf.mxu0
        %v3421 = vadd.f32 0.0, %v3420
        %v3422 = vpop.f32.mrf.mxu0
        %v3423 = vadd.f32 0.0, %v3422
        %3424 = vmatmul.bf16.gmra.mxu0 %v2947
        %v3425 = vpop.f32.mrf.mxu0
        %v3426 = vadd.f32 0.0, %v3425
        %v3427 = vpop.f32.mrf.mxu0
        %v3428 = vadd.f32 0.0, %v3427
        %3429 = vmatmul.bf16.gmra.mxu0 %v2949
        %v3430 = vpop.f32.mrf.mxu0
        %v3431 = vadd.f32 0.0, %v3430
        %v3432 = vpop.f32.mrf.mxu0
        %v3433 = vadd.f32 0.0, %v3432
        %3434 = vmatmul.bf16.gmra.mxu0 %v2950
        %v3435 = vpop.f32.mrf.mxu0
        %v3436 = vadd.f32 0.0, %v3435
        %v3437 = vpop.f32.mrf.mxu0
        %v3438 = vadd.f32 0.0, %v3437
        %3439 = vmatmul.bf16.gmra.mxu0 %v2951
        %v3440 = vpop.f32.mrf.mxu0
        %v3441 = vadd.f32 0.0, %v3440
        %v3442 = vpop.f32.mrf.mxu0
        %v3443 = vadd.f32 0.0, %v3442
        %3444 = vmatmul.bf16.gmra.mxu0 %v2952
        %v3445 = vpop.f32.mrf.mxu0
        %v3446 = vadd.f32 0.0, %v3445
        %v3447 = vpop.f32.mrf.mxu0
        %v3448 = vadd.f32 0.0, %v3447
        %3449 = vmatmul.bf16.gmra.mxu0 %v2953
        %v3450 = vpop.f32.mrf.mxu0
        %v3451 = vadd.f32 0.0, %v3450
        %v3452 = vpop.f32.mrf.mxu0
        %v3453 = vadd.f32 0.0, %v3452
        %3454 = vmatmul.bf16.gmra.mxu0 %v2954
        %v3455 = vpop.f32.mrf.mxu0
        %v3456 = vadd.f32 0.0, %v3455
        %v3457 = vpop.f32.mrf.mxu0
        %v3458 = vadd.f32 0.0, %v3457
        %3459 = vmatmul.bf16.gmra.mxu0 %v2955
        %v3460 = vpop.f32.mrf.mxu0
        %v3461 = vadd.f32 0.0, %v3460
        %v3462 = vpop.f32.mrf.mxu0
        %v3463 = vadd.f32 0.0, %v3462
        %3464 = vmatmul.bf16.gmra.mxu0 %v2956
        %v3465 = vpop.f32.mrf.mxu0
        %v3466 = vadd.f32 0.0, %v3465
        %v3467 = vpop.f32.mrf.mxu0
        %v3468 = vadd.f32 0.0, %v3467
        %3469 = vmatmul.bf16.gmra.mxu0 %v2957
        %v3470 = vpop.f32.mrf.mxu0
        %v3471 = vadd.f32 0.0, %v3470
        %v3472 = vpop.f32.mrf.mxu0
        %v3473 = vadd.f32 0.0, %v3472
        %3474 = vmatmul.bf16.gmra.mxu0 %v2958
        %v3475 = vpop.f32.mrf.mxu0
        %v3476 = vadd.f32 0.0, %v3475
        %v3477 = vpop.f32.mrf.mxu0
        %v3478 = vadd.f32 0.0, %v3477
        %3479 = vmatmul.bf16.gmra.mxu0 %v2959
        %v3480 = vpop.f32.mrf.mxu0
        %v3481 = vadd.f32 0.0, %v3480
        %v3482 = vpop.f32.mrf.mxu0
        %v3483 = vadd.f32 0.0, %v3482
        %3484 = vmatmul.bf16.gmra.mxu0 %v2960
        %v3485 = vpop.f32.mrf.mxu0
        %v3486 = vadd.f32 0.0, %v3485
        %v3487 = vpop.f32.mrf.mxu0
        %v3488 = vadd.f32 0.0, %v3487
        %3489 = vmatmul.bf16.gmra.mxu0 %v2961
        %v3490 = vpop.f32.mrf.mxu0
        %v3491 = vadd.f32 0.0, %v3490
        %v3492 = vpop.f32.mrf.mxu0
        %v3493 = vadd.f32 0.0, %v3492
        %3494 = vmatmul.bf16.gmra.mxu0 %v2962
        %v3495 = vpop.f32.mrf.mxu0
        %v3496 = vadd.f32 0.0, %v3495
        %v3497 = vpop.f32.mrf.mxu0
        %v3498 = vadd.f32 0.0, %v3497
        %3499 = vdwg.mxu0
        %3500 = vmatpush.bf16.msra.mxu0 %v3378
        %3501 = vmatpush.bf16.msra.mxu0 %v3377
        %3502 = vmatpush.bf16.msra.mxu0 %v3376
        %3503 = vmatpush.bf16.msra.mxu0 %v3375
        %3504 = vmatpush.bf16.msra.mxu0 %v3374
        %3505 = vmatpush.bf16.msra.mxu0 %v3373
        %3506 = vmatpush.bf16.msra.mxu0 %v3372
        %3507 = vmatpush.bf16.msra.mxu0 %v3371
        %3508 = vmatmul.bf16.gmra.mxu0 %v3044
        %v3509 = vpop.f32.mrf.mxu0
        %v3510 = vadd.f32 %v3421, %v3509
        %v3511 = vpop.f32.mrf.mxu0
        %v3512 = vadd.f32 %v3423, %v3511
        %3513 = vmatmul.bf16.gmra.mxu0 %v3043
        %v3514 = vpop.f32.mrf.mxu0
        %v3515 = vadd.f32 %v3426, %v3514
        %v3516 = vpop.f32.mrf.mxu0
        %v3517 = vadd.f32 %v3428, %v3516
        %3518 = vmatmul.bf16.gmra.mxu0 %v3045
        %v3519 = vpop.f32.mrf.mxu0
        %v3520 = vadd.f32 %v3431, %v3519
        %v3521 = vpop.f32.mrf.mxu0
        %v3522 = vadd.f32 %v3433, %v3521
        %3523 = vmatmul.bf16.gmra.mxu0 %v3046
        %v3524 = vpop.f32.mrf.mxu0
        %v3525 = vadd.f32 %v3436, %v3524
        %v3526 = vpop.f32.mrf.mxu0
        %v3527 = vadd.f32 %v3438, %v3526
        %3528 = vmatmul.bf16.gmra.mxu0 %v3047
        %v3529 = vpop.f32.mrf.mxu0
        %v3530 = vadd.f32 %v3441, %v3529
        %v3531 = vpop.f32.mrf.mxu0
        %v3532 = vadd.f32 %v3443, %v3531
        %3533 = vmatmul.bf16.gmra.mxu0 %v3048
        %v3534 = vpop.f32.mrf.mxu0
        %v3535 = vadd.f32 %v3446, %v3534
        %v3536 = vpop.f32.mrf.mxu0
        %v3537 = vadd.f32 %v3448, %v3536
        %3538 = vmatmul.bf16.gmra.mxu0 %v3049
        %v3539 = vpop.f32.mrf.mxu0
        %v3540 = vadd.f32 %v3451, %v3539
        %v3541 = vpop.f32.mrf.mxu0
        %v3542 = vadd.f32 %v3453, %v3541
        %3543 = vmatmul.bf16.gmra.mxu0 %v3050
        %v3544 = vpop.f32.mrf.mxu0
        %v3545 = vadd.f32 %v3456, %v3544
        %v3546 = vpop.f32.mrf.mxu0
        %v3547 = vadd.f32 %v3458, %v3546
        %3548 = vmatmul.bf16.gmra.mxu0 %v3051
        %v3549 = vpop.f32.mrf.mxu0
        %v3550 = vadd.f32 %v3461, %v3549
        %v3551 = vpop.f32.mrf.mxu0
        %v3552 = vadd.f32 %v3463, %v3551
        %3553 = vmatmul.bf16.gmra.mxu0 %v3052
        %v3554 = vpop.f32.mrf.mxu0
        %v3555 = vadd.f32 %v3466, %v3554
        %v3556 = vpop.f32.mrf.mxu0
        %v3557 = vadd.f32 %v3468, %v3556
        %3558 = vmatmul.bf16.gmra.mxu0 %v3053
        %v3559 = vpop.f32.mrf.mxu0
        %v3560 = vadd.f32 %v3471, %v3559
        %v3561 = vpop.f32.mrf.mxu0
        %v3562 = vadd.f32 %v3473, %v3561
        %3563 = vmatmul.bf16.gmra.mxu0 %v3054
        %v3564 = vpop.f32.mrf.mxu0
        %v3565 = vadd.f32 %v3476, %v3564
        %v3566 = vpop.f32.mrf.mxu0
        %v3567 = vadd.f32 %v3478, %v3566
        %3568 = vmatmul.bf16.gmra.mxu0 %v3055
        %v3569 = vpop.f32.mrf.mxu0
        %v3570 = vadd.f32 %v3481, %v3569
        %v3571 = vpop.f32.mrf.mxu0
        %v3572 = vadd.f32 %v3483, %v3571
        %3573 = vmatmul.bf16.gmra.mxu0 %v3056
        %v3574 = vpop.f32.mrf.mxu0
        %v3575 = vadd.f32 %v3486, %v3574
        %v3576 = vpop.f32.mrf.mxu0
        %v3577 = vadd.f32 %v3488, %v3576
        %3578 = vmatmul.bf16.gmra.mxu0 %v3057
        %v3579 = vpop.f32.mrf.mxu0
        %v3580 = vadd.f32 %v3491, %v3579
        %v3581 = vpop.f32.mrf.mxu0
        %v3582 = vadd.f32 %v3493, %v3581
        %3583 = vmatmul.bf16.gmra.mxu0 %v3058
        %v3584 = vpop.f32.mrf.mxu0
        %v3585 = vadd.f32 %v3496, %v3584
        %v3586 = vpop.f32.mrf.mxu0
        %v3587 = vadd.f32 %v3498, %v3586
        %3588 = vdwg.mxu0
        %3589 = vmatpush.bf16.msra.mxu0 %v3386
        %3590 = vmatpush.bf16.msra.mxu0 %v3385
        %3591 = vmatpush.bf16.msra.mxu0 %v3384
        %3592 = vmatpush.bf16.msra.mxu0 %v3383
        %3593 = vmatpush.bf16.msra.mxu0 %v3382
        %3594 = vmatpush.bf16.msra.mxu0 %v3381
        %3595 = vmatpush.bf16.msra.mxu0 %v3380
        %3596 = vmatpush.bf16.msra.mxu0 %v3379
        %3597 = vmatmul.bf16.gmra.mxu0 %v3140
        %v3598 = vpop.f32.mrf.mxu0
        %v3599 = vadd.f32 %v3510, %v3598
        %v3600 = vpop.f32.mrf.mxu0
        %v3601 = vadd.f32 %v3512, %v3600
        %3602 = vmatmul.bf16.gmra.mxu0 %v3139
        %v3603 = vpop.f32.mrf.mxu0
        %v3604 = vadd.f32 %v3515, %v3603
        %v3605 = vpop.f32.mrf.mxu0
        %v3606 = vadd.f32 %v3517, %v3605
        %3607 = vmatmul.bf16.gmra.mxu0 %v3141
        %v3608 = vpop.f32.mrf.mxu0
        %v3609 = vadd.f32 %v3520, %v3608
        %v3610 = vpop.f32.mrf.mxu0
        %v3611 = vadd.f32 %v3522, %v3610
        %3612 = vmatmul.bf16.gmra.mxu0 %v3142
        %v3613 = vpop.f32.mrf.mxu0
        %v3614 = vadd.f32 %v3525, %v3613
        %v3615 = vpop.f32.mrf.mxu0
        %v3616 = vadd.f32 %v3527, %v3615
        %3617 = vmatmul.bf16.gmra.mxu0 %v3143
        %v3618 = vpop.f32.mrf.mxu0
        %v3619 = vadd.f32 %v3530, %v3618
        %v3620 = vpop.f32.mrf.mxu0
        %v3621 = vadd.f32 %v3532, %v3620
        %3622 = vmatmul.bf16.gmra.mxu0 %v3144
        %v3623 = vpop.f32.mrf.mxu0
        %v3624 = vadd.f32 %v3535, %v3623
        %v3625 = vpop.f32.mrf.mxu0
        %v3626 = vadd.f32 %v3537, %v3625
        %3627 = vmatmul.bf16.gmra.mxu0 %v3145
        %v3628 = vpop.f32.mrf.mxu0
        %v3629 = vadd.f32 %v3540, %v3628
        %v3630 = vpop.f32.mrf.mxu0
        %v3631 = vadd.f32 %v3542, %v3630
        %3632 = vmatmul.bf16.gmra.mxu0 %v3146
        %v3633 = vpop.f32.mrf.mxu0
        %v3634 = vadd.f32 %v3545, %v3633
        %v3635 = vpop.f32.mrf.mxu0
        %v3636 = vadd.f32 %v3547, %v3635
        %3637 = vmatmul.bf16.gmra.mxu0 %v3147
        %v3638 = vpop.f32.mrf.mxu0
        %v3639 = vadd.f32 %v3550, %v3638
        %v3640 = vpop.f32.mrf.mxu0
        %v3641 = vadd.f32 %v3552, %v3640
        %3642 = vmatmul.bf16.gmra.mxu0 %v3148
        %v3643 = vpop.f32.mrf.mxu0
        %v3644 = vadd.f32 %v3555, %v3643
        %v3645 = vpop.f32.mrf.mxu0
        %v3646 = vadd.f32 %v3557, %v3645
        %3647 = vmatmul.bf16.gmra.mxu0 %v3149
        %v3648 = vpop.f32.mrf.mxu0
        %v3649 = vadd.f32 %v3560, %v3648
        %v3650 = vpop.f32.mrf.mxu0
        %v3651 = vadd.f32 %v3562, %v3650
        %3652 = vmatmul.bf16.gmra.mxu0 %v3150
        %v3653 = vpop.f32.mrf.mxu0
        %v3654 = vadd.f32 %v3565, %v3653
        %v3655 = vpop.f32.mrf.mxu0
        %v3656 = vadd.f32 %v3567, %v3655
        %3657 = vmatmul.bf16.gmra.mxu0 %v3151
        %v3658 = vpop.f32.mrf.mxu0
        %v3659 = vadd.f32 %v3570, %v3658
        %v3660 = vpop.f32.mrf.mxu0
        %v3661 = vadd.f32 %v3572, %v3660
        %3662 = vmatmul.bf16.gmra.mxu0 %v3152
        %v3663 = vpop.f32.mrf.mxu0
        %v3664 = vadd.f32 %v3575, %v3663
        %v3665 = vpop.f32.mrf.mxu0
        %v3666 = vadd.f32 %v3577, %v3665
        %3667 = vmatmul.bf16.gmra.mxu0 %v3153
        %v3668 = vpop.f32.mrf.mxu0
        %v3669 = vadd.f32 %v3580, %v3668
        %v3670 = vpop.f32.mrf.mxu0
        %v3671 = vadd.f32 %v3582, %v3670
        %3672 = vmatmul.bf16.gmra.mxu0 %v3154
        %v3673 = vpop.f32.mrf.mxu0
        %v3674 = vadd.f32 %v3585, %v3673
        %v3675 = vpop.f32.mrf.mxu0
        %v3676 = vadd.f32 %v3587, %v3675
        %3677 = vdwg.mxu0
        %v3726 = vunpack.c.l.b16 %v3171
        %v3727 = vunpack.c.l.b16 %v3172
        %v3728 = vunpack.c.l.b16 %v3173
        %v3729 = vunpack.c.l.b16 %v3174
        %v3730 = vunpack.c.l.b16 %v3175
        %v3731 = vunpack.c.l.b16 %v3176
        %v3732 = vunpack.c.l.b16 %v3177
        %v3733 = vunpack.c.l.b16 %v3178
        %v3734 = vunpack.c.l.b16 %v3179
        %v3735 = vunpack.c.l.b16 %v3180
        %v3736 = vunpack.c.l.b16 %v3181
        %v3737 = vunpack.c.l.b16 %v3182
        %v3738 = vunpack.c.l.b16 %v3183
        %v3739 = vunpack.c.l.b16 %v3184
        %v3740 = vunpack.c.l.b16 %v3185
        %v3741 = vunpack.c.l.b16 %v3186
        %v3742 = vunpack.c.l.b16 %v3187
        %v3743 = vunpack.c.l.b16 %v3188
        %v3744 = vunpack.c.l.b16 %v3189
        %v3745 = vunpack.c.l.b16 %v3190
        %v3746 = vunpack.c.l.b16 %v3191
        %v3747 = vunpack.c.l.b16 %v3192
        %v3748 = vunpack.c.l.b16 %v3193
        %v3749 = vunpack.c.l.b16 %v3194
        %v3750 = vunpack.c.l.b16 %v3195
        %v3751 = vunpack.c.l.b16 %v3196
        %v3752 = vunpack.c.l.b16 %v3197
        %v3753 = vunpack.c.l.b16 %v3198
        %v3754 = vunpack.c.l.b16 %v3199
        %v3755 = vunpack.c.l.b16 %v3200
        %v3756 = vunpack.c.l.b16 %v3201
        %v3757 = vunpack.c.l.b16 %v3202
        %v3758 = vunpack.c.l.b16 %v3203
        %v3759 = vunpack.c.l.b16 %v3204
        %v3760 = vunpack.c.l.b16 %v3205
        %v3761 = vunpack.c.l.b16 %v3206
        %v3762 = vunpack.c.l.b16 %v3207
        %v3763 = vunpack.c.l.b16 %v3208
        %v3764 = vunpack.c.l.b16 %v3209
        %v3765 = vunpack.c.l.b16 %v3210
        %v3766 = vunpack.c.l.b16 %v3211
        %v3767 = vunpack.c.l.b16 %v3212
        %v3768 = vunpack.c.l.b16 %v3213
        %v3769 = vunpack.c.l.b16 %v3214
        %v3770 = vunpack.c.l.b16 %v3215
        %v3771 = vunpack.c.l.b16 %v3216
        %v3772 = vunpack.c.l.b16 %v3217
        %v3773 = vunpack.c.l.b16 %v3218
        %v3774 = vpack.c.b16 %v3727, %v3726
        %v3775 = vpack.c.b16 %v3729, %v3728
        %v3776 = vpack.c.b16 %v3731, %v3730
        %v3777 = vpack.c.b16 %v3733, %v3732
        %v3778 = vpack.c.b16 %v3735, %v3734
        %v3779 = vpack.c.b16 %v3737, %v3736
        %v3780 = vpack.c.b16 %v3739, %v3738
        %v3781 = vpack.c.b16 %v3741, %v3740
        %v3782 = vpack.c.b16 %v3743, %v3742
        %v3783 = vpack.c.b16 %v3745, %v3744
        %v3784 = vpack.c.b16 %v3747, %v3746
        %v3785 = vpack.c.b16 %v3749, %v3748
        %v3786 = vpack.c.b16 %v3751, %v3750
        %v3787 = vpack.c.b16 %v3753, %v3752
        %v3788 = vpack.c.b16 %v3755, %v3754
        %v3789 = vpack.c.b16 %v3757, %v3756
        %v3790 = vpack.c.b16 %v3759, %v3758
        %v3791 = vpack.c.b16 %v3761, %v3760
        %v3792 = vpack.c.b16 %v3763, %v3762
        %v3793 = vpack.c.b16 %v3765, %v3764
        %v3794 = vpack.c.b16 %v3767, %v3766
        %v3795 = vpack.c.b16 %v3769, %v3768
        %v3796 = vpack.c.b16 %v3771, %v3770
        %v3797 = vpack.c.b16 %v3773, %v3772
        %3822 = vmatpush.bf16.msra.mxu0 %v3781
        %3823 = vmatpush.bf16.msra.mxu0 %v3780
        %3824 = vmatpush.bf16.msra.mxu0 %v3779
        %3825 = vmatpush.bf16.msra.mxu0 %v3778
        %3826 = vmatpush.bf16.msra.mxu0 %v3777
        %3827 = vmatpush.bf16.msra.mxu0 %v3776
        %3828 = vmatpush.bf16.msra.mxu0 %v3775
        %3829 = vmatpush.bf16.msra.mxu0 %v3774
        %3830 = vmatmul.bf16.gmra.mxu0 %v2947
        %v3831 = vpop.f32.mrf.mxu0
        %v3832 = vadd.f32 %v3599, %v3831
        %v3833 = vpop.f32.mrf.mxu0
        %v3834 = vadd.f32 %v3601, %v3833
        %3835 = vmatmul.bf16.gmra.mxu0 %v2948
        %v3836 = vpop.f32.mrf.mxu0
        %v3837 = vadd.f32 %v3604, %v3836
        %v3838 = vpop.f32.mrf.mxu0
        %v3839 = vadd.f32 %v3606, %v3838
        %3840 = vmatmul.bf16.gmra.mxu0 %v2947
        %v3841 = vpop.f32.mrf.mxu0
        %v3842 = vadd.f32 %v3609, %v3841
        %v3843 = vpop.f32.mrf.mxu0
        %v3844 = vadd.f32 %v3611, %v3843
        %3845 = vmatmul.bf16.gmra.mxu0 %v2949
        %v3846 = vpop.f32.mrf.mxu0
        %v3847 = vadd.f32 %v3614, %v3846
        %v3848 = vpop.f32.mrf.mxu0
        %v3849 = vadd.f32 %v3616, %v3848
        %3850 = vmatmul.bf16.gmra.mxu0 %v2950
        %v3851 = vpop.f32.mrf.mxu0
        %v3852 = vadd.f32 %v3619, %v3851
        %v3853 = vpop.f32.mrf.mxu0
        %v3854 = vadd.f32 %v3621, %v3853
        %3855 = vmatmul.bf16.gmra.mxu0 %v2951
        %v3856 = vpop.f32.mrf.mxu0
        %v3857 = vadd.f32 %v3624, %v3856
        %v3858 = vpop.f32.mrf.mxu0
        %v3859 = vadd.f32 %v3626, %v3858
        %3860 = vmatmul.bf16.gmra.mxu0 %v2952
        %v3861 = vpop.f32.mrf.mxu0
        %v3862 = vadd.f32 %v3629, %v3861
        %v3863 = vpop.f32.mrf.mxu0
        %v3864 = vadd.f32 %v3631, %v3863
        %3865 = vmatmul.bf16.gmra.mxu0 %v2953
        %v3866 = vpop.f32.mrf.mxu0
        %v3867 = vadd.f32 %v3634, %v3866
        %v3868 = vpop.f32.mrf.mxu0
        %v3869 = vadd.f32 %v3636, %v3868
        %3870 = vmatmul.bf16.gmra.mxu0 %v2954
        %v3871 = vpop.f32.mrf.mxu0
        %v3872 = vadd.f32 %v3639, %v3871
        %v3873 = vpop.f32.mrf.mxu0
        %v3874 = vadd.f32 %v3641, %v3873
        %3875 = vmatmul.bf16.gmra.mxu0 %v2955
        %v3876 = vpop.f32.mrf.mxu0
        %v3877 = vadd.f32 %v3644, %v3876
        %v3878 = vpop.f32.mrf.mxu0
        %v3879 = vadd.f32 %v3646, %v3878
        %3880 = vmatmul.bf16.gmra.mxu0 %v2956
        %v3881 = vpop.f32.mrf.mxu0
        %v3882 = vadd.f32 %v3649, %v3881
        %v3883 = vpop.f32.mrf.mxu0
        %v3884 = vadd.f32 %v3651, %v3883
        %3885 = vmatmul.bf16.gmra.mxu0 %v2957
        %v3886 = vpop.f32.mrf.mxu0
        %v3887 = vadd.f32 %v3654, %v3886
        %v3888 = vpop.f32.mrf.mxu0
        %v3889 = vadd.f32 %v3656, %v3888
        %3890 = vmatmul.bf16.gmra.mxu0 %v2958
        %v3891 = vpop.f32.mrf.mxu0
        %v3892 = vadd.f32 %v3659, %v3891
        %v3893 = vpop.f32.mrf.mxu0
        %v3894 = vadd.f32 %v3661, %v3893
        %3895 = vmatmul.bf16.gmra.mxu0 %v2959
        %v3896 = vpop.f32.mrf.mxu0
        %v3897 = vadd.f32 %v3664, %v3896
        %v3898 = vpop.f32.mrf.mxu0
        %v3899 = vadd.f32 %v3666, %v3898
        %3900 = vmatmul.bf16.gmra.mxu0 %v2960
        %v3901 = vpop.f32.mrf.mxu0
        %v3902 = vadd.f32 %v3669, %v3901
        %v3903 = vpop.f32.mrf.mxu0
        %v3904 = vadd.f32 %v3671, %v3903
        %3905 = vmatmul.bf16.gmra.mxu0 %v2961
        %v3906 = vpop.f32.mrf.mxu0
        %v3907 = vadd.f32 %v3674, %v3906
        %v3908 = vpop.f32.mrf.mxu0
        %v3909 = vadd.f32 %v3676, %v3908
        %3910 = vdwg.mxu0
        %3911 = vmatpush.bf16.msra.mxu0 %v3789
        %3912 = vmatpush.bf16.msra.mxu0 %v3788
        %3913 = vmatpush.bf16.msra.mxu0 %v3787
        %3914 = vmatpush.bf16.msra.mxu0 %v3786
        %3915 = vmatpush.bf16.msra.mxu0 %v3785
        %3916 = vmatpush.bf16.msra.mxu0 %v3784
        %3917 = vmatpush.bf16.msra.mxu0 %v3783
        %3918 = vmatpush.bf16.msra.mxu0 %v3782
        %3919 = vmatmul.bf16.gmra.mxu0 %v3043
        %v3920 = vpop.f32.mrf.mxu0
        %v3921 = vadd.f32 %v3832, %v3920
        %v3922 = vpop.f32.mrf.mxu0
        %v3923 = vadd.f32 %v3834, %v3922
        %3924 = vmatmul.bf16.gmra.mxu0 %v3044
        %v3925 = vpop.f32.mrf.mxu0
        %v3926 = vadd.f32 %v3837, %v3925
        %v3927 = vpop.f32.mrf.mxu0
        %v3928 = vadd.f32 %v3839, %v3927
        %3929 = vmatmul.bf16.gmra.mxu0 %v3043
        %v3930 = vpop.f32.mrf.mxu0
        %v3931 = vadd.f32 %v3842, %v3930
        %v3932 = vpop.f32.mrf.mxu0
        %v3933 = vadd.f32 %v3844, %v3932
        %3934 = vmatmul.bf16.gmra.mxu0 %v3045
        %v3935 = vpop.f32.mrf.mxu0
        %v3936 = vadd.f32 %v3847, %v3935
        %v3937 = vpop.f32.mrf.mxu0
        %v3938 = vadd.f32 %v3849, %v3937
        %3939 = vmatmul.bf16.gmra.mxu0 %v3046
        %v3940 = vpop.f32.mrf.mxu0
        %v3941 = vadd.f32 %v3852, %v3940
        %v3942 = vpop.f32.mrf.mxu0
        %v3943 = vadd.f32 %v3854, %v3942
        %3944 = vmatmul.bf16.gmra.mxu0 %v3047
        %v3945 = vpop.f32.mrf.mxu0
        %v3946 = vadd.f32 %v3857, %v3945
        %v3947 = vpop.f32.mrf.mxu0
        %v3948 = vadd.f32 %v3859, %v3947
        %3949 = vmatmul.bf16.gmra.mxu0 %v3048
        %v3950 = vpop.f32.mrf.mxu0
        %v3951 = vadd.f32 %v3862, %v3950
        %v3952 = vpop.f32.mrf.mxu0
        %v3953 = vadd.f32 %v3864, %v3952
        %3954 = vmatmul.bf16.gmra.mxu0 %v3049
        %v3955 = vpop.f32.mrf.mxu0
        %v3956 = vadd.f32 %v3867, %v3955
        %v3957 = vpop.f32.mrf.mxu0
        %v3958 = vadd.f32 %v3869, %v3957
        %3959 = vmatmul.bf16.gmra.mxu0 %v3050
        %v3960 = vpop.f32.mrf.mxu0
        %v3961 = vadd.f32 %v3872, %v3960
        %v3962 = vpop.f32.mrf.mxu0
        %v3963 = vadd.f32 %v3874, %v3962
        %3964 = vmatmul.bf16.gmra.mxu0 %v3051
        %v3965 = vpop.f32.mrf.mxu0
        %v3966 = vadd.f32 %v3877, %v3965
        %v3967 = vpop.f32.mrf.mxu0
        %v3968 = vadd.f32 %v3879, %v3967
        %3969 = vmatmul.bf16.gmra.mxu0 %v3052
        %v3970 = vpop.f32.mrf.mxu0
        %v3971 = vadd.f32 %v3882, %v3970
        %v3972 = vpop.f32.mrf.mxu0
        %v3973 = vadd.f32 %v3884, %v3972
        %3974 = vmatmul.bf16.gmra.mxu0 %v3053
        %v3975 = vpop.f32.mrf.mxu0
        %v3976 = vadd.f32 %v3887, %v3975
        %v3977 = vpop.f32.mrf.mxu0
        %v3978 = vadd.f32 %v3889, %v3977
        %3979 = vmatmul.bf16.gmra.mxu0 %v3054
        %v3980 = vpop.f32.mrf.mxu0
        %v3981 = vadd.f32 %v3892, %v3980
        %v3982 = vpop.f32.mrf.mxu0
        %v3983 = vadd.f32 %v3894, %v3982
        %3984 = vmatmul.bf16.gmra.mxu0 %v3055
        %v3985 = vpop.f32.mrf.mxu0
        %v3986 = vadd.f32 %v3897, %v3985
        %v3987 = vpop.f32.mrf.mxu0
        %v3988 = vadd.f32 %v3899, %v3987
        %3989 = vmatmul.bf16.gmra.mxu0 %v3056
        %v3990 = vpop.f32.mrf.mxu0
        %v3991 = vadd.f32 %v3902, %v3990
        %v3992 = vpop.f32.mrf.mxu0
        %v3993 = vadd.f32 %v3904, %v3992
        %3994 = vmatmul.bf16.gmra.mxu0 %v3057
        %v3995 = vpop.f32.mrf.mxu0
        %v3996 = vadd.f32 %v3907, %v3995
        %v3997 = vpop.f32.mrf.mxu0
        %v3998 = vadd.f32 %v3909, %v3997
        %3999 = vdwg.mxu0
        %4000 = vmatpush.bf16.msra.mxu0 %v3797
        %4001 = vmatpush.bf16.msra.mxu0 %v3796
        %4002 = vmatpush.bf16.msra.mxu0 %v3795
        %4003 = vmatpush.bf16.msra.mxu0 %v3794
        %4004 = vmatpush.bf16.msra.mxu0 %v3793
        %4005 = vmatpush.bf16.msra.mxu0 %v3792
        %4006 = vmatpush.bf16.msra.mxu0 %v3791
        %4007 = vmatpush.bf16.msra.mxu0 %v3790
        %4008 = vmatmul.bf16.gmra.mxu0 %v3139
        %v4009 = vpop.f32.mrf.mxu0
        %v4010 = vadd.f32 %v3921, %v4009
        %v4011 = vpop.f32.mrf.mxu0
        %v4012 = vadd.f32 %v3923, %v4011
        %4013 = vmatmul.bf16.gmra.mxu0 %v3140
        %v4014 = vpop.f32.mrf.mxu0
        %v4015 = vadd.f32 %v3926, %v4014
        %v4016 = vpop.f32.mrf.mxu0
        %v4017 = vadd.f32 %v3928, %v4016
        %4018 = vmatmul.bf16.gmra.mxu0 %v3139
        %v4019 = vpop.f32.mrf.mxu0
        %v4020 = vadd.f32 %v3931, %v4019
        %v4021 = vpop.f32.mrf.mxu0
        %v4022 = vadd.f32 %v3933, %v4021
        %4023 = vmatmul.bf16.gmra.mxu0 %v3141
        %v4024 = vpop.f32.mrf.mxu0
        %v4025 = vadd.f32 %v3936, %v4024
        %v4026 = vpop.f32.mrf.mxu0
        %v4027 = vadd.f32 %v3938, %v4026
        %4028 = vmatmul.bf16.gmra.mxu0 %v3142
        %v4029 = vpop.f32.mrf.mxu0
        %v4030 = vadd.f32 %v3941, %v4029
        %v4031 = vpop.f32.mrf.mxu0
        %v4032 = vadd.f32 %v3943, %v4031
        %4033 = vmatmul.bf16.gmra.mxu0 %v3143
        %v4034 = vpop.f32.mrf.mxu0
        %v4035 = vadd.f32 %v3946, %v4034
        %v4036 = vpop.f32.mrf.mxu0
        %v4037 = vadd.f32 %v3948, %v4036
        %4038 = vmatmul.bf16.gmra.mxu0 %v3144
        %v4039 = vpop.f32.mrf.mxu0
        %v4040 = vadd.f32 %v3951, %v4039
        %v4041 = vpop.f32.mrf.mxu0
        %v4042 = vadd.f32 %v3953, %v4041
        %4043 = vmatmul.bf16.gmra.mxu0 %v3145
        %v4044 = vpop.f32.mrf.mxu0
        %v4045 = vadd.f32 %v3956, %v4044
        %v4046 = vpop.f32.mrf.mxu0
        %v4047 = vadd.f32 %v3958, %v4046
        %4048 = vmatmul.bf16.gmra.mxu0 %v3146
        %v4049 = vpop.f32.mrf.mxu0
        %v4050 = vadd.f32 %v3961, %v4049
        %v4051 = vpop.f32.mrf.mxu0
        %v4052 = vadd.f32 %v3963, %v4051
        %4053 = vmatmul.bf16.gmra.mxu0 %v3147
        %v4054 = vpop.f32.mrf.mxu0
        %v4055 = vadd.f32 %v3966, %v4054
        %v4056 = vpop.f32.mrf.mxu0
        %v4057 = vadd.f32 %v3968, %v4056
        %4058 = vmatmul.bf16.gmra.mxu0 %v3148
        %v4059 = vpop.f32.mrf.mxu0
        %v4060 = vadd.f32 %v3971, %v4059
        %v4061 = vpop.f32.mrf.mxu0
        %v4062 = vadd.f32 %v3973, %v4061
        %4063 = vmatmul.bf16.gmra.mxu0 %v3149
        %v4064 = vpop.f32.mrf.mxu0
        %v4065 = vadd.f32 %v3976, %v4064
        %v4066 = vpop.f32.mrf.mxu0
        %v4067 = vadd.f32 %v3978, %v4066
        %4068 = vmatmul.bf16.gmra.mxu0 %v3150
        %v4069 = vpop.f32.mrf.mxu0
        %v4070 = vadd.f32 %v3981, %v4069
        %v4071 = vpop.f32.mrf.mxu0
        %v4072 = vadd.f32 %v3983, %v4071
        %4073 = vmatmul.bf16.gmra.mxu0 %v3151
        %v4074 = vpop.f32.mrf.mxu0
        %v4075 = vadd.f32 %v3986, %v4074
        %v4076 = vpop.f32.mrf.mxu0
        %v4077 = vadd.f32 %v3988, %v4076
        %4078 = vmatmul.bf16.gmra.mxu0 %v3152
        %v4079 = vpop.f32.mrf.mxu0
        %v4080 = vadd.f32 %v3991, %v4079
        %v4081 = vpop.f32.mrf.mxu0
        %v4082 = vadd.f32 %v3993, %v4081
        %4083 = vmatmul.bf16.gmra.mxu0 %v3153
        %v4084 = vpop.f32.mrf.mxu0
        %v4085 = vadd.f32 %v3996, %v4084
        %v4086 = vpop.f32.mrf.mxu0
        %v4087 = vadd.f32 %v3998, %v4086
        %4088 = vdwg.mxu0
        %v4089 = vld [vmem:[#allocation7 + $0x180] sm:$0xf]
        %v4090 = vld [vmem:[#allocation7 + $0x184] sm:$0xf]
        %v4091 = vld [vmem:[#allocation7 + $0x188] sm:$0xf]
        %v4092 = vld [vmem:[#allocation7 + $0x18c] sm:$0xf]
        %v4093 = vld [vmem:[#allocation7 + $0x190] sm:$0xf]
        %v4094 = vld [vmem:[#allocation7 + $0x194] sm:$0xf]
        %v4095 = vld [vmem:[#allocation7 + $0x198] sm:$0xf]
        %v4096 = vld [vmem:[#allocation7 + $0x19c] sm:$0xf]
        %v4097 = vld [vmem:[#allocation7 + $0x1a0] sm:$0xf]
        %v4098 = vld [vmem:[#allocation7 + $0x1a4] sm:$0xf]
        %v4099 = vld [vmem:[#allocation7 + $0x1a8] sm:$0xf]
        %v4100 = vld [vmem:[#allocation7 + $0x1ac] sm:$0xf]
        %v4101 = vld [vmem:[#allocation7 + $0x1b0] sm:$0xf]
        %v4102 = vld [vmem:[#allocation7 + $0x1b4] sm:$0xf]
        %v4103 = vld [vmem:[#allocation7 + $0x1b8] sm:$0xf]
        %v4104 = vld [vmem:[#allocation7 + $0x1bc] sm:$0xf]
        %v4105 = vld [vmem:[#allocation7 + $0x1c0] sm:$0xf]
        %v4106 = vld [vmem:[#allocation7 + $0x1c4] sm:$0xf]
        %v4107 = vld [vmem:[#allocation7 + $0x1c8] sm:$0xf]
        %v4108 = vld [vmem:[#allocation7 + $0x1cc] sm:$0xf]
        %v4109 = vld [vmem:[#allocation7 + $0x1d0] sm:$0xf]
        %v4110 = vld [vmem:[#allocation7 + $0x1d4] sm:$0xf]
        %v4111 = vld [vmem:[#allocation7 + $0x1d8] sm:$0xf]
        %v4112 = vld [vmem:[#allocation7 + $0x1dc] sm:$0xf]
        %v4113 = vld [vmem:[#allocation7 + $0x1e0] sm:$0xf]
        %v4114 = vld [vmem:[#allocation7 + $0x1e4] sm:$0xf]
        %v4115 = vld [vmem:[#allocation7 + $0x1e8] sm:$0xf]
        %v4116 = vld [vmem:[#allocation7 + $0x1ec] sm:$0xf]
        %v4117 = vld [vmem:[#allocation7 + $0x1f0] sm:$0xf]
        %v4118 = vld [vmem:[#allocation7 + $0x1f4] sm:$0xf]
        %v4119 = vld [vmem:[#allocation7 + $0x1f8] sm:$0xf]
        %v4120 = vld [vmem:[#allocation7 + $0x1fc] sm:$0xf]
        %v4121 = vld [vmem:[#allocation7 + $0x200] sm:$0xf]
        %v4122 = vld [vmem:[#allocation7 + $0x204] sm:$0xf]
        %v4123 = vld [vmem:[#allocation7 + $0x208] sm:$0xf]
        %v4124 = vld [vmem:[#allocation7 + $0x20c] sm:$0xf]
        %v4125 = vld [vmem:[#allocation7 + $0x210] sm:$0xf]
        %v4126 = vld [vmem:[#allocation7 + $0x214] sm:$0xf]
        %v4127 = vld [vmem:[#allocation7 + $0x218] sm:$0xf]
        %v4128 = vld [vmem:[#allocation7 + $0x21c] sm:$0xf]
        %v4129 = vld [vmem:[#allocation7 + $0x220] sm:$0xf]
        %v4130 = vld [vmem:[#allocation7 + $0x224] sm:$0xf]
        %v4131 = vld [vmem:[#allocation7 + $0x228] sm:$0xf]
        %v4132 = vld [vmem:[#allocation7 + $0x22c] sm:$0xf]
        %v4133 = vld [vmem:[#allocation7 + $0x230] sm:$0xf]
        %v4134 = vld [vmem:[#allocation7 + $0x234] sm:$0xf]
        %v4135 = vld [vmem:[#allocation7 + $0x238] sm:$0xf]
        %v4136 = vld [vmem:[#allocation7 + $0x23c] sm:$0xf]
        %v4185 = vunpack.c.l.b16 %v4089
        %v4186 = vunpack.c.l.b16 %v4090
        %v4187 = vunpack.c.l.b16 %v4091
        %v4188 = vunpack.c.l.b16 %v4092
        %v4189 = vunpack.c.l.b16 %v4093
        %v4190 = vunpack.c.l.b16 %v4094
        %v4191 = vunpack.c.l.b16 %v4095
        %v4192 = vunpack.c.l.b16 %v4096
        %v4193 = vunpack.c.l.b16 %v4097
        %v4194 = vunpack.c.l.b16 %v4098
        %v4195 = vunpack.c.l.b16 %v4099
        %v4196 = vunpack.c.l.b16 %v4100
        %v4197 = vunpack.c.l.b16 %v4101
        %v4198 = vunpack.c.l.b16 %v4102
        %v4199 = vunpack.c.l.b16 %v4103
        %v4200 = vunpack.c.l.b16 %v4104
        %v4201 = vunpack.c.l.b16 %v4105
        %v4202 = vunpack.c.l.b16 %v4106
        %v4203 = vunpack.c.l.b16 %v4107
        %v4204 = vunpack.c.l.b16 %v4108
        %v4205 = vunpack.c.l.b16 %v4109
        %v4206 = vunpack.c.l.b16 %v4110
        %v4207 = vunpack.c.l.b16 %v4111
        %v4208 = vunpack.c.l.b16 %v4112
        %v4209 = vunpack.c.l.b16 %v4113
        %v4210 = vunpack.c.l.b16 %v4114
        %v4211 = vunpack.c.l.b16 %v4115
        %v4212 = vunpack.c.l.b16 %v4116
        %v4213 = vunpack.c.l.b16 %v4117
        %v4214 = vunpack.c.l.b16 %v4118
        %v4215 = vunpack.c.l.b16 %v4119
        %v4216 = vunpack.c.l.b16 %v4120
        %v4217 = vunpack.c.l.b16 %v4121
        %v4218 = vunpack.c.l.b16 %v4122
        %v4219 = vunpack.c.l.b16 %v4123
        %v4220 = vunpack.c.l.b16 %v4124
        %v4221 = vunpack.c.l.b16 %v4125
        %v4222 = vunpack.c.l.b16 %v4126
        %v4223 = vunpack.c.l.b16 %v4127
        %v4224 = vunpack.c.l.b16 %v4128
        %v4225 = vunpack.c.l.b16 %v4129
        %v4226 = vunpack.c.l.b16 %v4130
        %v4227 = vunpack.c.l.b16 %v4131
        %v4228 = vunpack.c.l.b16 %v4132
        %v4229 = vunpack.c.l.b16 %v4133
        %v4230 = vunpack.c.l.b16 %v4134
        %v4231 = vunpack.c.l.b16 %v4135
        %v4232 = vunpack.c.l.b16 %v4136
        %v4233 = vpack.c.b16 %v4186, %v4185
        %v4234 = vpack.c.b16 %v4188, %v4187
        %v4235 = vpack.c.b16 %v4190, %v4189
        %v4236 = vpack.c.b16 %v4192, %v4191
        %v4237 = vpack.c.b16 %v4194, %v4193
        %v4238 = vpack.c.b16 %v4196, %v4195
        %v4239 = vpack.c.b16 %v4198, %v4197
        %v4240 = vpack.c.b16 %v4200, %v4199
        %v4241 = vpack.c.b16 %v4202, %v4201
        %v4242 = vpack.c.b16 %v4204, %v4203
        %v4243 = vpack.c.b16 %v4206, %v4205
        %v4244 = vpack.c.b16 %v4208, %v4207
        %v4245 = vpack.c.b16 %v4210, %v4209
        %v4246 = vpack.c.b16 %v4212, %v4211
        %v4247 = vpack.c.b16 %v4214, %v4213
        %v4248 = vpack.c.b16 %v4216, %v4215
        %v4249 = vpack.c.b16 %v4218, %v4217
        %v4250 = vpack.c.b16 %v4220, %v4219
        %v4251 = vpack.c.b16 %v4222, %v4221
        %v4252 = vpack.c.b16 %v4224, %v4223
        %v4253 = vpack.c.b16 %v4226, %v4225
        %v4254 = vpack.c.b16 %v4228, %v4227
        %v4255 = vpack.c.b16 %v4230, %v4229
        %v4256 = vpack.c.b16 %v4232, %v4231
        %4281 = vmatpush.bf16.msra.mxu0 %v4240
        %4282 = vmatpush.bf16.msra.mxu0 %v4239
        %4283 = vmatpush.bf16.msra.mxu0 %v4238
        %4284 = vmatpush.bf16.msra.mxu0 %v4237
        %4285 = vmatpush.bf16.msra.mxu0 %v4236
        %4286 = vmatpush.bf16.msra.mxu0 %v4235
        %4287 = vmatpush.bf16.msra.mxu0 %v4234
        %4288 = vmatpush.bf16.msra.mxu0 %v4233
        %4289 = vmatmul.bf16.gmra.mxu0 %v2947
        %v4290 = vpop.f32.mrf.mxu0
        %v4291 = vadd.f32 0.0, %v4290
        %v4292 = vpop.f32.mrf.mxu0
        %v4293 = vadd.f32 0.0, %v4292
        %4294 = vmatmul.bf16.gmra.mxu0 %v2949
        %v4295 = vpop.f32.mrf.mxu0
        %v4296 = vadd.f32 0.0, %v4295
        %v4297 = vpop.f32.mrf.mxu0
        %v4298 = vadd.f32 0.0, %v4297
        %4299 = vmatmul.bf16.gmra.mxu0 %v2950
        %v4300 = vpop.f32.mrf.mxu0
        %v4301 = vadd.f32 0.0, %v4300
        %v4302 = vpop.f32.mrf.mxu0
        %v4303 = vadd.f32 0.0, %v4302
        %4304 = vmatmul.bf16.gmra.mxu0 %v2951
        %v4305 = vpop.f32.mrf.mxu0
        %v4306 = vadd.f32 0.0, %v4305
        %v4307 = vpop.f32.mrf.mxu0
        %v4308 = vadd.f32 0.0, %v4307
        %4309 = vmatmul.bf16.gmra.mxu0 %v2952
        %v4310 = vpop.f32.mrf.mxu0
        %v4311 = vadd.f32 0.0, %v4310
        %v4312 = vpop.f32.mrf.mxu0
        %v4313 = vadd.f32 0.0, %v4312
        %4314 = vmatmul.bf16.gmra.mxu0 %v2953
        %v4315 = vpop.f32.mrf.mxu0
        %v4316 = vadd.f32 0.0, %v4315
        %v4317 = vpop.f32.mrf.mxu0
        %v4318 = vadd.f32 0.0, %v4317
        %4319 = vmatmul.bf16.gmra.mxu0 %v2954
        %v4320 = vpop.f32.mrf.mxu0
        %v4321 = vadd.f32 0.0, %v4320
        %v4322 = vpop.f32.mrf.mxu0
        %v4323 = vadd.f32 0.0, %v4322
        %4324 = vmatmul.bf16.gmra.mxu0 %v2955
        %v4325 = vpop.f32.mrf.mxu0
        %v4326 = vadd.f32 0.0, %v4325
        %v4327 = vpop.f32.mrf.mxu0
        %v4328 = vadd.f32 0.0, %v4327
        %4329 = vmatmul.bf16.gmra.mxu0 %v2956
        %v4330 = vpop.f32.mrf.mxu0
        %v4331 = vadd.f32 0.0, %v4330
        %v4332 = vpop.f32.mrf.mxu0
        %v4333 = vadd.f32 0.0, %v4332
        %4334 = vmatmul.bf16.gmra.mxu0 %v2957
        %v4335 = vpop.f32.mrf.mxu0
        %v4336 = vadd.f32 0.0, %v4335
        %v4337 = vpop.f32.mrf.mxu0
        %v4338 = vadd.f32 0.0, %v4337
        %4339 = vmatmul.bf16.gmra.mxu0 %v2958
        %v4340 = vpop.f32.mrf.mxu0
        %v4341 = vadd.f32 0.0, %v4340
        %v4342 = vpop.f32.mrf.mxu0
        %v4343 = vadd.f32 0.0, %v4342
        %4344 = vmatmul.bf16.gmra.mxu0 %v2959
        %v4345 = vpop.f32.mrf.mxu0
        %v4346 = vadd.f32 0.0, %v4345
        %v4347 = vpop.f32.mrf.mxu0
        %v4348 = vadd.f32 0.0, %v4347
        %4349 = vmatmul.bf16.gmra.mxu0 %v2960
        %v4350 = vpop.f32.mrf.mxu0
        %v4351 = vadd.f32 0.0, %v4350
        %v4352 = vpop.f32.mrf.mxu0
        %v4353 = vadd.f32 0.0, %v4352
        %4354 = vmatmul.bf16.gmra.mxu0 %v2961
        %v4355 = vpop.f32.mrf.mxu0
        %v4356 = vadd.f32 0.0, %v4355
        %v4357 = vpop.f32.mrf.mxu0
        %v4358 = vadd.f32 0.0, %v4357
        %4359 = vmatmul.bf16.gmra.mxu0 %v2962
        %v4360 = vpop.f32.mrf.mxu0
        %v4361 = vadd.f32 0.0, %v4360
        %v4362 = vpop.f32.mrf.mxu0
        %v4363 = vadd.f32 0.0, %v4362
        %4364 = vmatmul.bf16.gmra.mxu0 %v2961
        %v4365 = vpop.f32.mrf.mxu0
        %v4366 = vadd.f32 0.0, %v4365
        %v4367 = vpop.f32.mrf.mxu0
        %v4368 = vadd.f32 0.0, %v4367
        %4369 = vdwg.mxu0
        %4370 = vmatpush.bf16.msra.mxu0 %v4248
        %4371 = vmatpush.bf16.msra.mxu0 %v4247
        %4372 = vmatpush.bf16.msra.mxu0 %v4246
        %4373 = vmatpush.bf16.msra.mxu0 %v4245
        %4374 = vmatpush.bf16.msra.mxu0 %v4244
        %4375 = vmatpush.bf16.msra.mxu0 %v4243
        %4376 = vmatpush.bf16.msra.mxu0 %v4242
        %4377 = vmatpush.bf16.msra.mxu0 %v4241
        %4378 = vmatmul.bf16.gmra.mxu0 %v3043
        %v4379 = vpop.f32.mrf.mxu0
        %v4380 = vadd.f32 %v4291, %v4379
        %v4381 = vpop.f32.mrf.mxu0
        %v4382 = vadd.f32 %v4293, %v4381
        %4383 = vmatmul.bf16.gmra.mxu0 %v3045
        %v4384 = vpop.f32.mrf.mxu0
        %v4385 = vadd.f32 %v4296, %v4384
        %v4386 = vpop.f32.mrf.mxu0
        %v4387 = vadd.f32 %v4298, %v4386
        %4388 = vmatmul.bf16.gmra.mxu0 %v3046
        %v4389 = vpop.f32.mrf.mxu0
        %v4390 = vadd.f32 %v4301, %v4389
        %v4391 = vpop.f32.mrf.mxu0
        %v4392 = vadd.f32 %v4303, %v4391
        %4393 = vmatmul.bf16.gmra.mxu0 %v3047
        %v4394 = vpop.f32.mrf.mxu0
        %v4395 = vadd.f32 %v4306, %v4394
        %v4396 = vpop.f32.mrf.mxu0
        %v4397 = vadd.f32 %v4308, %v4396
        %4398 = vmatmul.bf16.gmra.mxu0 %v3048
        %v4399 = vpop.f32.mrf.mxu0
        %v4400 = vadd.f32 %v4311, %v4399
        %v4401 = vpop.f32.mrf.mxu0
        %v4402 = vadd.f32 %v4313, %v4401
        %4403 = vmatmul.bf16.gmra.mxu0 %v3049
        %v4404 = vpop.f32.mrf.mxu0
        %v4405 = vadd.f32 %v4316, %v4404
        %v4406 = vpop.f32.mrf.mxu0
        %v4407 = vadd.f32 %v4318, %v4406
        %4408 = vmatmul.bf16.gmra.mxu0 %v3050
        %v4409 = vpop.f32.mrf.mxu0
        %v4410 = vadd.f32 %v4321, %v4409
        %v4411 = vpop.f32.mrf.mxu0
        %v4412 = vadd.f32 %v4323, %v4411
        %4413 = vmatmul.bf16.gmra.mxu0 %v3051
        %v4414 = vpop.f32.mrf.mxu0
        %v4415 = vadd.f32 %v4326, %v4414
        %v4416 = vpop.f32.mrf.mxu0
        %v4417 = vadd.f32 %v4328, %v4416
        %4418 = vmatmul.bf16.gmra.mxu0 %v3052
        %v4419 = vpop.f32.mrf.mxu0
        %v4420 = vadd.f32 %v4331, %v4419
        %v4421 = vpop.f32.mrf.mxu0
        %v4422 = vadd.f32 %v4333, %v4421
        %4423 = vmatmul.bf16.gmra.mxu0 %v3053
        %v4424 = vpop.f32.mrf.mxu0
        %v4425 = vadd.f32 %v4336, %v4424
        %v4426 = vpop.f32.mrf.mxu0
        %v4427 = vadd.f32 %v4338, %v4426
        %4428 = vmatmul.bf16.gmra.mxu0 %v3054
        %v4429 = vpop.f32.mrf.mxu0
        %v4430 = vadd.f32 %v4341, %v4429
        %v4431 = vpop.f32.mrf.mxu0
        %v4432 = vadd.f32 %v4343, %v4431
        %4433 = vmatmul.bf16.gmra.mxu0 %v3055
        %v4434 = vpop.f32.mrf.mxu0
        %v4435 = vadd.f32 %v4346, %v4434
        %v4436 = vpop.f32.mrf.mxu0
        %v4437 = vadd.f32 %v4348, %v4436
        %4438 = vmatmul.bf16.gmra.mxu0 %v3056
        %v4439 = vpop.f32.mrf.mxu0
        %v4440 = vadd.f32 %v4351, %v4439
        %v4441 = vpop.f32.mrf.mxu0
        %v4442 = vadd.f32 %v4353, %v4441
        %4443 = vmatmul.bf16.gmra.mxu0 %v3057
        %v4444 = vpop.f32.mrf.mxu0
        %v4445 = vadd.f32 %v4356, %v4444
        %v4446 = vpop.f32.mrf.mxu0
        %v4447 = vadd.f32 %v4358, %v4446
        %4448 = vmatmul.bf16.gmra.mxu0 %v3058
        %v4449 = vpop.f32.mrf.mxu0
        %v4450 = vadd.f32 %v4361, %v4449
        %v4451 = vpop.f32.mrf.mxu0
        %v4452 = vadd.f32 %v4363, %v4451
        %4453 = vmatmul.bf16.gmra.mxu0 %v3057
        %v4454 = vpop.f32.mrf.mxu0
        %v4455 = vadd.f32 %v4366, %v4454
        %v4456 = vpop.f32.mrf.mxu0
        %v4457 = vadd.f32 %v4368, %v4456
        %4458 = vdwg.mxu0
        %4459 = vmatpush.bf16.msra.mxu0 %v4256
        %4460 = vmatpush.bf16.msra.mxu0 %v4255
        %4461 = vmatpush.bf16.msra.mxu0 %v4254
        %4462 = vmatpush.bf16.msra.mxu0 %v4253
        %4463 = vmatpush.bf16.msra.mxu0 %v4252
        %4464 = vmatpush.bf16.msra.mxu0 %v4251
        %4465 = vmatpush.bf16.msra.mxu0 %v4250
        %4466 = vmatpush.bf16.msra.mxu0 %v4249
        %4467 = vmatmul.bf16.gmra.mxu0 %v3139
        %v4468 = vpop.f32.mrf.mxu0
        %v4469 = vadd.f32 %v4380, %v4468
        %v4470 = vpop.f32.mrf.mxu0
        %v4471 = vadd.f32 %v4382, %v4470
        %4472 = vmatmul.bf16.gmra.mxu0 %v3141
        %v4473 = vpop.f32.mrf.mxu0
        %v4474 = vadd.f32 %v4385, %v4473
        %v4475 = vpop.f32.mrf.mxu0
        %v4476 = vadd.f32 %v4387, %v4475
        %4477 = vmatmul.bf16.gmra.mxu0 %v3142
        %v4478 = vpop.f32.mrf.mxu0
        %v4479 = vadd.f32 %v4390, %v4478
        %v4480 = vpop.f32.mrf.mxu0
        %v4481 = vadd.f32 %v4392, %v4480
        %4482 = vmatmul.bf16.gmra.mxu0 %v3143
        %v4483 = vpop.f32.mrf.mxu0
        %v4484 = vadd.f32 %v4395, %v4483
        %v4485 = vpop.f32.mrf.mxu0
        %v4486 = vadd.f32 %v4397, %v4485
        %4487 = vmatmul.bf16.gmra.mxu0 %v3144
        %v4488 = vpop.f32.mrf.mxu0
        %v4489 = vadd.f32 %v4400, %v4488
        %v4490 = vpop.f32.mrf.mxu0
        %v4491 = vadd.f32 %v4402, %v4490
        %4492 = vmatmul.bf16.gmra.mxu0 %v3145
        %v4493 = vpop.f32.mrf.mxu0
        %v4494 = vadd.f32 %v4405, %v4493
        %v4495 = vpop.f32.mrf.mxu0
        %v4496 = vadd.f32 %v4407, %v4495
        %4497 = vmatmul.bf16.gmra.mxu0 %v3146
        %v4498 = vpop.f32.mrf.mxu0
        %v4499 = vadd.f32 %v4410, %v4498
        %v4500 = vpop.f32.mrf.mxu0
        %v4501 = vadd.f32 %v4412, %v4500
        %4502 = vmatmul.bf16.gmra.mxu0 %v3147
        %v4503 = vpop.f32.mrf.mxu0
        %v4504 = vadd.f32 %v4415, %v4503
        %v4505 = vpop.f32.mrf.mxu0
        %v4506 = vadd.f32 %v4417, %v4505
        %4507 = vmatmul.bf16.gmra.mxu0 %v3148
        %v4508 = vpop.f32.mrf.mxu0
        %v4509 = vadd.f32 %v4420, %v4508
        %v4510 = vpop.f32.mrf.mxu0
        %v4511 = vadd.f32 %v4422, %v4510
        %4512 = vmatmul.bf16.gmra.mxu0 %v3149
        %v4513 = vpop.f32.mrf.mxu0
        %v4514 = vadd.f32 %v4425, %v4513
        %v4515 = vpop.f32.mrf.mxu0
        %v4516 = vadd.f32 %v4427, %v4515
        %4517 = vmatmul.bf16.gmra.mxu0 %v3150
        %v4518 = vpop.f32.mrf.mxu0
        %v4519 = vadd.f32 %v4430, %v4518
        %v4520 = vpop.f32.mrf.mxu0
        %v4521 = vadd.f32 %v4432, %v4520
        %4522 = vmatmul.bf16.gmra.mxu0 %v3151
        %v4523 = vpop.f32.mrf.mxu0
        %v4524 = vadd.f32 %v4435, %v4523
        %v4525 = vpop.f32.mrf.mxu0
        %v4526 = vadd.f32 %v4437, %v4525
        %4527 = vmatmul.bf16.gmra.mxu0 %v3152
        %v4528 = vpop.f32.mrf.mxu0
        %v4529 = vadd.f32 %v4440, %v4528
        %v4530 = vpop.f32.mrf.mxu0
        %v4531 = vadd.f32 %v4442, %v4530
        %4532 = vmatmul.bf16.gmra.mxu0 %v3153
        %v4533 = vpop.f32.mrf.mxu0
        %v4534 = vadd.f32 %v4445, %v4533
        %v4535 = vpop.f32.mrf.mxu0
        %v4536 = vadd.f32 %v4447, %v4535
        %4537 = vmatmul.bf16.gmra.mxu0 %v3154
        %v4538 = vpop.f32.mrf.mxu0
        %v4539 = vadd.f32 %v4450, %v4538
        %v4540 = vpop.f32.mrf.mxu0
        %v4541 = vadd.f32 %v4452, %v4540
        %4542 = vmatmul.bf16.gmra.mxu0 %v3153
        %v4543 = vpop.f32.mrf.mxu0
        %v4544 = vadd.f32 %v4455, %v4543
        %v4545 = vpop.f32.mrf.mxu0
        %v4546 = vadd.f32 %v4457, %v4545
        %4547 = vdwg.mxu0
        %v4548 = vadd.f32 %v4010, %v4469
        %v4549 = vadd.f32 %v4012, %v4471
        %v4550 = vadd.f32 %v4015, %v4474
        %v4551 = vadd.f32 %v4017, %v4476
        %v4552 = vadd.f32 %v4020, %v4479
        %v4553 = vadd.f32 %v4022, %v4481
        %v4554 = vadd.f32 %v4025, %v4484
        %v4555 = vadd.f32 %v4027, %v4486
        %v4556 = vadd.f32 %v4030, %v4489
        %v4557 = vadd.f32 %v4032, %v4491
        %v4558 = vadd.f32 %v4035, %v4494
        %v4559 = vadd.f32 %v4037, %v4496
        %v4560 = vadd.f32 %v4040, %v4499
        %v4561 = vadd.f32 %v4042, %v4501
        %v4562 = vadd.f32 %v4045, %v4504
        %v4563 = vadd.f32 %v4047, %v4506
        %v4564 = vadd.f32 %v4050, %v4509
        %v4565 = vadd.f32 %v4052, %v4511
        %v4566 = vadd.f32 %v4055, %v4514
        %v4567 = vadd.f32 %v4057, %v4516
        %v4568 = vadd.f32 %v4060, %v4519
        %v4569 = vadd.f32 %v4062, %v4521
        %v4570 = vadd.f32 %v4065, %v4524
        %v4571 = vadd.f32 %v4067, %v4526
        %v4572 = vadd.f32 %v4070, %v4529
        %v4573 = vadd.f32 %v4072, %v4531
        %v4574 = vadd.f32 %v4075, %v4534
        %v4575 = vadd.f32 %v4077, %v4536
        %v4576 = vadd.f32 %v4080, %v4539
        %v4577 = vadd.f32 %v4082, %v4541
        %v4578 = vadd.f32 %v4085, %v4544
        %v4579 = vadd.f32 %v4087, %v4546
        %v4580 = vadd.f32 %v4548, %v4549
        %v4581 = vadd.f32 %v4580, %v4550
        %v4582 = vadd.f32 %v4581, %v4551
        %v4583 = vadd.f32 %v4582, %v4552
        %v4584 = vadd.f32 %v4583, %v4553
        %v4585 = vadd.f32 %v4584, %v4554
        %v4586 = vadd.f32 %v4585, %v4555
        %v4587 = vadd.f32 %v4586, %v4556
        %v4588 = vadd.f32 %v4587, %v4557
        %v4589 = vadd.f32 %v4588, %v4558
        %v4590 = vadd.f32 %v4589, %v4559
        %v4591 = vadd.f32 %v4590, %v4560
        %v4592 = vadd.f32 %v4591, %v4561
        %v4593 = vadd.f32 %v4592, %v4562
        %v4594 = vadd.f32 %v4593, %v4563
        %v4595 = vadd.f32 %v4594, %v4564
        %v4596 = vadd.f32 %v4595, %v4565
        %v4597 = vadd.f32 %v4596, %v4566
        %v4598 = vadd.f32 %v4597, %v4567
        %v4599 = vadd.f32 %v4598, %v4568
        %v4600 = vadd.f32 %v4599, %v4569
        %v4601 = vadd.f32 %v4600, %v4570
        %v4602 = vadd.f32 %v4601, %v4571
        %v4603 = vadd.f32 %v4602, %v4572
        %v4604 = vadd.f32 %v4603, %v4573
        %v4605 = vadd.f32 %v4604, %v4574
        %v4606 = vadd.f32 %v4605, %v4575
        %v4607 = vadd.f32 %v4606, %v4576
        %v4608 = vadd.f32 %v4607, %v4577
        %v4609 = vadd.f32 %v4608, %v4578
        %v4610 = vadd.f32 %v4609, %v4579
        %v4611 = vrot.slane %v4610, 4
        %v4612 = vadd.f32 %v4610, %v4611
        %v4613 = vrot.slane %v4612, 2
        %v4614 = vadd.f32 %v4612, %v4613
        %v4615 = vrot.slane %v4614, 1
        %v4616 = vadd.f32 %v4614, %v4615
        %v4617 = vmul.f32 %v4548, %v4548
        %v4618 = vmul.f32 %v4549, %v4549
        %v4619 = vmul.f32 %v4550, %v4550
        %v4620 = vmul.f32 %v4551, %v4551
        %v4621 = vmul.f32 %v4552, %v4552
        %v4622 = vmul.f32 %v4553, %v4553
        %v4623 = vmul.f32 %v4554, %v4554
        %v4624 = vmul.f32 %v4555, %v4555
        %v4625 = vmul.f32 %v4556, %v4556
        %v4626 = vmul.f32 %v4557, %v4557
        %v4627 = vmul.f32 %v4558, %v4558
        %v4628 = vmul.f32 %v4559, %v4559
        %v4629 = vmul.f32 %v4560, %v4560
        %v4630 = vmul.f32 %v4561, %v4561
        %v4631 = vmul.f32 %v4562, %v4562
        %v4632 = vmul.f32 %v4563, %v4563
        %v4633 = vmul.f32 %v4564, %v4564
        %v4634 = vmul.f32 %v4565, %v4565
        %v4635 = vmul.f32 %v4566, %v4566
        %v4636 = vmul.f32 %v4567, %v4567
        %v4637 = vmul.f32 %v4568, %v4568
        %v4638 = vmul.f32 %v4569, %v4569
        %v4639 = vmul.f32 %v4570, %v4570
        %v4640 = vmul.f32 %v4571, %v4571
        %v4641 = vmul.f32 %v4572, %v4572
        %v4642 = vmul.f32 %v4573, %v4573
        %v4643 = vmul.f32 %v4574, %v4574
        %v4644 = vmul.f32 %v4575, %v4575
        %v4645 = vmul.f32 %v4576, %v4576
        %v4646 = vmul.f32 %v4577, %v4577
        %v4647 = vmul.f32 %v4578, %v4578
        %v4648 = vmul.f32 %v4579, %v4579
        %v4649 = vadd.f32 %v4617, %v4618
        %v4650 = vadd.f32 %v4649, %v4619
        %v4651 = vadd.f32 %v4650, %v4620
        %v4652 = vadd.f32 %v4651, %v4621
        %v4653 = vadd.f32 %v4652, %v4622
        %v4654 = vadd.f32 %v4653, %v4623
        %v4655 = vadd.f32 %v4654, %v4624
        %v4656 = vadd.f32 %v4655, %v4625
        %v4657 = vadd.f32 %v4656, %v4626
        %v4658 = vadd.f32 %v4657, %v4627
        %v4659 = vadd.f32 %v4658, %v4628
        %v4660 = vadd.f32 %v4659, %v4629
        %v4661 = vadd.f32 %v4660, %v4630
        %v4662 = vadd.f32 %v4661, %v4631
        %v4663 = vadd.f32 %v4662, %v4632
        %v4664 = vadd.f32 %v4663, %v4633
        %v4665 = vadd.f32 %v4664, %v4634
        %v4666 = vadd.f32 %v4665, %v4635
        %v4667 = vadd.f32 %v4666, %v4636
        %v4668 = vadd.f32 %v4667, %v4637
        %v4669 = vadd.f32 %v4668, %v4638
        %v4670 = vadd.f32 %v4669, %v4639
        %v4671 = vadd.f32 %v4670, %v4640
        %v4672 = vadd.f32 %v4671, %v4641
        %v4673 = vadd.f32 %v4672, %v4642
        %v4674 = vadd.f32 %v4673, %v4643
        %v4675 = vadd.f32 %v4674, %v4644
        %v4676 = vadd.f32 %v4675, %v4645
        %v4677 = vadd.f32 %v4676, %v4646
        %v4678 = vadd.f32 %v4677, %v4647
        %v4679 = vadd.f32 %v4678, %v4648
        %v4680 = vrot.slane %v4679, 4
        %v4681 = vadd.f32 %v4679, %v4680
        %v4682 = vrot.slane %v4681, 2
        %v4683 = vadd.f32 %v4681, %v4682
        %v4684 = vrot.slane %v4683, 1
        %v4685 = vadd.f32 %v4683, %v4684
        %v4686 = vmul.f32 %v4616, 0.00390625
        %v4687 = vmul.f32 %v4685, 0.00390625
        %v4688 = vmul.f32 %v4686, %v4686
        %v4689 = vsub.f32 %v4687, %v4688
        %v4690 = vmax.f32 %v4689, 0.0
        %v4691 = vld [vmem:[%s5] sm:$0x1]
        %v4692 = vadd.f32 %v4690, 1e-05
        %v4693 = vrsqrt.pop %v4692
        %v4694 = vmul.f32 %v4693, %v4692
        %v4695 = vmul.f32 %v4694, %v4693
        %v4696 = vmul.f32 0.5, %v4695
        %v4697 = vsub.f32 1.5, %v4696
        %v4698 = vmul.f32 %v4693, %v4697
        %vm4699 = vweird.f32 %v4692
        %vm4700 = vweird.f32 %v4693
        %vm4701 = vmor %vm4699, %vm4700
        %v4702 = vsel %vm4701, %v4693, %v4698
        %v4703 = vmul.f32 %v4691, %v4702
        %v4704 = vld [vmem:[%s6] sm:$0x1]
        %v4705 = vmul.f32 %v4686, %v4703
        %v4706 = vsub.f32 %v4704, %v4705
        %v4708 = vperm.slane %v4703, 0
        %v4710 = vmul.f32 %v4548, %v4708
        %v4711 = vmul.f32 %v4549, %v4708
        %v4712 = vmul.f32 %v4550, %v4708
        %v4713 = vmul.f32 %v4551, %v4708
        %v4714 = vmul.f32 %v4552, %v4708
        %v4715 = vmul.f32 %v4553, %v4708
        %v4716 = vmul.f32 %v4554, %v4708
        %v4717 = vmul.f32 %v4555, %v4708
        %v4718 = vmul.f32 %v4556, %v4708
        %v4719 = vmul.f32 %v4557, %v4708
        %v4720 = vmul.f32 %v4558, %v4708
        %v4721 = vmul.f32 %v4559, %v4708
        %v4722 = vmul.f32 %v4560, %v4708
        %v4723 = vmul.f32 %v4561, %v4708
        %v4724 = vmul.f32 %v4562, %v4708
        %v4725 = vmul.f32 %v4563, %v4708
        %v4726 = vmul.f32 %v4564, %v4708
        %v4727 = vmul.f32 %v4565, %v4708
        %v4728 = vmul.f32 %v4566, %v4708
        %v4729 = vmul.f32 %v4567, %v4708
        %v4730 = vmul.f32 %v4568, %v4708
        %v4731 = vmul.f32 %v4569, %v4708
        %v4732 = vmul.f32 %v4570, %v4708
        %v4733 = vmul.f32 %v4571, %v4708
        %v4734 = vmul.f32 %v4572, %v4708
        %v4735 = vmul.f32 %v4573, %v4708
        %v4736 = vmul.f32 %v4574, %v4708
        %v4737 = vmul.f32 %v4575, %v4708
        %v4738 = vmul.f32 %v4576, %v4708
        %v4739 = vmul.f32 %v4577, %v4708
        %v4740 = vmul.f32 %v4578, %v4708
        %v4741 = vmul.f32 %v4579, %v4708
        %v4743 = vperm.slane %v4706, 0
        %v4745 = vadd.f32 %v4710, %v4743
        %v4746 = vadd.f32 %v4711, %v4743
        %v4747 = vadd.f32 %v4712, %v4743
        %v4748 = vadd.f32 %v4713, %v4743
        %v4749 = vadd.f32 %v4714, %v4743
        %v4750 = vadd.f32 %v4715, %v4743
        %v4751 = vadd.f32 %v4716, %v4743
        %v4752 = vadd.f32 %v4717, %v4743
        %v4753 = vadd.f32 %v4718, %v4743
        %v4754 = vadd.f32 %v4719, %v4743
        %v4755 = vadd.f32 %v4720, %v4743
        %v4756 = vadd.f32 %v4721, %v4743
        %v4757 = vadd.f32 %v4722, %v4743
        %v4758 = vadd.f32 %v4723, %v4743
        %v4759 = vadd.f32 %v4724, %v4743
        %v4760 = vadd.f32 %v4725, %v4743
        %v4761 = vadd.f32 %v4726, %v4743
        %v4762 = vadd.f32 %v4727, %v4743
        %v4763 = vadd.f32 %v4728, %v4743
        %v4764 = vadd.f32 %v4729, %v4743
        %v4765 = vadd.f32 %v4730, %v4743
        %v4766 = vadd.f32 %v4731, %v4743
        %v4767 = vadd.f32 %v4732, %v4743
        %v4768 = vadd.f32 %v4733, %v4743
        %v4769 = vadd.f32 %v4734, %v4743
        %v4770 = vadd.f32 %v4735, %v4743
        %v4771 = vadd.f32 %v4736, %v4743
        %v4772 = vadd.f32 %v4737, %v4743
        %v4773 = vadd.f32 %v4738, %v4743
        %v4774 = vadd.f32 %v4739, %v4743
        %v4775 = vadd.f32 %v4740, %v4743
        %v4776 = vadd.f32 %v4741, %v4743
        %v4777 = vadd.f32 %v4745, %v332
        %v4778 = vadd.f32 %v4746, %v333
        %v4779 = vadd.f32 %v4747, %v334
        %v4780 = vadd.f32 %v4748, %v335
        %v4781 = vadd.f32 %v4749, %v336
        %v4782 = vadd.f32 %v4750, %v337
        %v4783 = vadd.f32 %v4751, %v338
        %v4784 = vadd.f32 %v4752, %v339
        %v4785 = vadd.f32 %v4753, %v340
        %v4786 = vadd.f32 %v4754, %v341
        %v4787 = vadd.f32 %v4755, %v342
        %v4788 = vadd.f32 %v4756, %v343
        %v4789 = vadd.f32 %v4757, %v344
        %v4790 = vadd.f32 %v4758, %v345
        %v4791 = vadd.f32 %v4759, %v346
        %v4792 = vadd.f32 %v4760, %v347
        %v4793 = vadd.f32 %v4761, %v348
        %v4794 = vadd.f32 %v4762, %v349
        %v4795 = vadd.f32 %v4763, %v350
        %v4796 = vadd.f32 %v4764, %v351
        %v4797 = vadd.f32 %v4765, %v352
        %v4798 = vadd.f32 %v4766, %v353
        %v4799 = vadd.f32 %v4767, %v354
        %v4800 = vadd.f32 %v4768, %v355
        %v4801 = vadd.f32 %v4769, %v356
        %v4802 = vadd.f32 %v4770, %v357
        %v4803 = vadd.f32 %v4771, %v358
        %v4804 = vadd.f32 %v4772, %v359
        %v4805 = vadd.f32 %v4773, %v360
        %v4806 = vadd.f32 %v4774, %v361
        %v4807 = vadd.f32 %v4775, %v362
        %v4808 = vadd.f32 %v4776, %v363
        %4809 = vst [vmem:[%s331] sm:$0xff] %v4777
        %4810 = vst [vmem:[%s331 + $0x8] sm:$0xff] %v4778
        %4811 = vst [vmem:[%s331 + $0x10] sm:$0xff] %v4779
        %4812 = vst [vmem:[%s331 + $0x18] sm:$0xff] %v4780
        %4813 = vst [vmem:[%s331 + $0x20] sm:$0xff] %v4781
        %4814 = vst [vmem:[%s331 + $0x28] sm:$0xff] %v4782
        %4815 = vst [vmem:[%s331 + $0x30] sm:$0xff] %v4783
        %4816 = vst [vmem:[%s331 + $0x38] sm:$0xff] %v4784
        %4817 = vst [vmem:[%s331 + $0x40] sm:$0xff] %v4785
        %4818 = vst [vmem:[%s331 + $0x48] sm:$0xff] %v4786
        %4819 = vst [vmem:[%s331 + $0x50] sm:$0xff] %v4787
        %4820 = vst [vmem:[%s331 + $0x58] sm:$0xff] %v4788
        %4821 = vst [vmem:[%s331 + $0x60] sm:$0xff] %v4789
        %4822 = vst [vmem:[%s331 + $0x68] sm:$0xff] %v4790
        %4823 = vst [vmem:[%s331 + $0x70] sm:$0xff] %v4791
        %4824 = vst [vmem:[%s331 + $0x78] sm:$0xff] %v4792
        %4825 = vst [vmem:[%s331 + $0x80] sm:$0xff] %v4793
        %4826 = vst [vmem:[%s331 + $0x88] sm:$0xff] %v4794
        %4827 = vst [vmem:[%s331 + $0x90] sm:$0xff] %v4795
        %4828 = vst [vmem:[%s331 + $0x98] sm:$0xff] %v4796
        %4829 = vst [vmem:[%s331 + $0xa0] sm:$0xff] %v4797
        %4830 = vst [vmem:[%s331 + $0xa8] sm:$0xff] %v4798
        %4831 = vst [vmem:[%s331 + $0xb0] sm:$0xff] %v4799
        %4832 = vst [vmem:[%s331 + $0xb8] sm:$0xff] %v4800
        %4833 = vst [vmem:[%s331 + $0xc0] sm:$0xff] %v4801
        %4834 = vst [vmem:[%s331 + $0xc8] sm:$0xff] %v4802
        %4835 = vst [vmem:[%s331 + $0xd0] sm:$0xff] %v4803
        %4836 = vst [vmem:[%s331 + $0xd8] sm:$0xff] %v4804
        %4837 = vst [vmem:[%s331 + $0xe0] sm:$0xff] %v4805
        %4838 = vst [vmem:[%s331 + $0xe8] sm:$0xff] %v4806
        %4839 = vst [vmem:[%s331 + $0xf0] sm:$0xff] %v4807
        %4840 = vst [vmem:[%s331 + $0xf8] sm:$0xff] %v4808
        %s4841 = sand.u32 %s185, 1
        %s4842 = scalar_lea.sflag [#allocation4], %s4841
        %s4843 = sand.u32 %s185, 1
        %s4844 = smul.addr %s4843, 256
        %s4845 = scalar_lea.vmem [#allocation8], %s4844
        // Predicated region
        $region61: #{tpu_custom_call.1} parent=47 // pred_check
          %p4846 = pneg %p195
        $region62: #{tpu_custom_call.1} parent=47 // pred_check_branch
          %4848 = sbr.rel (%p4846) target = $region64
        $region63: #{tpu_custom_call.1} parent=47 // pred_region
          %4850 = vsyncadd %s4842, 0
          %s4851 = smul.addr %s25, 32
          %s4852 = smul.addr %s4851, 8
          %s4853 = scalar_lea.hbm %s7, %s4852
          %s4854 = sshll.u32 %s4845, 4
          %s4855 = int_to_ptr.vmem [resolvable:$true] %s4854
          %s4856 = sshll.u32 %s4853, 4
          %s4857 = int_to_ptr.hbm [resolvable:$true] %s4856
          %4862 = dma.vmem_to_hbm [thread:$0]  %s4855, 4096, %s4857, %s4842, 128, 128, 8
        $region64: #{tpu_custom_call.1} parent=47 // pred_fallthru
          _
      $region48: #{tpu_custom_call.1} parent=5 // pred_fallthru
        _
      %p4863 = scmp.le.s32.totalorder 2, %s20
      // Predicated region
      $region65: #{tpu_custom_call.1} parent=5 // pred_check
        %p4864 = pneg %p4863
      $region66: #{tpu_custom_call.1} parent=5 // pred_check_branch
        %4866 = sbr.rel (%p4864) target = $region68
      $region67: #{tpu_custom_call.1} parent=5 // pred_region
        %s4867 = ssub.s32 %s20, 2
        // Predicated region
        $region69: #{tpu_custom_call.1} parent=67 // pred_check
          %p4868 = pneg %p201
        $region70: #{tpu_custom_call.1} parent=67 // pred_check_branch
          %4870 = sbr.rel (%p4868) target = $region72
        $region71: #{tpu_custom_call.1} parent=67 // pred_region
          %s4871 = sand.u32 %s186, 1
          %s4872 = scalar_lea.sflag [#allocation4], %s4871
          %s4873 = sand.u32 %s186, 1
          %s4874 = smul.addr %s4873, 256
          %s4875 = scalar_lea.vmem [#allocation8], %s4874
          %4877 = dma.done %s4872, 4096
        $region72: #{tpu_custom_call.1} parent=67 // pred_fallthru
          _
      $region68: #{tpu_custom_call.1} parent=5 // pred_fallthru
        _
    $region6: #{tpu_custom_call.1} parent=1 // loop_footer
      %s24 = sadd.s32 1, %s20
    $region7: #{tpu_custom_call.1} parent=1 // loop_footer_branch
      %19 = sbr.rel target = $region3
    $region8: #{tpu_custom_call.1} parent=1 // loop_exit
      _
    %4878 = vsyncpa [#allocation3], 1
    %s4879 = scalar_lea.sflag [#allocation3], 1
    %4880 = vsyncpa %s4879, 1
    %4881 = vsyncpa [#allocation6], 1
    %4882 = vsyncpa [#allocation4], 1
    %s4883 = scalar_lea.sflag [#allocation4], 1
    %4884 = vsyncpa %s4883, 1

</llo_original>
